<compile_context>
chip_gen: v5e
topology: v5e:2x2
jax: 0.10.0
libtpu: 0.0.40
codegen_flags: <defaults>
</compile_context>

<pallas_src>
import math
from functools import partial

import jax
import jax.numpy as jnp
from jax.experimental import pallas as pl
from jax.experimental.pallas import tpu as pltpu


def _round_up(x, m):
    return ((x + m - 1) // m) * m


# ------------------------- tiled matmul (+ optional bias) ------------------------

def _matmul_kernel(*refs, has_bias, multi_k):
    if multi_k:
        acc_ref = refs[-1]
        refs = refs[:-1]
    o_ref = refs[-1]
    x_ref, w_ref = refs[0], refs[1]
    b_ref = refs[2] if has_bias else None

    if not multi_k:
        # Single K step: no accumulator scratch, no init/finalize phases.
        r = jnp.dot(x_ref[...], w_ref[...], preferred_element_type=jnp.float32)
        if has_bias:
            r = r + b_ref[...]
        o_ref[...] = r.astype(o_ref.dtype)
    else:
        @pl.when(pl.program_id(2) == 0)
        def _init():
            acc_ref[...] = jnp.zeros_like(acc_ref)

        acc_ref[...] += jnp.dot(x_ref[...], w_ref[...],
                                preferred_element_type=jnp.float32)

        @pl.when(pl.program_id(2) == pl.num_programs(2) - 1)
        def _finalize():
            r = acc_ref[...]
            if has_bias:
                r = r + b_ref[...]
            o_ref[...] = r.astype(o_ref.dtype)


def linear(x, w, b=None, out_dtype=jnp.bfloat16):
    """(..., K) @ (K, N) (+ b): bf16 MXU operands, fp32 accumulation."""
    lead = x.shape[:-1]
    K = x.shape[-1]
    N = w.shape[-1]
    x2 = x.reshape(-1, K).astype(jnp.bfloat16)
    w2 = w.astype(jnp.bfloat16)
    M = x2.shape[0]

    # ---- tile selection ----
    tn = min(256, _round_up(N, 128))
    Np = _round_up(N, tn)
    n_tiles_n = Np // tn

    multi_k = K > 512
    tk = 512 if multi_k else K            # full-K block: no K padding, no scratch
    Kp = _round_up(K, tk) if multi_k else K

    # Expose >= 2 parallel tiles per call (v7x has 2 TensorCores), avoiding M
    # padding when the N axis already provides the parallelism.
    if M > 512:
        tm = 256
    elif n_tiles_n >= 2 or M <= 8:
        tm = M                            # full-M block (legal even if not /8)
    else:
        tm = _round_up(max(pl.cdiv(M, 2), 1), 8)
    Mp = _round_up(M, tm)

    if (Mp, Kp) != (M, K):
        x2 = jnp.pad(x2, ((0, Mp - M), (0, Kp - K)))
    if (Kp, Np) != (K, N):
        w2 = jnp.pad(w2, ((0, Kp - K), (0, Np - N)))

    has_bias = b is not None
    inputs = [x2, w2]
    if has_bias:
        b2 = b.astype(jnp.float32).reshape(1, N)
        if Np != N:
            b2 = jnp.pad(b2, ((0, 0), (0, Np - N)))
        inputs.append(b2)

    if multi_k:
        grid = (Mp // tm, Np // tn, Kp // tk)
        x_spec = pl.BlockSpec((tm, tk), lambda i, j, k: (i, k))
        w_spec = pl.BlockSpec((tk, tn), lambda i, j, k: (k, j))
        b_spec = pl.BlockSpec((1, tn), lambda i, j, k: (0, j))
        o_spec = pl.BlockSpec((tm, tn), lambda i, j, k: (i, j))
        scratch = [pltpu.VMEM((tm, tn), jnp.float32)]
        semantics = ("parallel", "parallel", "arbitrary")
    else:
        grid = (Mp // tm, Np // tn)
        x_spec = pl.BlockSpec((tm, tk), lambda i, j: (i, 0))
        w_spec = pl.BlockSpec((tk, tn), lambda i, j: (0, j))
        b_spec = pl.BlockSpec((1, tn), lambda i, j: (0, j))
        o_spec = pl.BlockSpec((tm, tn), lambda i, j: (i, j))
        scratch = []
        semantics = ("parallel", "parallel")
    in_specs = [x_spec, w_spec] + ([b_spec] if has_bias else [])

    cost = pl.CostEstimate(
        flops=2 * M * K * N, transcendentals=0,
        bytes_accessed=2 * M * K + 2 * K * N + (4 * N if has_bias else 0)
                       + M * N * jnp.dtype(out_dtype).itemsize)

    out = pl.pallas_call(
        partial(_matmul_kernel, has_bias=has_bias, multi_k=multi_k),
        grid=grid,
        in_specs=in_specs,
        out_specs=o_spec,
        out_shape=jax.ShapeDtypeStruct((Mp, Np), out_dtype),
        scratch_shapes=scratch,
        compiler_params=pltpu.CompilerParams(
            dimension_semantics=semantics,
            vmem_limit_bytes=32 * 1024 * 1024),
        cost_estimate=cost,
    )(*inputs)
    if (Mp, Np) != (M, N):
        out = out[:M, :N]
    return out.reshape(*lead, N)


# -------------- fused SpatialConv: depthwise kxk + 1x1 conv + cls_proj ------------

def _spatial_q_kernel(xp_ref, cls_ref, dw_ref, pw_ref, clsw_ref, clsb_ref, o_ref,
                      *, ksize, H, W):
    D = xp_ref.shape[-1]
    x = xp_ref[0].astype(jnp.float32)                       # (Hp, Wp, D) load once
    acc = jnp.zeros((H, W, D), jnp.float32)
    for kw in range(ksize):
        xw = x[:, kw:kw + W, :]                             # one sublane shift per kw
        for kh in range(ksize):
            idx = kh * ksize + kw
            tap = dw_ref[idx:idx + 1, :].reshape(1, 1, D)   # fp32 per-channel tap
            acc = acc + xw[kh:kh + H] * tap
    dw_out = acc.reshape(H * W, D).astype(jnp.bfloat16)     # layout-preserving merge
    # 1x1 pointwise conv straight from registers/VMEM (fused; no HBM round trip).
    q_sp = jnp.dot(dw_out, pw_ref[...], preferred_element_type=jnp.float32)
    # cls_proj fused too: one tiny (1, D) @ (D, inner) MXU call + bias.
    q_cls = jnp.dot(cls_ref[0].astype(jnp.bfloat16), clsw_ref[...],
                    preferred_element_type=jnp.float32) + clsb_ref[...]
    # single lane-dense (N, inner) store (cls row + fmap rows).
    o_ref[0] = jnp.concatenate([q_cls, q_sp], axis=0).astype(o_ref.dtype)


def spatial_conv_q(x, p, fmap_h, fmap_w, ksize, inner):
    """to_q = SpatialConv(dim, inner): dwconv(kxk) -> 1x1 conv (no bias) on fmap
    tokens, Linear (or Identity) on the cls token, all fused in one kernel."""
    B, N, D = x.shape
    assert N == 1 + fmap_h * fmap_w
    pad = ksize // 2
    cls_tok = x[:, :1]                                       # (B, 1, D)
    fmap = x[:, 1:].reshape(B, fmap_h, fmap_w, D)            # NHWC
    xp = jnp.pad(fmap, ((0, 0), (pad, pad), (pad, pad), (0, 0)))
    Hp, Wp = fmap_h + 2 * pad, fmap_w + 2 * pad

    dw_w = p["dw_w"].reshape(ksize * ksize, D).astype(jnp.float32)
    pw_w = p["pw_w"].astype(jnp.bfloat16)
    if "cls_w" in p:                                         # cls_proj = Linear
        cls_w = p["cls_w"].astype(jnp.bfloat16)
        cls_b = p["cls_b"].astype(jnp.float32).reshape(1, inner)
    else:                                                    # cls_proj = Identity
        cls_w = jnp.eye(D, inner, dtype=jnp.bfloat16)
        cls_b = jnp.zeros((1, inner), jnp.float32)

    return pl.pallas_call(
        partial(_spatial_q_kernel, ksize=ksize, H=fmap_h, W=fmap_w),
        grid=(B,),
        in_specs=[
            pl.BlockSpec((1, Hp, Wp, D), lambda b: (b, 0, 0, 0)),
            pl.BlockSpec((1, 1, D), lambda b: (b, 0, 0)),
            pl.BlockSpec((ksize * ksize, D), lambda b: (0, 0)),
            pl.BlockSpec((D, inner), lambda b: (0, 0)),
            pl.BlockSpec((D, inner), lambda b: (0, 0)),
            pl.BlockSpec((1, inner), lambda b: (0, 0)),
        ],
        out_specs=pl.BlockSpec((1, N, inner), lambda b: (b, 0, 0)),
        out_shape=jax.ShapeDtypeStruct((B, N, inner), jnp.bfloat16),
        compiler_params=pltpu.CompilerParams(
            dimension_semantics=("parallel",),
            vmem_limit_bytes=32 * 1024 * 1024),
    )(xp, cls_tok, dw_w, pw_w, cls_w, cls_b)


# ------------- fused rotary + multi-head attention + output projection ------------

def _attention_kernel(q_ref, kv_ref, sq_ref, cq_ref, sk_ref, ck_ref,
                      ow_ref, ob_ref, o_ref, *, heads, dim_head):
    inner = heads * dim_head
    N = q_ref.shape[1]
    dim_out = ow_ref.shape[-1]

    q = q_ref[0].astype(jnp.float32)                       # (N, inner)
    kv = kv_ref[0]                                         # (N, 2*inner) bf16
    k = kv[:, :inner].astype(jnp.float32)                  # 128-lane aligned slices
    v = kv[:, inner:]                                      # bf16

    lane = jax.lax.broadcasted_iota(jnp.int32, q.shape, 1)
    even = (lane % 2) == 0

    def swap_pairs(t):
        # pairwise swap (x0,x1,x2,x3,...) -> (x1,x0,x3,x2,...) on the XLU.
        left = pltpu.roll(t, inner - 1, axis=1)             # t[j+1] at even j
        right = pltpu.roll(t, 1, axis=1)                    # t[j-1] at odd j
        return jnp.where(even, left, right)

    # rotate_every_two's sign is folded into the sin tables, the softmax scale into
    # the q tables; cls row / pass-through dims are identity (sin=0, cos=1).
    q = (q * cq_ref[...] + swap_pairs(q) * sq_ref[...]).astype(jnp.bfloat16)
    kf = k * ck_ref[...] + swap_pairs(k) * sk_ref[...]
    kt = kf.T.astype(jnp.bfloat16)                          # ONE (N,inner)->(inner,N) transpose

    acc = jnp.zeros((N, dim_out), jnp.float32)              # fused out-projection acc
    for h in range(heads):                                  # static unroll over heads
        lo, hi = h * dim_head, (h + 1) * dim_head
        s = jnp.dot(q[:, lo:hi], kt[lo:hi, :],
                    preferred_element_type=jnp.float32)     # (N, N) fp32 scores
        s = s - jnp.max(s, axis=-1, keepdims=True)          # fp32 softmax stats
        p = jnp.exp(s)
        p = p * pl.reciprocal(jnp.sum(p, axis=-1, keepdims=True), approx=True)
        pv = jnp.dot(p.astype(jnp.bfloat16), v[:, lo:hi],
                     preferred_element_type=jnp.float32)    # (N, dim_head)
        # out = concat_h(pv_h) @ out_w  ==  sum_h pv_h @ out_w[h*dh:(h+1)*dh, :]
        acc = acc + jnp.dot(pv.astype(jnp.bfloat16), ow_ref[lo:hi, :],
                            preferred_element_type=jnp.float32)
    o_ref[0] = (acc + ob_ref[...]).astype(o_ref.dtype)


def attention_core(q, kv, rot_tables, out_w, out_b, heads, dim_head):
    B, N, inner = q.shape
    assert inner == heads * dim_head and inner % 2 == 0
    dim_out = out_w.shape[-1]
    sq, cq, sk, ck = rot_tables                             # each (N, inner) f32
    ow = out_w.astype(jnp.bfloat16)
    ob = out_b.astype(jnp.float32).reshape(1, dim_out)

    cost = pl.CostEstimate(
        flops=4 * B * heads * N * N * dim_head + 2 * B * N * inner * dim_out
              + 8 * B * N * inner,
        transcendentals=B * heads * N * N,
        bytes_accessed=2 * B * N * 3 * inner + 4 * 4 * N * inner
                       + 2 * inner * dim_out + 4 * B * N * dim_out)

    q_spec = pl.BlockSpec((1, N, inner), lambda b: (b, 0, 0))
    kv_spec = pl.BlockSpec((1, N, 2 * inner), lambda b: (b, 0, 0))
    tab_spec = pl.BlockSpec((N, inner), lambda b: (0, 0))

    return pl.pallas_call(
        partial(_attention_kernel, heads=heads, dim_head=dim_head),
        grid=(B,),
        in_specs=[q_spec, kv_spec, tab_spec, tab_spec, tab_spec, tab_spec,
                  pl.BlockSpec((inner, dim_out), lambda b: (0, 0)),
                  pl.BlockSpec((1, dim_out), lambda b: (0, 0))],
        out_specs=pl.BlockSpec((1, N, dim_out), lambda b: (b, 0, 0)),
        out_shape=jax.ShapeDtypeStruct((B, N, dim_out), jnp.float32),
        compiler_params=pltpu.CompilerParams(
            dimension_semantics=("parallel",),
            vmem_limit_bytes=32 * 1024 * 1024),
        cost_estimate=cost,
    )(q.astype(jnp.bfloat16), kv.astype(jnp.bfloat16), sq, cq, sk, ck, ow, ob)


# ------------------------------- module pieces ------------------------------------

def build_rotary_tables(sin, cos, n_tokens, heads, dim_head, scale):
    """Expand axial rotary (sin, cos) over fmap tokens into full-width per-token
    tables: identity on cls token + pass-through dims, the alternating sign of
    rotate_every_two folded into sin, the softmax scale folded into the q tables."""
    rot_dim = sin.shape[-1]
    n_fmap = sin.shape[-2]
    assert dim_head % 2 == 0 and rot_dim % 2 == 0 and rot_dim <= dim_head, \
        "pairwise rotary swap must not cross head boundaries"
    sin2 = sin.reshape(n_fmap, rot_dim).astype(jnp.float32)
    cos2 = cos.reshape(n_fmap, rot_dim).astype(jnp.float32)
    pad = dim_head - rot_dim
    sin_h = jnp.concatenate([sin2, jnp.zeros((n_fmap, pad), jnp.float32)], axis=-1)
    cos_h = jnp.concatenate([cos2, jnp.ones((n_fmap, pad), jnp.float32)], axis=-1)
    sin_h = jnp.concatenate([jnp.zeros((1, dim_head), jnp.float32), sin_h], axis=0)
    cos_h = jnp.concatenate([jnp.ones((1, dim_head), jnp.float32), cos_h], axis=0)
    assert sin_h.shape[0] == n_tokens
    alt = jnp.where(jnp.arange(dim_head) % 2 == 0, -1.0, 1.0).astype(jnp.float32)
    sin_h = sin_h * alt[None, :]           # rotate_every_two sign
    sin_t = jnp.tile(sin_h, (1, heads))    # same rotary for every head
    cos_t = jnp.tile(cos_h, (1, heads))
    return sin_t * scale, cos_t * scale, sin_t, cos_t


def attention_forward(x, params, pos_emb, *, fmap_dims, heads, dim_head,
                      conv_query_kernel=5):
    B, N, dim = x.shape
    inner = heads * dim_head
    scale = dim_head ** (-0.5)
    fh, fw = fmap_dims["h"], fmap_dims["w"]

    xb = x.astype(jnp.bfloat16)
    # to_q: fused depthwise conv + 1x1 conv + cls_proj -> (B, N, inner) bf16.
    q = spatial_conv_q(xb, params["to_q"], fh, fw, conv_query_kernel, inner)
    # to_kv: single bias-free matmul (single K step, zero runtime padding).
    kv = linear(xb, params["kv_w"])                                   # (B, N, 2*inner)

    sin, cos = pos_emb
    rot_tables = build_rotary_tables(sin, cos, N, heads, dim_head, scale)
    # rotary + attention + to_out projection fused (Dropout = identity at inference).
    return attention_core(q, kv, rot_tables, params["out_w"], params["out_b"],
                          heads, dim_head)


# --------------------------- pure-JAX reference (fp32) ----------------------------

def _rotate_every_two_ref(x):
    x1 = x[..., 0::2]
    x2 = x[..., 1::2]
    return jnp.stack((-x2, x1), axis=-1).reshape(x.shape)


def attention_reference(x, params, pos_emb, *, fmap_dims, heads, dim_head,
                        conv_query_kernel=5):
    B, N, dim = x.shape
    inner = heads * dim_head
    scale = dim_head ** (-0.5)
    fh, fw = fmap_dims["h"], fmap_dims["w"]
    ks = conv_query_kernel
    pad = ks // 2

    cls_tok, xs = x[:, :1], x[:, 1:]
    fmap = xs.reshape(B, fh, fw, dim)
    xp = jnp.pad(fmap, ((0, 0), (pad, pad), (pad, pad), (0, 0)))
    dw = jnp.zeros_like(fmap)
    for kh in range(ks):
        for kw in range(ks):
            dw = dw + xp[:, kh:kh + fh, kw:kw + fw, :] * \
                 params["to_q"]["dw_w"][kh, kw][None, None, None, :]
    q_sp = dw.reshape(B, fh * fw, dim) @ params["to_q"]["pw_w"]
    if "cls_w" in params["to_q"]:
        cls_q = cls_tok @ params["to_q"]["cls_w"] + params["to_q"]["cls_b"]
    else:
        cls_q = cls_tok
    q = jnp.concatenate([cls_q, q_sp], axis=1)
    kv = x @ params["kv_w"]
    k, v = kv[..., :inner], kv[..., inner:]

    def split_heads(t):
        return (t.reshape(B, N, heads, dim_head).transpose(0, 2, 1, 3)
                 .reshape(B * heads, N, dim_head))

    q, k, v = map(split_heads, (q, k, v))

    sin, cos = pos_emb
    dim_rotary = sin.shape[-1]
    q_cls, q_r = q[:, :1], q[:, 1:]
    k_cls, k_r = k[:, :1], k[:, 1:]
    q_rot, q_pass = q_r[..., :dim_rotary], q_r[..., dim_rotary:]
    k_rot, k_pass = k_r[..., :dim_rotary], k_r[..., dim_rotary:]
    q_rot = q_rot * cos + _rotate_every_two_ref(q_rot) * sin
    k_rot = k_rot * cos + _rotate_every_two_ref(k_rot) * sin
    q = jnp.concatenate([q_cls, jnp.concatenate([q_rot, q_pass], -1)], axis=1)
    k = jnp.concatenate([k_cls, jnp.concatenate([k_rot, k_pass], -1)], axis=1)

    dots = jnp.einsum('bid,bjd->bij', q, k) * scale
    attn = jax.nn.softmax(dots, axis=-1)
    out = jnp.einsum('bij,bjd->bid', attn, v)
    out = (out.reshape(B, heads, N, dim_head).transpose(0, 2, 1, 3)
              .reshape(B, N, inner))
    return out @ params["out_w"] + params["out_b"]


# ------------------------------- setup helpers ------------------------------------

def axial_rotary_embedding(dim_head, n, max_freq=10):
    scales = 2.0 ** jnp.linspace(0.0, math.log2(max_freq / 2), dim_head // 4)
    seq = jnp.linspace(-1.0, 1.0, n)[:, None] * scales[None, :] * math.pi
    x_sinu = jnp.broadcast_to(seq[:, None, :], (n, n, dim_head // 4))
    y_sinu = jnp.broadcast_to(seq[None, :, :], (n, n, dim_head // 4))
    sin = jnp.concatenate([jnp.sin(x_sinu), jnp.sin(y_sinu)], axis=-1).reshape(n * n, -1)
    cos = jnp.concatenate([jnp.cos(x_sinu), jnp.cos(y_sinu)], axis=-1).reshape(n * n, -1)
    sin = jnp.repeat(sin, 2, axis=-1)[None]   # (1, n*n, dim_head)
    cos = jnp.repeat(cos, 2, axis=-1)[None]
    return sin, cos


def init_params(key, dim, heads, dim_head, conv_query_kernel):
    inner = heads * dim_head
    ks = conv_query_kernel

    def nrm(k, shape, scale=0.05):
        return jax.random.normal(k, shape, jnp.float32) * scale

    keys = jax.random.split(key, 6)
    to_q = {"dw_w": nrm(keys[0], (ks, ks, dim)),       # depthwise taps, per-channel
            "pw_w": nrm(keys[1], (dim, inner))}        # 1x1 conv (no bias)
    if dim != inner:                                   # cls_proj = Linear(dim, inner)
        to_q["cls_w"] = nrm(keys[2], (dim, inner))
        to_q["cls_b"] = nrm(keys[3], (inner,), 0.02)
    return {"to_q": to_q,
            "kv_w": nrm(keys[4], (dim, inner * 2)),    # bias=False
            "out_w": nrm(keys[5], (inner, dim)),
            "out_b": jnp.zeros((dim,), jnp.float32)}


# ------------------------------------ main -----------------------------------------

if __name__ == "__main__":
    B, dim, heads, dim_head, ks = 2, 64, 4, 32, 5
    fh = fw = 8
    N = 1 + fh * fw
    fmap_dims = {"h": fh, "w": fw}

    key = jax.random.PRNGKey(0)
    kx, kp = jax.random.split(key)
    x = jax.random.normal(kx, (B, N, dim), jnp.float32)
    params = init_params(kp, dim, heads, dim_head, ks)
    pos_emb = axial_rotary_embedding(dim_head, fh)

    fwd = jax.jit(partial(attention_forward, fmap_dims=fmap_dims, heads=heads,
                          dim_head=dim_head, conv_query_kernel=ks))
    out = jax.block_until_ready(fwd(x, params, pos_emb))
    assert out.shape == (B, N, dim), out.shape
    assert bool(jnp.all(jnp.isfinite(out)))

    ref = attention_reference(x, params, pos_emb, fmap_dims=fmap_dims, heads=heads,
                              dim_head=dim_head, conv_query_kernel=ks)
    err = float(jnp.max(jnp.abs(out - ref)))
    assert err < 5e-2, f"max abs error vs fp32 reference: {err}"
    print("KERNEL_OK")
</pallas_src>

<mosaic_0001>
module attributes {stable_mosaic.version = 11 : i64} {
  func.func @_spatial_q_kernel(%arg0: i32, %arg1: memref<1x12x12x64xbf16, #tpu.memory_space<vmem>>, %arg2: memref<1x1x64xbf16, #tpu.memory_space<vmem>>, %arg3: memref<25x64xf32, #tpu.memory_space<vmem>>, %arg4: memref<64x128xbf16, #tpu.memory_space<vmem>>, %arg5: memref<64x128xbf16, #tpu.memory_space<vmem>>, %arg6: memref<1x128xf32, #tpu.memory_space<vmem>>, %arg7: memref<1x65x128xbf16, #tpu.memory_space<vmem>>) attributes {dimension_semantics = [#tpu.dimension_semantics<parallel>], iteration_bounds = array<i64: 2>, scalar_prefetch = 0 : i64, scratch_operands = 0 : i64, tpu.core_type = #tpu.core_type<tc>, window_params = [{transform_indices = @transform_0, window_bounds = array<i64: 1, 12, 12, 64>}, {transform_indices = @transform_1, window_bounds = array<i64: 1, 1, 64>}, {pipeline_mode = #tpu.pipeline_mode<synchronous>, transform_indices = @transform_2, window_bounds = array<i64: 25, 64>}, {pipeline_mode = #tpu.pipeline_mode<synchronous>, transform_indices = @transform_3, window_bounds = array<i64: 64, 128>}, {pipeline_mode = #tpu.pipeline_mode<synchronous>, transform_indices = @transform_4, window_bounds = array<i64: 64, 128>}, {pipeline_mode = #tpu.pipeline_mode<synchronous>, transform_indices = @transform_5, window_bounds = array<i64: 1, 128>}, {transform_indices = @transform_6, window_bounds = array<i64: 1, 65, 128>}]} {
    %c0 = arith.constant 0 : index
    %c0_0 = arith.constant 0 : index
    %c0_1 = arith.constant 0 : index
    %c0_2 = arith.constant 0 : index
    %0 = vector.load %arg1[%c0, %c0_0, %c0_1, %c0_2] : memref<1x12x12x64xbf16, #tpu.memory_space<vmem>>, vector<1x12x12x64xbf16>
    %1 = vector.shape_cast %0 : vector<1x12x12x64xbf16> to vector<12x12x64xbf16>
    %2 = arith.extf %1 : vector<12x12x64xbf16> to vector<12x12x64xf32>
    %cst = arith.constant 0.000000e+00 : f32
    %3 = vector.broadcast %cst : f32 to vector<8x8x64xf32>
    %4 = vector.extract_strided_slice %2 {offsets = [0, 0, 0], sizes = [12, 8, 64], strides = [1, 1, 1]} : vector<12x12x64xf32> to vector<12x8x64xf32>
    %c0_3 = arith.constant 0 : index
    %c0_4 = arith.constant 0 : index
    %5 = vector.load %arg3[%c0_3, %c0_4] : memref<25x64xf32, #tpu.memory_space<vmem>>, vector<1x64xf32>
    %6 = vector.shape_cast %5 : vector<1x64xf32> to vector<1x1x64xf32>
    %7 = vector.extract_strided_slice %4 {offsets = [0, 0, 0], sizes = [8, 8, 64], strides = [1, 1, 1]} : vector<12x8x64xf32> to vector<8x8x64xf32>
    %8 = vector.broadcast %6 : vector<1x1x64xf32> to vector<8x8x64xf32>
    %9 = arith.mulf %7, %8 : vector<8x8x64xf32>
    %10 = arith.addf %3, %9 : vector<8x8x64xf32>
    %c5 = arith.constant 5 : index
    %c0_5 = arith.constant 0 : index
    %11 = vector.load %arg3[%c5, %c0_5] : memref<25x64xf32, #tpu.memory_space<vmem>>, vector<1x64xf32>
    %12 = vector.shape_cast %11 : vector<1x64xf32> to vector<1x1x64xf32>
    %13 = vector.extract_strided_slice %4 {offsets = [1, 0, 0], sizes = [8, 8, 64], strides = [1, 1, 1]} : vector<12x8x64xf32> to vector<8x8x64xf32>
    %14 = vector.broadcast %12 : vector<1x1x64xf32> to vector<8x8x64xf32>
    %15 = arith.mulf %13, %14 : vector<8x8x64xf32>
    %16 = arith.addf %10, %15 : vector<8x8x64xf32>
    %c10 = arith.constant 10 : index
    %c0_6 = arith.constant 0 : index
    %17 = vector.load %arg3[%c10, %c0_6] : memref<25x64xf32, #tpu.memory_space<vmem>>, vector<1x64xf32>
    %18 = vector.shape_cast %17 : vector<1x64xf32> to vector<1x1x64xf32>
    %19 = vector.extract_strided_slice %4 {offsets = [2, 0, 0], sizes = [8, 8, 64], strides = [1, 1, 1]} : vector<12x8x64xf32> to vector<8x8x64xf32>
    %20 = vector.broadcast %18 : vector<1x1x64xf32> to vector<8x8x64xf32>
    %21 = arith.mulf %19, %20 : vector<8x8x64xf32>
    %22 = arith.addf %16, %21 : vector<8x8x64xf32>
    %c15 = arith.constant 15 : index
    %c0_7 = arith.constant 0 : index
    %23 = vector.load %arg3[%c15, %c0_7] : memref<25x64xf32, #tpu.memory_space<vmem>>, vector<1x64xf32>
    %24 = vector.shape_cast %23 : vector<1x64xf32> to vector<1x1x64xf32>
    %25 = vector.extract_strided_slice %4 {offsets = [3, 0, 0], sizes = [8, 8, 64], strides = [1, 1, 1]} : vector<12x8x64xf32> to vector<8x8x64xf32>
    %26 = vector.broadcast %24 : vector<1x1x64xf32> to vector<8x8x64xf32>
    %27 = arith.mulf %25, %26 : vector<8x8x64xf32>
    %28 = arith.addf %22, %27 : vector<8x8x64xf32>
    %c20 = arith.constant 20 : index
    %c0_8 = arith.constant 0 : index
    %29 = vector.load %arg3[%c20, %c0_8] : memref<25x64xf32, #tpu.memory_space<vmem>>, vector<1x64xf32>
    %30 = vector.shape_cast %29 : vector<1x64xf32> to vector<1x1x64xf32>
    %31 = vector.extract_strided_slice %4 {offsets = [4, 0, 0], sizes = [8, 8, 64], strides = [1, 1, 1]} : vector<12x8x64xf32> to vector<8x8x64xf32>
    %32 = vector.broadcast %30 : vector<1x1x64xf32> to vector<8x8x64xf32>
    %33 = arith.mulf %31, %32 : vector<8x8x64xf32>
    %34 = arith.addf %28, %33 : vector<8x8x64xf32>
    %35 = vector.extract_strided_slice %2 {offsets = [0, 1, 0], sizes = [12, 8, 64], strides = [1, 1, 1]} : vector<12x12x64xf32> to vector<12x8x64xf32>
    %c1 = arith.constant 1 : index
    %c0_9 = arith.constant 0 : index
    %36 = vector.load %arg3[%c1, %c0_9] : memref<25x64xf32, #tpu.memory_space<vmem>>, vector<1x64xf32>
    %37 = vector.shape_cast %36 : vector<1x64xf32> to vector<1x1x64xf32>
    %38 = vector.extract_strided_slice %35 {offsets = [0, 0, 0], sizes = [8, 8, 64], strides = [1, 1, 1]} : vector<12x8x64xf32> to vector<8x8x64xf32>
    %39 = vector.broadcast %37 : vector<1x1x64xf32> to vector<8x8x64xf32>
    %40 = arith.mulf %38, %39 : vector<8x8x64xf32>
    %41 = arith.addf %34, %40 : vector<8x8x64xf32>
    %c6 = arith.constant 6 : index
    %c0_10 = arith.constant 0 : index
    %42 = vector.load %arg3[%c6, %c0_10] : memref<25x64xf32, #tpu.memory_space<vmem>>, vector<1x64xf32>
    %43 = vector.shape_cast %42 : vector<1x64xf32> to vector<1x1x64xf32>
    %44 = vector.extract_strided_slice %35 {offsets = [1, 0, 0], sizes = [8, 8, 64], strides = [1, 1, 1]} : vector<12x8x64xf32> to vector<8x8x64xf32>
    %45 = vector.broadcast %43 : vector<1x1x64xf32> to vector<8x8x64xf32>
    %46 = arith.mulf %44, %45 : vector<8x8x64xf32>
    %47 = arith.addf %41, %46 : vector<8x8x64xf32>
    %c11 = arith.constant 11 : index
    %c0_11 = arith.constant 0 : index
    %48 = vector.load %arg3[%c11, %c0_11] : memref<25x64xf32, #tpu.memory_space<vmem>>, vector<1x64xf32>
    %49 = vector.shape_cast %48 : vector<1x64xf32> to vector<1x1x64xf32>
    %50 = vector.extract_strided_slice %35 {offsets = [2, 0, 0], sizes = [8, 8, 64], strides = [1, 1, 1]} : vector<12x8x64xf32> to vector<8x8x64xf32>
    %51 = vector.broadcast %49 : vector<1x1x64xf32> to vector<8x8x64xf32>
    %52 = arith.mulf %50, %51 : vector<8x8x64xf32>
    %53 = arith.addf %47, %52 : vector<8x8x64xf32>
    %c16 = arith.constant 16 : index
    %c0_12 = arith.constant 0 : index
    %54 = vector.load %arg3[%c16, %c0_12] : memref<25x64xf32, #tpu.memory_space<vmem>>, vector<1x64xf32>
    %55 = vector.shape_cast %54 : vector<1x64xf32> to vector<1x1x64xf32>
    %56 = vector.extract_strided_slice %35 {offsets = [3, 0, 0], sizes = [8, 8, 64], strides = [1, 1, 1]} : vector<12x8x64xf32> to vector<8x8x64xf32>
    %57 = vector.broadcast %55 : vector<1x1x64xf32> to vector<8x8x64xf32>
    %58 = arith.mulf %56, %57 : vector<8x8x64xf32>
    %59 = arith.addf %53, %58 : vector<8x8x64xf32>
    %c21 = arith.constant 21 : index
    %c0_13 = arith.constant 0 : index
    %60 = vector.load %arg3[%c21, %c0_13] : memref<25x64xf32, #tpu.memory_space<vmem>>, vector<1x64xf32>
    %61 = vector.shape_cast %60 : vector<1x64xf32> to vector<1x1x64xf32>
    %62 = vector.extract_strided_slice %35 {offsets = [4, 0, 0], sizes = [8, 8, 64], strides = [1, 1, 1]} : vector<12x8x64xf32> to vector<8x8x64xf32>
    %63 = vector.broadcast %61 : vector<1x1x64xf32> to vector<8x8x64xf32>
    %64 = arith.mulf %62, %63 : vector<8x8x64xf32>
    %65 = arith.addf %59, %64 : vector<8x8x64xf32>
    %66 = vector.extract_strided_slice %2 {offsets = [0, 2, 0], sizes = [12, 8, 64], strides = [1, 1, 1]} : vector<12x12x64xf32> to vector<12x8x64xf32>
    %c2 = arith.constant 2 : index
    %c0_14 = arith.constant 0 : index
    %67 = vector.load %arg3[%c2, %c0_14] : memref<25x64xf32, #tpu.memory_space<vmem>>, vector<1x64xf32>
    %68 = vector.shape_cast %67 : vector<1x64xf32> to vector<1x1x64xf32>
    %69 = vector.extract_strided_slice %66 {offsets = [0, 0, 0], sizes = [8, 8, 64], strides = [1, 1, 1]} : vector<12x8x64xf32> to vector<8x8x64xf32>
    %70 = vector.broadcast %68 : vector<1x1x64xf32> to vector<8x8x64xf32>
    %71 = arith.mulf %69, %70 : vector<8x8x64xf32>
    %72 = arith.addf %65, %71 : vector<8x8x64xf32>
    %c7 = arith.constant 7 : index
    %c0_15 = arith.constant 0 : index
    %73 = vector.load %arg3[%c7, %c0_15] : memref<25x64xf32, #tpu.memory_space<vmem>>, vector<1x64xf32>
    %74 = vector.shape_cast %73 : vector<1x64xf32> to vector<1x1x64xf32>
    %75 = vector.extract_strided_slice %66 {offsets = [1, 0, 0], sizes = [8, 8, 64], strides = [1, 1, 1]} : vector<12x8x64xf32> to vector<8x8x64xf32>
    %76 = vector.broadcast %74 : vector<1x1x64xf32> to vector<8x8x64xf32>
    %77 = arith.mulf %75, %76 : vector<8x8x64xf32>
    %78 = arith.addf %72, %77 : vector<8x8x64xf32>
    %c12 = arith.constant 12 : index
    %c0_16 = arith.constant 0 : index
    %79 = vector.load %arg3[%c12, %c0_16] : memref<25x64xf32, #tpu.memory_space<vmem>>, vector<1x64xf32>
    %80 = vector.shape_cast %79 : vector<1x64xf32> to vector<1x1x64xf32>
    %81 = vector.extract_strided_slice %66 {offsets = [2, 0, 0], sizes = [8, 8, 64], strides = [1, 1, 1]} : vector<12x8x64xf32> to vector<8x8x64xf32>
    %82 = vector.broadcast %80 : vector<1x1x64xf32> to vector<8x8x64xf32>
    %83 = arith.mulf %81, %82 : vector<8x8x64xf32>
    %84 = arith.addf %78, %83 : vector<8x8x64xf32>
    %c17 = arith.constant 17 : index
    %c0_17 = arith.constant 0 : index
    %85 = vector.load %arg3[%c17, %c0_17] : memref<25x64xf32, #tpu.memory_space<vmem>>, vector<1x64xf32>
    %86 = vector.shape_cast %85 : vector<1x64xf32> to vector<1x1x64xf32>
    %87 = vector.extract_strided_slice %66 {offsets = [3, 0, 0], sizes = [8, 8, 64], strides = [1, 1, 1]} : vector<12x8x64xf32> to vector<8x8x64xf32>
    %88 = vector.broadcast %86 : vector<1x1x64xf32> to vector<8x8x64xf32>
    %89 = arith.mulf %87, %88 : vector<8x8x64xf32>
    %90 = arith.addf %84, %89 : vector<8x8x64xf32>
    %c22 = arith.constant 22 : index
    %c0_18 = arith.constant 0 : index
    %91 = vector.load %arg3[%c22, %c0_18] : memref<25x64xf32, #tpu.memory_space<vmem>>, vector<1x64xf32>
    %92 = vector.shape_cast %91 : vector<1x64xf32> to vector<1x1x64xf32>
    %93 = vector.extract_strided_slice %66 {offsets = [4, 0, 0], sizes = [8, 8, 64], strides = [1, 1, 1]} : vector<12x8x64xf32> to vector<8x8x64xf32>
    %94 = vector.broadcast %92 : vector<1x1x64xf32> to vector<8x8x64xf32>
    %95 = arith.mulf %93, %94 : vector<8x8x64xf32>
    %96 = arith.addf %90, %95 : vector<8x8x64xf32>
    %97 = vector.extract_strided_slice %2 {offsets = [0, 3, 0], sizes = [12, 8, 64], strides = [1, 1, 1]} : vector<12x12x64xf32> to vector<12x8x64xf32>
    %c3 = arith.constant 3 : index
    %c0_19 = arith.constant 0 : index
    %98 = vector.load %arg3[%c3, %c0_19] : memref<25x64xf32, #tpu.memory_space<vmem>>, vector<1x64xf32>
    %99 = vector.shape_cast %98 : vector<1x64xf32> to vector<1x1x64xf32>
    %100 = vector.extract_strided_slice %97 {offsets = [0, 0, 0], sizes = [8, 8, 64], strides = [1, 1, 1]} : vector<12x8x64xf32> to vector<8x8x64xf32>
    %101 = vector.broadcast %99 : vector<1x1x64xf32> to vector<8x8x64xf32>
    %102 = arith.mulf %100, %101 : vector<8x8x64xf32>
    %103 = arith.addf %96, %102 : vector<8x8x64xf32>
    %c8 = arith.constant 8 : index
    %c0_20 = arith.constant 0 : index
    %104 = vector.load %arg3[%c8, %c0_20] : memref<25x64xf32, #tpu.memory_space<vmem>>, vector<1x64xf32>
    %105 = vector.shape_cast %104 : vector<1x64xf32> to vector<1x1x64xf32>
    %106 = vector.extract_strided_slice %97 {offsets = [1, 0, 0], sizes = [8, 8, 64], strides = [1, 1, 1]} : vector<12x8x64xf32> to vector<8x8x64xf32>
    %107 = vector.broadcast %105 : vector<1x1x64xf32> to vector<8x8x64xf32>
    %108 = arith.mulf %106, %107 : vector<8x8x64xf32>
    %109 = arith.addf %103, %108 : vector<8x8x64xf32>
    %c13 = arith.constant 13 : index
    %c0_21 = arith.constant 0 : index
    %110 = vector.load %arg3[%c13, %c0_21] : memref<25x64xf32, #tpu.memory_space<vmem>>, vector<1x64xf32>
    %111 = vector.shape_cast %110 : vector<1x64xf32> to vector<1x1x64xf32>
    %112 = vector.extract_strided_slice %97 {offsets = [2, 0, 0], sizes = [8, 8, 64], strides = [1, 1, 1]} : vector<12x8x64xf32> to vector<8x8x64xf32>
    %113 = vector.broadcast %111 : vector<1x1x64xf32> to vector<8x8x64xf32>
    %114 = arith.mulf %112, %113 : vector<8x8x64xf32>
    %115 = arith.addf %109, %114 : vector<8x8x64xf32>
    %c18 = arith.constant 18 : index
    %c0_22 = arith.constant 0 : index
    %116 = vector.load %arg3[%c18, %c0_22] : memref<25x64xf32, #tpu.memory_space<vmem>>, vector<1x64xf32>
    %117 = vector.shape_cast %116 : vector<1x64xf32> to vector<1x1x64xf32>
    %118 = vector.extract_strided_slice %97 {offsets = [3, 0, 0], sizes = [8, 8, 64], strides = [1, 1, 1]} : vector<12x8x64xf32> to vector<8x8x64xf32>
    %119 = vector.broadcast %117 : vector<1x1x64xf32> to vector<8x8x64xf32>
    %120 = arith.mulf %118, %119 : vector<8x8x64xf32>
    %121 = arith.addf %115, %120 : vector<8x8x64xf32>
    %c23 = arith.constant 23 : index
    %c0_23 = arith.constant 0 : index
    %122 = vector.load %arg3[%c23, %c0_23] : memref<25x64xf32, #tpu.memory_space<vmem>>, vector<1x64xf32>
    %123 = vector.shape_cast %122 : vector<1x64xf32> to vector<1x1x64xf32>
    %124 = vector.extract_strided_slice %97 {offsets = [4, 0, 0], sizes = [8, 8, 64], strides = [1, 1, 1]} : vector<12x8x64xf32> to vector<8x8x64xf32>
    %125 = vector.broadcast %123 : vector<1x1x64xf32> to vector<8x8x64xf32>
    %126 = arith.mulf %124, %125 : vector<8x8x64xf32>
    %127 = arith.addf %121, %126 : vector<8x8x64xf32>
    %128 = vector.extract_strided_slice %2 {offsets = [0, 4, 0], sizes = [12, 8, 64], strides = [1, 1, 1]} : vector<12x12x64xf32> to vector<12x8x64xf32>
    %c4 = arith.constant 4 : index
    %c0_24 = arith.constant 0 : index
    %129 = vector.load %arg3[%c4, %c0_24] : memref<25x64xf32, #tpu.memory_space<vmem>>, vector<1x64xf32>
    %130 = vector.shape_cast %129 : vector<1x64xf32> to vector<1x1x64xf32>
    %131 = vector.extract_strided_slice %128 {offsets = [0, 0, 0], sizes = [8, 8, 64], strides = [1, 1, 1]} : vector<12x8x64xf32> to vector<8x8x64xf32>
    %132 = vector.broadcast %130 : vector<1x1x64xf32> to vector<8x8x64xf32>
    %133 = arith.mulf %131, %132 : vector<8x8x64xf32>
    %134 = arith.addf %127, %133 : vector<8x8x64xf32>
    %c9 = arith.constant 9 : index
    %c0_25 = arith.constant 0 : index
    %135 = vector.load %arg3[%c9, %c0_25] : memref<25x64xf32, #tpu.memory_space<vmem>>, vector<1x64xf32>
    %136 = vector.shape_cast %135 : vector<1x64xf32> to vector<1x1x64xf32>
    %137 = vector.extract_strided_slice %128 {offsets = [1, 0, 0], sizes = [8, 8, 64], strides = [1, 1, 1]} : vector<12x8x64xf32> to vector<8x8x64xf32>
    %138 = vector.broadcast %136 : vector<1x1x64xf32> to vector<8x8x64xf32>
    %139 = arith.mulf %137, %138 : vector<8x8x64xf32>
    %140 = arith.addf %134, %139 : vector<8x8x64xf32>
    %c14 = arith.constant 14 : index
    %c0_26 = arith.constant 0 : index
    %141 = vector.load %arg3[%c14, %c0_26] : memref<25x64xf32, #tpu.memory_space<vmem>>, vector<1x64xf32>
    %142 = vector.shape_cast %141 : vector<1x64xf32> to vector<1x1x64xf32>
    %143 = vector.extract_strided_slice %128 {offsets = [2, 0, 0], sizes = [8, 8, 64], strides = [1, 1, 1]} : vector<12x8x64xf32> to vector<8x8x64xf32>
    %144 = vector.broadcast %142 : vector<1x1x64xf32> to vector<8x8x64xf32>
    %145 = arith.mulf %143, %144 : vector<8x8x64xf32>
    %146 = arith.addf %140, %145 : vector<8x8x64xf32>
    %c19 = arith.constant 19 : index
    %c0_27 = arith.constant 0 : index
    %147 = vector.load %arg3[%c19, %c0_27] : memref<25x64xf32, #tpu.memory_space<vmem>>, vector<1x64xf32>
    %148 = vector.shape_cast %147 : vector<1x64xf32> to vector<1x1x64xf32>
    %149 = vector.extract_strided_slice %128 {offsets = [3, 0, 0], sizes = [8, 8, 64], strides = [1, 1, 1]} : vector<12x8x64xf32> to vector<8x8x64xf32>
    %150 = vector.broadcast %148 : vector<1x1x64xf32> to vector<8x8x64xf32>
    %151 = arith.mulf %149, %150 : vector<8x8x64xf32>
    %152 = arith.addf %146, %151 : vector<8x8x64xf32>
    %c24 = arith.constant 24 : index
    %c0_28 = arith.constant 0 : index
    %153 = vector.load %arg3[%c24, %c0_28] : memref<25x64xf32, #tpu.memory_space<vmem>>, vector<1x64xf32>
    %154 = vector.shape_cast %153 : vector<1x64xf32> to vector<1x1x64xf32>
    %155 = vector.extract_strided_slice %128 {offsets = [4, 0, 0], sizes = [8, 8, 64], strides = [1, 1, 1]} : vector<12x8x64xf32> to vector<8x8x64xf32>
    %156 = vector.broadcast %154 : vector<1x1x64xf32> to vector<8x8x64xf32>
    %157 = arith.mulf %155, %156 : vector<8x8x64xf32>
    %158 = arith.addf %152, %157 : vector<8x8x64xf32>
    %159 = vector.shape_cast %158 : vector<8x8x64xf32> to vector<64x64xf32>
    %160 = arith.truncf %159 : vector<64x64xf32> to vector<64x64xbf16>
    %c0_29 = arith.constant 0 : index
    %c0_30 = arith.constant 0 : index
    %161 = vector.load %arg4[%c0_29, %c0_30] : memref<64x128xbf16, #tpu.memory_space<vmem>>, vector<64x128xbf16>
    %cst_31 = arith.constant dense<0.000000e+00> : vector<64x128xf32>
    %162 = tpu.matmul %160, %161, %cst_31 {dimension_numbers = #tpu.dot_dimension_numbers<[1], [0], [0], [1], [0, 0, 1, 1], [], []>} : vector<64x64xbf16>, vector<64x128xbf16>, vector<64x128xf32> -> vector<64x128xf32>
    %c0_32 = arith.constant 0 : index
    %c0_33 = arith.constant 0 : index
    %c0_34 = arith.constant 0 : index
    %163 = vector.load %arg2[%c0_32, %c0_33, %c0_34] : memref<1x1x64xbf16, #tpu.memory_space<vmem>>, vector<1x1x64xbf16>
    %164 = vector.shape_cast %163 : vector<1x1x64xbf16> to vector<1x64xbf16>
    %c0_35 = arith.constant 0 : index
    %c0_36 = arith.constant 0 : index
    %165 = vector.load %arg5[%c0_35, %c0_36] : memref<64x128xbf16, #tpu.memory_space<vmem>>, vector<64x128xbf16>
    %cst_37 = arith.constant dense<0.000000e+00> : vector<1x128xf32>
    %166 = tpu.matmul %164, %165, %cst_37 {dimension_numbers = #tpu.dot_dimension_numbers<[1], [0], [0], [1], [0, 0, 1, 1], [], []>} : vector<1x64xbf16>, vector<64x128xbf16>, vector<1x128xf32> -> vector<1x128xf32>
    %c0_38 = arith.constant 0 : index
    %c0_39 = arith.constant 0 : index
    %167 = vector.load %arg6[%c0_38, %c0_39] : memref<1x128xf32, #tpu.memory_space<vmem>>, vector<1x128xf32>
    %168 = arith.addf %166, %167 : vector<1x128xf32>
    %169 = tpu.concatenate %168, %162 in 0 : vector<1x128xf32>, vector<64x128xf32> -> vector<65x128xf32>
    %170 = arith.truncf %169 : vector<65x128xf32> to vector<65x128xbf16>
    %c0_40 = arith.constant 0 : index
    %c0_41 = arith.constant 0 : index
    %c0_42 = arith.constant 0 : index
    %171 = vector.load %arg7[%c0_40, %c0_41, %c0_42] : memref<1x65x128xbf16, #tpu.memory_space<vmem>>, vector<1x65x128xbf16>
    %172 = vector.shape_cast %171 : vector<1x65x128xbf16> to vector<65x128xbf16>
    %173 = vector.shape_cast %170 : vector<65x128xbf16> to vector<1x65x128xbf16>
    tpu.vector_store %arg7[%c0_40, %c0_41, %c0_42], %173 {strides = array<i32>} : memref<1x65x128xbf16, #tpu.memory_space<vmem>>, vector<1x65x128xbf16>,
    return
  }
  func.func @transform_0(%arg0: i32) -> (i32, i32, i32, i32) {
    %c0_i32 = arith.constant 0 : i32
    %c0_i32_0 = arith.constant 0 : i32
    %c0_i32_1 = arith.constant 0 : i32
    %c0_i32_2 = arith.constant 0 : i32
    return %arg0, %c0_i32, %c0_i32_0, %c0_i32_1 : i32, i32, i32, i32
  }
  func.func @transform_1(%arg0: i32) -> (i32, i32, i32) {
    %c0_i32 = arith.constant 0 : i32
    %c0_i32_0 = arith.constant 0 : i32
    %c0_i32_1 = arith.constant 0 : i32
    return %arg0, %c0_i32, %c0_i32_0 : i32, i32, i32
  }
  func.func @transform_2(%arg0: i32) -> (i32, i32) {
    %c0_i32 = arith.constant 0 : i32
    %c0_i32_0 = arith.constant 0 : i32
    %c0_i32_1 = arith.constant 0 : i32
    return %c0_i32, %c0_i32_0 : i32, i32
  }
  func.func @transform_3(%arg0: i32) -> (i32, i32) {
    %c0_i32 = arith.constant 0 : i32
    %c0_i32_0 = arith.constant 0 : i32
    %c0_i32_1 = arith.constant 0 : i32
    return %c0_i32, %c0_i32_0 : i32, i32
  }
  func.func @transform_4(%arg0: i32) -> (i32, i32) {
    %c0_i32 = arith.constant 0 : i32
    %c0_i32_0 = arith.constant 0 : i32
    %c0_i32_1 = arith.constant 0 : i32
    return %c0_i32, %c0_i32_0 : i32, i32
  }
  func.func @transform_5(%arg0: i32) -> (i32, i32) {
    %c0_i32 = arith.constant 0 : i32
    %c0_i32_0 = arith.constant 0 : i32
    %c0_i32_1 = arith.constant 0 : i32
    return %c0_i32, %c0_i32_0 : i32, i32
  }
  func.func @transform_6(%arg0: i32) -> (i32, i32, i32) {
    %c0_i32 = arith.constant 0 : i32
    %c0_i32_0 = arith.constant 0 : i32
    %c0_i32_1 = arith.constant 0 : i32
    return %arg0, %c0_i32, %c0_i32_0 : i32, i32, i32
  }
}

module attributes {stable_mosaic.version = 11 : i64} {
  func.func @_matmul_kernel(%arg0: i32, %arg1: i32, %arg2: memref<72x64xbf16, #tpu.memory_space<vmem>>, %arg3: memref<64x256xbf16, #tpu.memory_space<vmem>>, %arg4: memref<72x256xbf16, #tpu.memory_space<vmem>>) attributes {dimension_semantics = [#tpu.dimension_semantics<parallel>, #tpu.dimension_semantics<parallel>], iteration_bounds = array<i64: 2, 1>, scalar_prefetch = 0 : i64, scratch_operands = 0 : i64, tpu.core_type = #tpu.core_type<tc>, window_params = [{transform_indices = @transform_0, window_bounds = array<i64: 72, 64>}, {transform_indices = @transform_1, window_bounds = array<i64: 64, 256>}, {transform_indices = @transform_2, window_bounds = array<i64: 72, 256>}]} {
    %c0 = arith.constant 0 : index
    %c0_0 = arith.constant 0 : index
    %0 = vector.load %arg2[%c0, %c0_0] : memref<72x64xbf16, #tpu.memory_space<vmem>>, vector<72x64xbf16>
    %c0_1 = arith.constant 0 : index
    %c0_2 = arith.constant 0 : index
    %1 = vector.load %arg3[%c0_1, %c0_2] : memref<64x256xbf16, #tpu.memory_space<vmem>>, vector<64x256xbf16>
    %cst = arith.constant dense<0.000000e+00> : vector<72x256xf32>
    %2 = tpu.matmul %0, %1, %cst {dimension_numbers = #tpu.dot_dimension_numbers<[1], [0], [0], [1], [0, 0, 1, 1], [], []>} : vector<72x64xbf16>, vector<64x256xbf16>, vector<72x256xf32> -> vector<72x256xf32>
    %3 = arith.truncf %2 : vector<72x256xf32> to vector<72x256xbf16>
    %c0_3 = arith.constant 0 : index
    %c0_4 = arith.constant 0 : index
    %4 = vector.load %arg4[%c0_3, %c0_4] : memref<72x256xbf16, #tpu.memory_space<vmem>>, vector<72x256xbf16>
    tpu.vector_store %arg4[%c0_3, %c0_4], %3 {strides = array<i32>} : memref<72x256xbf16, #tpu.memory_space<vmem>>, vector<72x256xbf16>,
    return
  }
  func.func @transform_0(%arg0: i32, %arg1: i32) -> (i32, i32) {
    %c0_i32 = arith.constant 0 : i32
    %c0_i32_0 = arith.constant 0 : i32
    return %arg0, %c0_i32 : i32, i32
  }
  func.func @transform_1(%arg0: i32, %arg1: i32) -> (i32, i32) {
    %c0_i32 = arith.constant 0 : i32
    %c0_i32_0 = arith.constant 0 : i32
    return %c0_i32, %arg1 : i32, i32
  }
  func.func @transform_2(%arg0: i32, %arg1: i32) -> (i32, i32) {
    %c0_i32 = arith.constant 0 : i32
    return %arg0, %arg1 : i32, i32
  }
}

module attributes {stable_mosaic.version = 11 : i64} {
  func.func @_attention_kernel(%arg0: i32, %arg1: memref<1x65x128xbf16, #tpu.memory_space<vmem>>, %arg2: memref<1x65x256xbf16, #tpu.memory_space<vmem>>, %arg3: memref<65x128xf32, #tpu.memory_space<vmem>>, %arg4: memref<65x128xf32, #tpu.memory_space<vmem>>, %arg5: memref<65x128xf32, #tpu.memory_space<vmem>>, %arg6: memref<65x128xf32, #tpu.memory_space<vmem>>, %arg7: memref<128x64xbf16, #tpu.memory_space<vmem>>, %arg8: memref<1x64xf32, #tpu.memory_space<vmem>>, %arg9: memref<1x65x64xf32, #tpu.memory_space<vmem>>) attributes {dimension_semantics = [#tpu.dimension_semantics<parallel>], iteration_bounds = array<i64: 2>, scalar_prefetch = 0 : i64, scratch_operands = 0 : i64, tpu.core_type = #tpu.core_type<tc>, window_params = [{transform_indices = @transform_0, window_bounds = array<i64: 1, 65, 128>}, {transform_indices = @transform_1, window_bounds = array<i64: 1, 65, 256>}, {pipeline_mode = #tpu.pipeline_mode<synchronous>, transform_indices = @transform_2, window_bounds = array<i64: 65, 128>}, {pipeline_mode = #tpu.pipeline_mode<synchronous>, transform_indices = @transform_3, window_bounds = array<i64: 65, 128>}, {pipeline_mode = #tpu.pipeline_mode<synchronous>, transform_indices = @transform_4, window_bounds = array<i64: 65, 128>}, {pipeline_mode = #tpu.pipeline_mode<synchronous>, transform_indices = @transform_5, window_bounds = array<i64: 65, 128>}, {pipeline_mode = #tpu.pipeline_mode<synchronous>, transform_indices = @transform_6, window_bounds = array<i64: 128, 64>}, {pipeline_mode = #tpu.pipeline_mode<synchronous>, transform_indices = @transform_7, window_bounds = array<i64: 1, 64>}, {transform_indices = @transform_8, window_bounds = array<i64: 1, 65, 64>}]} {
    %c0 = arith.constant 0 : index
    %c0_0 = arith.constant 0 : index
    %c0_1 = arith.constant 0 : index
    %0 = vector.load %arg1[%c0, %c0_0, %c0_1] : memref<1x65x128xbf16, #tpu.memory_space<vmem>>, vector<1x65x128xbf16>
    %1 = vector.shape_cast %0 : vector<1x65x128xbf16> to vector<65x128xbf16>
    %2 = arith.extf %1 : vector<65x128xbf16> to vector<65x128xf32>
    %c0_2 = arith.constant 0 : index
    %c0_3 = arith.constant 0 : index
    %c0_4 = arith.constant 0 : index
    %3 = vector.load %arg2[%c0_2, %c0_3, %c0_4] : memref<1x65x256xbf16, #tpu.memory_space<vmem>>, vector<1x65x256xbf16>
    %4 = vector.shape_cast %3 : vector<1x65x256xbf16> to vector<65x256xbf16>
    %5 = vector.extract_strided_slice %4 {offsets = [0, 0], sizes = [65, 128], strides = [1, 1]} : vector<65x256xbf16> to vector<65x128xbf16>
    %6 = arith.extf %5 : vector<65x128xbf16> to vector<65x128xf32>
    %7 = vector.extract_strided_slice %4 {offsets = [0, 128], sizes = [65, 128], strides = [1, 1]} : vector<65x256xbf16> to vector<65x128xbf16>
    %8 = tpu.iota {dimensions = array<i32: 1>} : vector<65x128xi32>
    %c2_i32 = arith.constant 2 : i32
    %c0_i32 = arith.constant 0 : i32
    %9 = arith.cmpi eq, %c2_i32, %c0_i32 : i32
    %c1_i32 = arith.constant 1 : i32
    %10 = arith.select %9, %c1_i32, %c2_i32 : i32
    %11 = vector.broadcast %10 : i32 to vector<65x128xi32>
    %12 = arith.remsi %8, %11 : vector<65x128xi32>
    %c0_i32_5 = arith.constant 0 : i32
    %13 = vector.broadcast %c0_i32_5 : i32 to vector<65x128xi32>
    %14 = arith.cmpi ne, %12, %13 : vector<65x128xi32>
    %c0_i32_6 = arith.constant 0 : i32
    %15 = vector.broadcast %c0_i32_6 : i32 to vector<65x128xi32>
    %16 = arith.cmpi slt, %12, %15 : vector<65x128xi32>
    %c0_i32_7 = arith.constant 0 : i32
    %17 = arith.cmpi slt, %10, %c0_i32_7 : i32
    %18 = vector.broadcast %17 : i1 to vector<65x128xi1>
    %19 = vector.broadcast %18 : vector<65x128xi1> to vector<65x128xi1>
    %20 = arith.xori %16, %19 : vector<65x128xi1>
    %21 = arith.andi %20, %14 : vector<65x128xi1>
    %22 = vector.broadcast %10 : i32 to vector<65x128xi32>
    %23 = arith.addi %12, %22 : vector<65x128xi32>
    %24 = arith.select %21, %23, %12 : vector<65x128xi1>, vector<65x128xi32>
    %c0_i32_8 = arith.constant 0 : i32
    %25 = vector.broadcast %c0_i32_8 : i32 to vector<65x128xi32>
    %26 = arith.cmpi eq, %24, %25 : vector<65x128xi32>
    %c0_9 = arith.constant 0 : index
    %c0_10 = arith.constant 0 : index
    %27 = vector.load %arg4[%c0_9, %c0_10] : memref<65x128xf32, #tpu.memory_space<vmem>>, vector<65x128xf32>
    %28 = arith.mulf %2, %27 : vector<65x128xf32>
    %c127_i32 = arith.constant 127 : i32
    %29 = tpu.dynamic_rotate %2 by %c127_i32 dim 1 : vector<65x128xf32>, i32 -> vector<65x128xf32>
    %c1_i32_11 = arith.constant 1 : i32
    %30 = tpu.dynamic_rotate %2 by %c1_i32_11 dim 1 : vector<65x128xf32>, i32 -> vector<65x128xf32>
    %31 = arith.select %26, %29, %30 : vector<65x128xi1>, vector<65x128xf32>
    %c0_12 = arith.constant 0 : index
    %c0_13 = arith.constant 0 : index
    %32 = vector.load %arg3[%c0_12, %c0_13] : memref<65x128xf32, #tpu.memory_space<vmem>>, vector<65x128xf32>
    %33 = arith.mulf %31, %32 : vector<65x128xf32>
    %34 = arith.addf %28, %33 : vector<65x128xf32>
    %35 = arith.truncf %34 : vector<65x128xf32> to vector<65x128xbf16>
    %c0_14 = arith.constant 0 : index
    %c0_15 = arith.constant 0 : index
    %36 = vector.load %arg6[%c0_14, %c0_15] : memref<65x128xf32, #tpu.memory_space<vmem>>, vector<65x128xf32>
    %37 = arith.mulf %6, %36 : vector<65x128xf32>
    %c127_i32_16 = arith.constant 127 : i32
    %38 = tpu.dynamic_rotate %6 by %c127_i32_16 dim 1 : vector<65x128xf32>, i32 -> vector<65x128xf32>
    %c1_i32_17 = arith.constant 1 : i32
    %39 = tpu.dynamic_rotate %6 by %c1_i32_17 dim 1 : vector<65x128xf32>, i32 -> vector<65x128xf32>
    %40 = arith.select %26, %38, %39 : vector<65x128xi1>, vector<65x128xf32>
    %c0_18 = arith.constant 0 : index
    %c0_19 = arith.constant 0 : index
    %41 = vector.load %arg5[%c0_18, %c0_19] : memref<65x128xf32, #tpu.memory_space<vmem>>, vector<65x128xf32>
    %42 = arith.mulf %40, %41 : vector<65x128xf32>
    %43 = arith.addf %37, %42 : vector<65x128xf32>
    %44 = tpu.transpose %43, [1, 0] : vector<65x128xf32> -> vector<128x65xf32>
    %45 = arith.truncf %44 : vector<128x65xf32> to vector<128x65xbf16>
    %cst = arith.constant 0.000000e+00 : f32
    %46 = vector.broadcast %cst : f32 to vector<65x64xf32>
    %47 = vector.extract_strided_slice %35 {offsets = [0, 0], sizes = [65, 32], strides = [1, 1]} : vector<65x128xbf16> to vector<65x32xbf16>
    %48 = vector.extract_strided_slice %45 {offsets = [0, 0], sizes = [32, 65], strides = [1, 1]} : vector<128x65xbf16> to vector<32x65xbf16>
    %cst_20 = arith.constant dense<0.000000e+00> : vector<65x65xf32>
    %49 = tpu.matmul %47, %48, %cst_20 {dimension_numbers = #tpu.dot_dimension_numbers<[1], [0], [0], [1], [0, 0, 1, 1], [], []>} : vector<65x32xbf16>, vector<32x65xbf16>, vector<65x65xf32> -> vector<65x65xf32>
    %cst_21 = arith.constant dense<0xFF800000> : vector<65xf32>
    %50 = vector.multi_reduction <maximumf>, %49, %cst_21 [1] : vector<65x65xf32> to vector<65xf32>
    %51 = vector.shape_cast %50 : vector<65xf32> to vector<65x1xf32>
    %52 = vector.broadcast %51 : vector<65x1xf32> to vector<65x65xf32>
    %53 = arith.subf %49, %52 : vector<65x65xf32>
    %54 = math.exp %53 : vector<65x65xf32>
    %cst_22 = arith.constant dense<0.000000e+00> : vector<65xf32>
    %55 = vector.multi_reduction <add>, %54, %cst_22 [1] : vector<65x65xf32> to vector<65xf32>
    %56 = vector.shape_cast %55 : vector<65xf32> to vector<65x1xf32>
    %57 = tpu.reciprocal %56 {approx = true} : vector<65x1xf32> -> vector<65x1xf32>
    %58 = vector.broadcast %57 : vector<65x1xf32> to vector<65x65xf32>
    %59 = arith.mulf %54, %58 : vector<65x65xf32>
    %60 = arith.truncf %59 : vector<65x65xf32> to vector<65x65xbf16>
    %61 = vector.extract_strided_slice %7 {offsets = [0, 0], sizes = [65, 32], strides = [1, 1]} : vector<65x128xbf16> to vector<65x32xbf16>
    %cst_23 = arith.constant dense<0.000000e+00> : vector<65x32xf32>
    %62 = tpu.matmul %60, %61, %cst_23 {dimension_numbers = #tpu.dot_dimension_numbers<[1], [0], [0], [1], [0, 0, 1, 1], [], []>} : vector<65x65xbf16>, vector<65x32xbf16>, vector<65x32xf32> -> vector<65x32xf32>
    %63 = arith.truncf %62 : vector<65x32xf32> to vector<65x32xbf16>
    %c0_24 = arith.constant 0 : index
    %c0_25 = arith.constant 0 : index
    %64 = vector.load %arg7[%c0_24, %c0_25] : memref<128x64xbf16, #tpu.memory_space<vmem>>, vector<32x64xbf16>
    %cst_26 = arith.constant dense<0.000000e+00> : vector<65x64xf32>
    %65 = tpu.matmul %63, %64, %cst_26 {dimension_numbers = #tpu.dot_dimension_numbers<[1], [0], [0], [1], [0, 0, 1, 1], [], []>} : vector<65x32xbf16>, vector<32x64xbf16>, vector<65x64xf32> -> vector<65x64xf32>
    %66 = arith.addf %46, %65 : vector<65x64xf32>
    %67 = vector.extract_strided_slice %35 {offsets = [0, 32], sizes = [65, 32], strides = [1, 1]} : vector<65x128xbf16> to vector<65x32xbf16>
    %68 = vector.extract_strided_slice %45 {offsets = [32, 0], sizes = [32, 65], strides = [1, 1]} : vector<128x65xbf16> to vector<32x65xbf16>
    %cst_27 = arith.constant dense<0.000000e+00> : vector<65x65xf32>
    %69 = tpu.matmul %67, %68, %cst_27 {dimension_numbers = #tpu.dot_dimension_numbers<[1], [0], [0], [1], [0, 0, 1, 1], [], []>} : vector<65x32xbf16>, vector<32x65xbf16>, vector<65x65xf32> -> vector<65x65xf32>
    %cst_28 = arith.constant dense<0xFF800000> : vector<65xf32>
    %70 = vector.multi_reduction <maximumf>, %69, %cst_28 [1] : vector<65x65xf32> to vector<65xf32>
    %71 = vector.shape_cast %70 : vector<65xf32> to vector<65x1xf32>
    %72 = vector.broadcast %71 : vector<65x1xf32> to vector<65x65xf32>
    %73 = arith.subf %69, %72 : vector<65x65xf32>
    %74 = math.exp %73 : vector<65x65xf32>
    %cst_29 = arith.constant dense<0.000000e+00> : vector<65xf32>
    %75 = vector.multi_reduction <add>, %74, %cst_29 [1] : vector<65x65xf32> to vector<65xf32>
    %76 = vector.shape_cast %75 : vector<65xf32> to vector<65x1xf32>
    %77 = tpu.reciprocal %76 {approx = true} : vector<65x1xf32> -> vector<65x1xf32>
    %78 = vector.broadcast %77 : vector<65x1xf32> to vector<65x65xf32>
    %79 = arith.mulf %74, %78 : vector<65x65xf32>
    %80 = arith.truncf %79 : vector<65x65xf32> to vector<65x65xbf16>
    %81 = vector.extract_strided_slice %7 {offsets = [0, 32], sizes = [65, 32], strides = [1, 1]} : vector<65x128xbf16> to vector<65x32xbf16>
    %cst_30 = arith.constant dense<0.000000e+00> : vector<65x32xf32>
    %82 = tpu.matmul %80, %81, %cst_30 {dimension_numbers = #tpu.dot_dimension_numbers<[1], [0], [0], [1], [0, 0, 1, 1], [], []>} : vector<65x65xbf16>, vector<65x32xbf16>, vector<65x32xf32> -> vector<65x32xf32>
    %83 = arith.truncf %82 : vector<65x32xf32> to vector<65x32xbf16>
    %c32 = arith.constant 32 : index
    %c0_31 = arith.constant 0 : index
    %84 = vector.load %arg7[%c32, %c0_31] : memref<128x64xbf16, #tpu.memory_space<vmem>>, vector<32x64xbf16>
    %cst_32 = arith.constant dense<0.000000e+00> : vector<65x64xf32>
    %85 = tpu.matmul %83, %84, %cst_32 {dimension_numbers = #tpu.dot_dimension_numbers<[1], [0], [0], [1], [0, 0, 1, 1], [], []>} : vector<65x32xbf16>, vector<32x64xbf16>, vector<65x64xf32> -> vector<65x64xf32>
    %86 = arith.addf %66, %85 : vector<65x64xf32>
    %87 = vector.extract_strided_slice %35 {offsets = [0, 64], sizes = [65, 32], strides = [1, 1]} : vector<65x128xbf16> to vector<65x32xbf16>
    %88 = vector.extract_strided_slice %45 {offsets = [64, 0], sizes = [32, 65], strides = [1, 1]} : vector<128x65xbf16> to vector<32x65xbf16>
    %cst_33 = arith.constant dense<0.000000e+00> : vector<65x65xf32>
    %89 = tpu.matmul %87, %88, %cst_33 {dimension_numbers = #tpu.dot_dimension_numbers<[1], [0], [0], [1], [0, 0, 1, 1], [], []>} : vector<65x32xbf16>, vector<32x65xbf16>, vector<65x65xf32> -> vector<65x65xf32>
    %cst_34 = arith.constant dense<0xFF800000> : vector<65xf32>
    %90 = vector.multi_reduction <maximumf>, %89, %cst_34 [1] : vector<65x65xf32> to vector<65xf32>
    %91 = vector.shape_cast %90 : vector<65xf32> to vector<65x1xf32>
    %92 = vector.broadcast %91 : vector<65x1xf32> to vector<65x65xf32>
    %93 = arith.subf %89, %92 : vector<65x65xf32>
    %94 = math.exp %93 : vector<65x65xf32>
    %cst_35 = arith.constant dense<0.000000e+00> : vector<65xf32>
    %95 = vector.multi_reduction <add>, %94, %cst_35 [1] : vector<65x65xf32> to vector<65xf32>
    %96 = vector.shape_cast %95 : vector<65xf32> to vector<65x1xf32>
    %97 = tpu.reciprocal %96 {approx = true} : vector<65x1xf32> -> vector<65x1xf32>
    %98 = vector.broadcast %97 : vector<65x1xf32> to vector<65x65xf32>
    %99 = arith.mulf %94, %98 : vector<65x65xf32>
    %100 = arith.truncf %99 : vector<65x65xf32> to vector<65x65xbf16>
    %101 = vector.extract_strided_slice %7 {offsets = [0, 64], sizes = [65, 32], strides = [1, 1]} : vector<65x128xbf16> to vector<65x32xbf16>
    %cst_36 = arith.constant dense<0.000000e+00> : vector<65x32xf32>
    %102 = tpu.matmul %100, %101, %cst_36 {dimension_numbers = #tpu.dot_dimension_numbers<[1], [0], [0], [1], [0, 0, 1, 1], [], []>} : vector<65x65xbf16>, vector<65x32xbf16>, vector<65x32xf32> -> vector<65x32xf32>
    %103 = arith.truncf %102 : vector<65x32xf32> to vector<65x32xbf16>
    %c64 = arith.constant 64 : index
    %c0_37 = arith.constant 0 : index
    %104 = vector.load %arg7[%c64, %c0_37] : memref<128x64xbf16, #tpu.memory_space<vmem>>, vector<32x64xbf16>
    %cst_38 = arith.constant dense<0.000000e+00> : vector<65x64xf32>
    %105 = tpu.matmul %103, %104, %cst_38 {dimension_numbers = #tpu.dot_dimension_numbers<[1], [0], [0], [1], [0, 0, 1, 1], [], []>} : vector<65x32xbf16>, vector<32x64xbf16>, vector<65x64xf32> -> vector<65x64xf32>
    %106 = arith.addf %86, %105 : vector<65x64xf32>
    %107 = vector.extract_strided_slice %35 {offsets = [0, 96], sizes = [65, 32], strides = [1, 1]} : vector<65x128xbf16> to vector<65x32xbf16>
    %108 = vector.extract_strided_slice %45 {offsets = [96, 0], sizes = [32, 65], strides = [1, 1]} : vector<128x65xbf16> to vector<32x65xbf16>
    %cst_39 = arith.constant dense<0.000000e+00> : vector<65x65xf32>
    %109 = tpu.matmul %107, %108, %cst_39 {dimension_numbers = #tpu.dot_dimension_numbers<[1], [0], [0], [1], [0, 0, 1, 1], [], []>} : vector<65x32xbf16>, vector<32x65xbf16>, vector<65x65xf32> -> vector<65x65xf32>
    %cst_40 = arith.constant dense<0xFF800000> : vector<65xf32>
    %110 = vector.multi_reduction <maximumf>, %109, %cst_40 [1] : vector<65x65xf32> to vector<65xf32>
    %111 = vector.shape_cast %110 : vector<65xf32> to vector<65x1xf32>
    %112 = vector.broadcast %111 : vector<65x1xf32> to vector<65x65xf32>
    %113 = arith.subf %109, %112 : vector<65x65xf32>
    %114 = math.exp %113 : vector<65x65xf32>
    %cst_41 = arith.constant dense<0.000000e+00> : vector<65xf32>
    %115 = vector.multi_reduction <add>, %114, %cst_41 [1] : vector<65x65xf32> to vector<65xf32>
    %116 = vector.shape_cast %115 : vector<65xf32> to vector<65x1xf32>
    %117 = tpu.reciprocal %116 {approx = true} : vector<65x1xf32> -> vector<65x1xf32>
    %118 = vector.broadcast %117 : vector<65x1xf32> to vector<65x65xf32>
    %119 = arith.mulf %114, %118 : vector<65x65xf32>
    %120 = arith.truncf %119 : vector<65x65xf32> to vector<65x65xbf16>
    %121 = vector.extract_strided_slice %7 {offsets = [0, 96], sizes = [65, 32], strides = [1, 1]} : vector<65x128xbf16> to vector<65x32xbf16>
    %cst_42 = arith.constant dense<0.000000e+00> : vector<65x32xf32>
    %122 = tpu.matmul %120, %121, %cst_42 {dimension_numbers = #tpu.dot_dimension_numbers<[1], [0], [0], [1], [0, 0, 1, 1], [], []>} : vector<65x65xbf16>, vector<65x32xbf16>, vector<65x32xf32> -> vector<65x32xf32>
    %123 = arith.truncf %122 : vector<65x32xf32> to vector<65x32xbf16>
    %c96 = arith.constant 96 : index
    %c0_43 = arith.constant 0 : index
    %124 = vector.load %arg7[%c96, %c0_43] : memref<128x64xbf16, #tpu.memory_space<vmem>>, vector<32x64xbf16>
    %cst_44 = arith.constant dense<0.000000e+00> : vector<65x64xf32>
    %125 = tpu.matmul %123, %124, %cst_44 {dimension_numbers = #tpu.dot_dimension_numbers<[1], [0], [0], [1], [0, 0, 1, 1], [], []>} : vector<65x32xbf16>, vector<32x64xbf16>, vector<65x64xf32> -> vector<65x64xf32>
    %126 = arith.addf %106, %125 : vector<65x64xf32>
    %c0_45 = arith.constant 0 : index
    %c0_46 = arith.constant 0 : index
    %127 = vector.load %arg8[%c0_45, %c0_46] : memref<1x64xf32, #tpu.memory_space<vmem>>, vector<1x64xf32>
    %128 = vector.broadcast %127 : vector<1x64xf32> to vector<65x64xf32>
    %129 = arith.addf %126, %128 : vector<65x64xf32>
    %c0_47 = arith.constant 0 : index
    %c0_48 = arith.constant 0 : index
    %c0_49 = arith.constant 0 : index
    %130 = vector.load %arg9[%c0_47, %c0_48, %c0_49] : memref<1x65x64xf32, #tpu.memory_space<vmem>>, vector<1x65x64xf32>
    %131 = vector.shape_cast %130 : vector<1x65x64xf32> to vector<65x64xf32>
    %132 = vector.shape_cast %129 : vector<65x64xf32> to vector<1x65x64xf32>
    tpu.vector_store %arg9[%c0_47, %c0_48, %c0_49], %132 {strides = array<i32>} : memref<1x65x64xf32, #tpu.memory_space<vmem>>, vector<1x65x64xf32>,
    return
  }
  func.func @transform_0(%arg0: i32) -> (i32, i32, i32) {
    %c0_i32 = arith.constant 0 : i32
    %c0_i32_0 = arith.constant 0 : i32
    %c0_i32_1 = arith.constant 0 : i32
    return %arg0, %c0_i32, %c0_i32_0 : i32, i32, i32
  }
  func.func @transform_1(%arg0: i32) -> (i32, i32, i32) {
    %c0_i32 = arith.constant 0 : i32
    %c0_i32_0 = arith.constant 0 : i32
    %c0_i32_1 = arith.constant 0 : i32
    return %arg0, %c0_i32, %c0_i32_0 : i32, i32, i32
  }
  func.func @transform_2(%arg0: i32) -> (i32, i32) {
    %c0_i32 = arith.constant 0 : i32
    %c0_i32_0 = arith.constant 0 : i32
    %c0_i32_1 = arith.constant 0 : i32
    return %c0_i32, %c0_i32_0 : i32, i32
  }
  func.func @transform_3(%arg0: i32) -> (i32, i32) {
    %c0_i32 = arith.constant 0 : i32
    %c0_i32_0 = arith.constant 0 : i32
    %c0_i32_1 = arith.constant 0 : i32
    return %c0_i32, %c0_i32_0 : i32, i32
  }
  func.func @transform_4(%arg0: i32) -> (i32, i32) {
    %c0_i32 = arith.constant 0 : i32
    %c0_i32_0 = arith.constant 0 : i32
    %c0_i32_1 = arith.constant 0 : i32
    return %c0_i32, %c0_i32_0 : i32, i32
  }
  func.func @transform_5(%arg0: i32) -> (i32, i32) {
    %c0_i32 = arith.constant 0 : i32
    %c0_i32_0 = arith.constant 0 : i32
    %c0_i32_1 = arith.constant 0 : i32
    return %c0_i32, %c0_i32_0 : i32, i32
  }
  func.func @transform_6(%arg0: i32) -> (i32, i32) {
    %c0_i32 = arith.constant 0 : i32
    %c0_i32_0 = arith.constant 0 : i32
    %c0_i32_1 = arith.constant 0 : i32
    return %c0_i32, %c0_i32_0 : i32, i32
  }
  func.func @transform_7(%arg0: i32) -> (i32, i32) {
    %c0_i32 = arith.constant 0 : i32
    %c0_i32_0 = arith.constant 0 : i32
    %c0_i32_1 = arith.constant 0 : i32
    return %c0_i32, %c0_i32_0 : i32, i32
  }
  func.func @transform_8(%arg0: i32) -> (i32, i32, i32) {
    %c0_i32 = arith.constant 0 : i32
    %c0_i32_0 = arith.constant 0 : i32
    %c0_i32_1 = arith.constant 0 : i32
    return %arg0, %c0_i32, %c0_i32_0 : i32, i32, i32
  }
}

</mosaic_0001>

<llo_original>
// kernel: attention_forward.4
$region0: #{attention_forward.4}
  #allocation0 [shape = 'u32[]', space=smem, size = 0x4, offset = 0x4, fixed_abs, tag = 'smem constant byte address 0x4 - core index']
  #allocation1 [shape = 'u32[72,128]{1,0:T(1,128)}', space=vmem, size = 0x9000, scoped, tag = 'internal scratch']
  %s0 = inlined_call_operand.vmem [shape: bf16[144,64], index: 0, kind: input, shape index: {}]
  %s1 = inlined_call_operand.vmem [shape: bf16[64,256], index: 1, kind: input, shape index: {}]
  %s2 = inlined_call_operand.vmem [shape: bf16[144,256], index: 2, kind: output, shape index: {}]
  %s3 = sld [smem:[#allocation0]]
  $region41: #{attention_forward.4} parent=0
    _
  %s5 = ssub.s32 1, %s3
  %s6 = scalar_select 0, %s5, %s3
  loop: start=0, step=1, limit=4
  $region2: #{attention_forward.4} parent=0 // loop_pre_header
    _
  $region3: #{attention_forward.4} parent=0 // loop_header
    %s8 = sphi 0, %s12
    %p9 = scmp.ge.s32.totalorder %s8, 4
    %s15 = sphi 0, %s27
    %s16 = sphi 0, %s23
    %s17 = sphi 0, %s15
    %s18 = sphi 0, %s16
    %s19 = sphi 0, %s17
    %s20 = sphi 0, %s18
    %s30 = sphi 0, %s32
    %s33 = sphi 0, %s30
    %s34 = sphi 0, %s33
    %s50 = sphi 0, %s34
    %s56 = sphi 0, %s58
    %s59 = sphi 0, %s56
    %s60 = sphi 0, %s59
    %s76 = sphi 0, %s60
    %s84 = sphi 0, %s86
    %s87 = sphi 0, %s84
    %s88 = sphi 0, %s87
    %s104 = sphi 0, %s88
  $region4: #{attention_forward.4} parent=0 // loop_header_branch
    %11 = sbr.rel (%p9) target = $region8
  $region5: #{attention_forward.4} parent=0 // loop_body
    %s13 = ssub.s32 %s8, 1
    %s14 = ssub.s32 %s8, 2
    %s21 = sadd.s32 1, %s16
    %p22 = scmp.ge.s32.totalorder %s21, 1
    %s23 = scalar_select %p22, 0, %s21
    %s24 = sadd.s32 1, %s15
    %s25 = scalar_select %p22, %s24, %s15
    %p26 = scmp.ge.s32.totalorder %s25, 2
    %s27 = scalar_select %p26, 0, %s25
    %s28 = ssub.s32 %s15, %s27
    %p29 = scmp.eq.s32.totalorder %s28, 0
    %s31 = sadd.s32 %s30, 1
    %s32 = scalar_select %p29, %s30, %s31
    %p35 = pneg %p29
    %p36 = scmp.eq.s32.totalorder %s8, 1
    %p37 = por %p35, %p36
    %p38 = scmp.ne.s32.totalorder %s30, %s33
    %p39 = scmp.eq.s32.totalorder %s8, 0
    %p40 = por %p38, %p39
    %p41 = scmp.ne.s32.totalorder %s30, %s33
    %p42 = scmp.eq.s32.totalorder %s13, 1
    %p43 = por %p41, %p42
    %p44 = scmp.ne.s32.totalorder %s33, %s34
    %p45 = scmp.eq.s32.totalorder %s13, 0
    %p46 = por %p44, %p45
    %p47 = scmp.ne.s32.totalorder %s33, %s34
    %p48 = scmp.eq.s32.totalorder %s14, 1
    %p49 = por %p47, %p48
    %p51 = scmp.ne.s32.totalorder %s34, %s50
    %p52 = scmp.eq.s32.totalorder %s14, 0
    %p53 = por %p51, %p52
    %s54 = ssub.s32 %s16, %s23
    %p55 = scmp.eq.s32.totalorder %s54, 0
    %s57 = sadd.s32 %s56, 1
    %s58 = scalar_select %p55, %s56, %s57
    %p61 = pneg %p55
    %p62 = scmp.eq.s32.totalorder %s8, 1
    %p63 = por %p61, %p62
    %p64 = scmp.ne.s32.totalorder %s56, %s59
    %p65 = scmp.eq.s32.totalorder %s8, 0
    %p66 = por %p64, %p65
    %p67 = scmp.ne.s32.totalorder %s56, %s59
    %p68 = scmp.eq.s32.totalorder %s13, 1
    %p69 = por %p67, %p68
    %p70 = scmp.ne.s32.totalorder %s59, %s60
    %p71 = scmp.eq.s32.totalorder %s13, 0
    %p72 = por %p70, %p71
    %p73 = scmp.ne.s32.totalorder %s59, %s60
    %p74 = scmp.eq.s32.totalorder %s14, 1
    %p75 = por %p73, %p74
    %p77 = scmp.ne.s32.totalorder %s60, %s76
    %p78 = scmp.eq.s32.totalorder %s14, 0
    %p79 = por %p77, %p78
    %s80 = ssub.s32 %s15, %s27
    %s81 = ssub.s32 %s16, %s23
    %s82 = sor.u32 %s80, %s81
    %p83 = scmp.eq.s32.totalorder %s82, 0
    %s85 = sadd.s32 %s84, 1
    %s86 = scalar_select %p83, %s84, %s85
    %p89 = pneg %p83
    %p90 = scmp.eq.s32.totalorder %s8, 1
    %p91 = por %p89, %p90
    %p92 = scmp.ne.s32.totalorder %s84, %s87
    %p93 = scmp.eq.s32.totalorder %s8, 0
    %p94 = por %p92, %p93
    %p95 = scmp.ne.s32.totalorder %s84, %s87
    %p96 = scmp.eq.s32.totalorder %s13, 1
    %p97 = por %p95, %p96
    %p98 = scmp.ne.s32.totalorder %s87, %s88
    %p99 = scmp.eq.s32.totalorder %s13, 0
    %p100 = por %p98, %p99
    %p101 = scmp.ne.s32.totalorder %s87, %s88
    %p102 = scmp.eq.s32.totalorder %s14, 1
    %p103 = por %p101, %p102
    %p105 = scmp.ne.s32.totalorder %s88, %s104
    %p106 = scmp.eq.s32.totalorder %s14, 0
    %p107 = por %p105, %p106
    %p108 = scmp.le.s32.totalorder 1, %s8
    %p109 = scmp.lt.s32.totalorder %s8, 3
    %p110 = pnand %p108, %p109
    %p111 = pneg %p110
    // Predicated region
    $region9: #{attention_forward.4} parent=5 // pred_check
      _
    $region10: #{attention_forward.4} parent=5 // pred_check_branch
      %113 = sbr.rel (%p110) target = $region12
    $region11: #{attention_forward.4} parent=5 // pred_region
      %s114 = ssub.s32 %s8, 1
      // Predicated region
      $region13: #{attention_forward.4} parent=11 // pred_check
        %p115 = pneg %p72
      $region14: #{attention_forward.4} parent=11 // pred_check_branch
        %117 = sbr.rel (%p115) target = $region16
      $region15: #{attention_forward.4} parent=11 // pred_region
        %s118 = smul.u32 2, %s18
        %p119 = scmp.lt.s32.totalorder %s118, 1
        %s120 = scalar_select %p119, %s118, 1
        %s121 = smul.addr %s120, 4
        %s122 = scalar_lea.vmem %s1, %s121
        %s123 = smul.u32 2, %s18
      $region16: #{attention_forward.4} parent=11 // pred_fallthru
        _
    $region12: #{attention_forward.4} parent=5 // pred_fallthru
      _
    %p124 = scmp.lt.s32.totalorder %s8, 2
    // Predicated region
    $region17: #{attention_forward.4} parent=5 // pred_check
      %p125 = pneg %p124
    $region18: #{attention_forward.4} parent=5 // pred_check_branch
      %127 = sbr.rel (%p125) target = $region20
    $region19: #{attention_forward.4} parent=5 // pred_region
      // Predicated region
      $region21: #{attention_forward.4} parent=19 // pred_check
        %p128 = pneg %p40
      $region22: #{attention_forward.4} parent=19 // pred_check_branch
        %130 = sbr.rel (%p128) target = $region24
      $region23: #{attention_forward.4} parent=19 // pred_region
        %s131 = smul.u32 9, %s15
        %p132 = scmp.lt.s32.totalorder %s131, 17
        %s133 = scalar_select %p132, %s131, 17
        %s134 = smul.addr %s133, 4
        %s135 = scalar_lea.vmem %s0, %s134
        %s136 = smul.u32 9, %s15
      $region24: #{attention_forward.4} parent=19 // pred_fallthru
        _
    $region20: #{attention_forward.4} parent=5 // pred_fallthru
      _
    %p137 = scmp.le.s32.totalorder 1, %s8
    %p138 = scmp.lt.s32.totalorder %s8, 3
    %p139 = pnand %p137, %p138
    %p140 = pneg %p139
    // Predicated region
    $region25: #{attention_forward.4} parent=5 // pred_check
      _
    $region26: #{attention_forward.4} parent=5 // pred_check_branch
      %142 = sbr.rel (%p139) target = $region28
    $region27: #{attention_forward.4} parent=5 // pred_region
      %s143 = ssub.s32 %s8, 1
      %s144 = smul.u32 9, %s17
      %p145 = scmp.lt.s32.totalorder %s144, 17
      %s146 = scalar_select %p145, %s144, 17
      %s147 = smul.addr %s146, 4
      %s148 = scalar_lea.vmem %s0, %s147
      %p149 = pneg %p46
      %p150 = pneg %p43
      %s151 = smul.u32 2, %s18
      %p152 = scmp.lt.s32.totalorder %s151, 1
      %s153 = scalar_select %p152, %s151, 1
      %s154 = smul.addr %s153, 4
      %s155 = scalar_lea.vmem %s1, %s154
      %p156 = pneg %p72
      %p157 = pneg %p69
      %p158 = pneg %p100
      %p159 = pneg %p97
      %s160 = smul.u32 9, %s17
      %s161 = smul.u32 2, %s18
      %p162 = scmp.lt.s32.totalorder %s160, 17
      %s163 = scalar_select %p162, %s160, 17
      %p164 = scmp.lt.s32.totalorder %s161, 1
      %s165 = scalar_select %p164, %s161, 1
      %s166 = smul.addr %s163, 2
      %s167 = sadd.s32 %s165, %s166
      %s168 = smul.addr %s167, 4
      %s169 = scalar_lea.vmem %s2, %s168
      %s170 = smul.u32 9, %s17
      %p171 = scmp.lt.s32.totalorder %s170, 17
      %s172 = scalar_select %p171, %s170, 17
      %s173 = smul.addr %s172, 4
      %s174 = scalar_lea.vmem %s0, %s173
      %s175 = smul.u32 9, %s17
      %s176 = smul.u32 2, %s18
      %p177 = scmp.lt.s32.totalorder %s176, 1
      %s178 = scalar_select %p177, %s176, 1
      %s179 = smul.addr %s178, 4
      %s180 = scalar_lea.vmem %s1, %s179
      %s181 = smul.u32 2, %s18
      %s182 = smul.u32 9, %s17
      %s183 = smul.u32 2, %s18
      %p184 = scmp.lt.s32.totalorder %s182, 17
      %s185 = scalar_select %p184, %s182, 17
      %p186 = scmp.lt.s32.totalorder %s183, 1
      %s187 = scalar_select %p186, %s183, 1
      %s188 = smul.addr %s185, 2
      %s189 = sadd.s32 %s187, %s188
      %s190 = smul.addr %s189, 4
      %s191 = scalar_lea.vmem %s2, %s190
      %s192 = smul.u32 9, %s17
      %s193 = smul.u32 2, %s18
      %v195 = vld [vmem:[%s174] sm:$0xf]
      %v196 = vld [vmem:[%s174 + $0x4] sm:$0xf]
      %v197 = vld [vmem:[%s174 + $0x8] sm:$0xf]
      %v198 = vld [vmem:[%s174 + $0xc] sm:$0xf]
      %v199 = vld [vmem:[%s174 + $0x10] sm:$0xf]
      %v200 = vld [vmem:[%s174 + $0x14] sm:$0xf]
      %v201 = vld [vmem:[%s174 + $0x18] sm:$0xf]
      %v202 = vld [vmem:[%s174 + $0x1c] sm:$0xf]
      %v203 = vld [vmem:[%s174 + $0x20] sm:$0xf]
      %v204 = vld [vmem:[%s180] sm:$0xff]
      %v205 = vld [vmem:[%s180 + $0x8] sm:$0xff]
      %v206 = vld [vmem:[%s180 + $0x10] sm:$0xff]
      %v207 = vld [vmem:[%s180 + $0x18] sm:$0xff]
      %v208 = vld [vmem:[%s180 + $0x20] sm:$0xff]
      %v209 = vld [vmem:[%s180 + $0x28] sm:$0xff]
      %v210 = vld [vmem:[%s180 + $0x30] sm:$0xff]
      %v211 = vld [vmem:[%s180 + $0x38] sm:$0xff]
      %v221 = vunpack.c.l.b16 %v195
      %v222 = vunpack.c.l.b16 %v196
      %v223 = vunpack.c.l.b16 %v197
      %v224 = vunpack.c.l.b16 %v198
      %v225 = vunpack.c.l.b16 %v199
      %v226 = vunpack.c.l.b16 %v200
      %v227 = vunpack.c.l.b16 %v201
      %v228 = vunpack.c.l.b16 %v202
      %v229 = vunpack.c.l.b16 %v203
      %v230 = vpack.c.b16 %v222, %v221
      %v231 = vpack.c.b16 %v224, %v223
      %v232 = vpack.c.b16 %v226, %v225
      %v233 = vpack.c.b16 %v228, %v227
      %v234 = vpack.c.b16 %v229, %v229
      %v243 = vunpack.c.l.b16 %v204
      %v244 = vunpack.c.h.b16 %v204
      %v245 = vunpack.c.l.b16 %v205
      %v246 = vunpack.c.h.b16 %v205
      %v247 = vunpack.c.l.b16 %v206
      %v248 = vunpack.c.h.b16 %v206
      %v249 = vunpack.c.l.b16 %v207
      %v250 = vunpack.c.h.b16 %v207
      %v251 = vunpack.c.l.b16 %v208
      %v252 = vunpack.c.h.b16 %v208
      %v253 = vunpack.c.l.b16 %v209
      %v254 = vunpack.c.h.b16 %v209
      %v255 = vunpack.c.l.b16 %v210
      %v256 = vunpack.c.h.b16 %v210
      %v257 = vunpack.c.l.b16 %v211
      %v258 = vunpack.c.h.b16 %v211
      %v259 = vpack.c.b16 %v245, %v243
      %v260 = vpack.c.b16 %v246, %v244
      %v261 = vpack.c.b16 %v249, %v247
      %v262 = vpack.c.b16 %v250, %v248
      %v263 = vpack.c.b16 %v253, %v251
      %v264 = vpack.c.b16 %v254, %v252
      %v265 = vpack.c.b16 %v257, %v255
      %v266 = vpack.c.b16 %v258, %v256
      %vm275 = vcmask 523264
      %v277 = vsel %vm275, %v230, 0
      %v280 = vsel %vm275, %v231, 0
      %v283 = vsel %vm275, %v232, 0
      %v286 = vsel %vm275, %v233, 0
      %v289 = vsel %vm275, %v234, 0
      %291 = vmatpush.bf16.msra.mxu0 0
      %292 = vmatpush.bf16.msra.mxu0 0
      %293 = vmatpush.bf16.msra.mxu0 0
      %294 = vmatpush.bf16.msra.mxu0 0
      %295 = vmatpush.bf16.msra.mxu0 %v265
      %296 = vmatpush.bf16.msra.mxu0 %v263
      %297 = vmatpush.bf16.msra.mxu0 %v261
      %298 = vmatpush.bf16.msra.mxu0 %v259
      %299 = vmatmul.bf16.gmra.mxu0 %v277
      %v300 = vpop.f32.mrf.mxu0
      %v301 = vadd.f32 0.0, %v300
      %v302 = vpop.f32.mrf.mxu0
      %v303 = vadd.f32 0.0, %v302
      %304 = vmatmul.bf16.gmra.mxu0 %v280
      %v305 = vpop.f32.mrf.mxu0
      %v306 = vadd.f32 0.0, %v305
      %v307 = vpop.f32.mrf.mxu0
      %v308 = vadd.f32 0.0, %v307
      %309 = vmatmul.bf16.gmra.mxu0 %v283
      %v310 = vpop.f32.mrf.mxu0
      %v311 = vadd.f32 0.0, %v310
      %v312 = vpop.f32.mrf.mxu0
      %v313 = vadd.f32 0.0, %v312
      %314 = vmatmul.bf16.gmra.mxu0 %v286
      %v315 = vpop.f32.mrf.mxu0
      %v316 = vadd.f32 0.0, %v315
      %v317 = vpop.f32.mrf.mxu0
      %v318 = vadd.f32 0.0, %v317
      %319 = vmatmul.bf16.gmra.mxu0 %v289
      %v320 = vpop.f32.mrf.mxu0
      %v321 = vadd.f32 0.0, %v320
      %v322 = vpop.f32.mrf.mxu0
      %323 = vdwg.mxu0
      %324 = vmatpush.bf16.msra.mxu0 0
      %325 = vmatpush.bf16.msra.mxu0 0
      %326 = vmatpush.bf16.msra.mxu0 0
      %327 = vmatpush.bf16.msra.mxu0 0
      %328 = vmatpush.bf16.msra.mxu0 %v266
      %329 = vmatpush.bf16.msra.mxu0 %v264
      %330 = vmatpush.bf16.msra.mxu0 %v262
      %331 = vmatpush.bf16.msra.mxu0 %v260
      %332 = vmatmul.bf16.gmra.mxu0 %v277
      %v333 = vpop.f32.mrf.mxu0
      %v334 = vadd.f32 0.0, %v333
      %v335 = vpop.f32.mrf.mxu0
      %v336 = vadd.f32 0.0, %v335
      %337 = vmatmul.bf16.gmra.mxu0 %v280
      %v338 = vpop.f32.mrf.mxu0
      %v339 = vadd.f32 0.0, %v338
      %v340 = vpop.f32.mrf.mxu0
      %v341 = vadd.f32 0.0, %v340
      %342 = vmatmul.bf16.gmra.mxu0 %v283
      %v343 = vpop.f32.mrf.mxu0
      %v344 = vadd.f32 0.0, %v343
      %v345 = vpop.f32.mrf.mxu0
      %v346 = vadd.f32 0.0, %v345
      %347 = vmatmul.bf16.gmra.mxu0 %v286
      %v348 = vpop.f32.mrf.mxu0
      %v349 = vadd.f32 0.0, %v348
      %v350 = vpop.f32.mrf.mxu0
      %v351 = vadd.f32 0.0, %v350
      %352 = vmatmul.bf16.gmra.mxu0 %v289
      %v353 = vpop.f32.mrf.mxu0
      %v354 = vadd.f32 0.0, %v353
      %v355 = vpop.f32.mrf.mxu0
      %356 = vdwg.mxu0
      %v357 = vpack.c.bf16 %v334, %v301
      %v358 = vpack.c.bf16 %v336, %v303
      %v359 = vpack.c.bf16 %v339, %v306
      %v360 = vpack.c.bf16 %v341, %v308
      %v361 = vpack.c.bf16 %v344, %v311
      %v362 = vpack.c.bf16 %v346, %v313
      %v363 = vpack.c.bf16 %v349, %v316
      %v364 = vpack.c.bf16 %v351, %v318
      %v365 = vpack.c.bf16 %v354, %v321
      %366 = vst [vmem:[%s191] sm:$0xff] %v357
      %367 = vst [vmem:[%s191 + $0x8] sm:$0xff] %v358
      %368 = vst [vmem:[%s191 + $0x10] sm:$0xff] %v359
      %369 = vst [vmem:[%s191 + $0x18] sm:$0xff] %v360
      %370 = vst [vmem:[%s191 + $0x20] sm:$0xff] %v361
      %371 = vst [vmem:[%s191 + $0x28] sm:$0xff] %v362
      %372 = vst [vmem:[%s191 + $0x30] sm:$0xff] %v363
      %373 = vst [vmem:[%s191 + $0x38] sm:$0xff] %v364
      %374 = vst [vmem:[%s191 + $0x40] sm:$0xff] %v365
      %s375 = smul.u32 9, %s17
      %s376 = smul.u32 2, %s18
      %p377 = scmp.lt.s32.totalorder %s375, 17
      %s378 = scalar_select %p377, %s375, 17
      %p379 = scmp.lt.s32.totalorder %s376, 1
      %s380 = scalar_select %p379, %s376, 1
      %s381 = smul.addr %s378, 2
      %s382 = sadd.s32 %s380, %s381
      %s383 = smul.addr %s382, 4
      %s384 = scalar_lea.vmem %s2, %s383
      // Predicated region
      $region29: #{attention_forward.4} parent=27 // pred_check
        %p385 = pneg %p97
      $region30: #{attention_forward.4} parent=27 // pred_check_branch
        %387 = sbr.rel (%p385) target = $region32
      $region31: #{attention_forward.4} parent=27 // pred_region
        %s388 = smul.u32 9, %s17
        %s389 = smul.u32 2, %s18
      $region32: #{attention_forward.4} parent=27 // pred_fallthru
        _
    $region28: #{attention_forward.4} parent=5 // pred_fallthru
      _
    %p390 = scmp.le.s32.totalorder 2, %s8
    // Predicated region
    $region33: #{attention_forward.4} parent=5 // pred_check
      %p391 = pneg %p390
    $region34: #{attention_forward.4} parent=5 // pred_check_branch
      %393 = sbr.rel (%p391) target = $region36
    $region35: #{attention_forward.4} parent=5 // pred_region
      %s394 = ssub.s32 %s8, 2
      // Predicated region
      $region37: #{attention_forward.4} parent=35 // pred_check
        %p395 = pneg %p103
      $region38: #{attention_forward.4} parent=35 // pred_check_branch
        %397 = sbr.rel (%p395) target = $region40
      $region39: #{attention_forward.4} parent=35 // pred_region
        %s398 = smul.u32 9, %s19
        %s399 = smul.u32 2, %s20
        %p400 = scmp.lt.s32.totalorder %s398, 17
        %s401 = scalar_select %p400, %s398, 17
        %p402 = scmp.lt.s32.totalorder %s399, 1
        %s403 = scalar_select %p402, %s399, 1
        %s404 = smul.addr %s401, 2
        %s405 = sadd.s32 %s403, %s404
        %s406 = smul.addr %s405, 4
        %s407 = scalar_lea.vmem %s2, %s406
      $region40: #{attention_forward.4} parent=35 // pred_fallthru
        _
    $region36: #{attention_forward.4} parent=5 // pred_fallthru
      _
  $region6: #{attention_forward.4} parent=0 // loop_footer
    %s12 = sadd.s32 1, %s8
  $region7: #{attention_forward.4} parent=0 // loop_footer_branch
    %7 = sbr.rel target = $region3
  $region8: #{attention_forward.4} parent=0 // loop_exit
    _

// kernel: attention_forward.3
$region0: #{attention_forward.3}
  #allocation0 [shape = 'u32[]', space=smem, size = 0x4, offset = 0x4, fixed_abs, tag = 'smem constant byte address 0x4 - core index']
  #allocation1 [shape = 'u32[72,128]{1,0:T(1,128)}', space=vmem, size = 0x9000, scoped, tag = 'internal scratch']
  %s0 = inlined_call_operand.vmem [shape: bf16[2,12,12,64], index: 0, kind: input, shape index: {}]
  %s1 = inlined_call_operand.vmem [shape: bf16[2,1,64], index: 1, kind: input, shape index: {}]
  %s2 = inlined_call_operand.vmem [shape: f32[25,64], index: 2, kind: input, shape index: {}]
  %s3 = inlined_call_operand.vmem [shape: bf16[64,128], index: 3, kind: input, shape index: {}]
  %s4 = inlined_call_operand.vmem [shape: bf16[64,128], index: 4, kind: input, shape index: {}]
  %s5 = inlined_call_operand.vmem [shape: f32[1,128], index: 5, kind: input, shape index: {}]
  %s6 = inlined_call_operand.vmem [shape: bf16[2,65,128], index: 6, kind: output, shape index: {}]
  %s7 = sld [smem:[#allocation0]]
  $region57: #{attention_forward.3} parent=0
    _
  %s9 = ssub.s32 1, %s7
  %s10 = scalar_select 0, %s9, %s7
  loop: start=0, step=1, limit=4
  $region2: #{attention_forward.3} parent=0 // loop_pre_header
    _
  $region3: #{attention_forward.3} parent=0 // loop_header
    %s12 = sphi 0, %s16
    %p13 = scmp.ge.s32.totalorder %s12, 4
    %s22 = sphi 0, %s24
    %s25 = sphi 0, %s22
    %s26 = sphi 0, %s25
    %s42 = sphi 0, %s26
    %s48 = sphi 0, %s50
    %s51 = sphi 0, %s48
    %s52 = sphi 0, %s51
    %s68 = sphi 0, %s52
    %s72 = sphi 0, %s72
    %s74 = sphi 0, %s72
    %s75 = sphi 0, %s74
    %s89 = sphi 0, %s75
    %s93 = sphi 0, %s93
    %s95 = sphi 0, %s93
    %s96 = sphi 0, %s95
    %s110 = sphi 0, %s96
    %s114 = sphi 0, %s114
    %s116 = sphi 0, %s114
    %s117 = sphi 0, %s116
    %s131 = sphi 0, %s117
    %s135 = sphi 0, %s135
    %s137 = sphi 0, %s135
    %s138 = sphi 0, %s137
    %s152 = sphi 0, %s138
    %s158 = sphi 0, %s160
    %s161 = sphi 0, %s158
    %s162 = sphi 0, %s161
    %s178 = sphi 0, %s162
  $region4: #{attention_forward.3} parent=0 // loop_header_branch
    %15 = sbr.rel (%p13) target = $region8
  $region5: #{attention_forward.3} parent=0 // loop_body
    %s17 = ssub.s32 %s12, 1
    %s18 = ssub.s32 %s12, 2
    %s19 = sadd.s32 %s12, 1
    %s20 = ssub.s32 %s12, %s19
    %p21 = scmp.eq.s32.totalorder %s20, 0
    %s23 = sadd.s32 %s22, 1
    %s24 = scalar_select %p21, %s22, %s23
    %p27 = pneg %p21
    %p28 = scmp.eq.s32.totalorder %s12, 1
    %p29 = por %p27, %p28
    %p30 = scmp.ne.s32.totalorder %s22, %s25
    %p31 = scmp.eq.s32.totalorder %s12, 0
    %p32 = por %p30, %p31
    %p33 = scmp.ne.s32.totalorder %s22, %s25
    %p34 = scmp.eq.s32.totalorder %s17, 1
    %p35 = por %p33, %p34
    %p36 = scmp.ne.s32.totalorder %s25, %s26
    %p37 = scmp.eq.s32.totalorder %s17, 0
    %p38 = por %p36, %p37
    %p39 = scmp.ne.s32.totalorder %s25, %s26
    %p40 = scmp.eq.s32.totalorder %s18, 1
    %p41 = por %p39, %p40
    %p43 = scmp.ne.s32.totalorder %s26, %s42
    %p44 = scmp.eq.s32.totalorder %s18, 0
    %p45 = por %p43, %p44
    %s46 = ssub.s32 %s12, %s19
    %p47 = scmp.eq.s32.totalorder %s46, 0
    %s49 = sadd.s32 %s48, 1
    %s50 = scalar_select %p47, %s48, %s49
    %p53 = pneg %p47
    %p54 = scmp.eq.s32.totalorder %s12, 1
    %p55 = por %p53, %p54
    %p56 = scmp.ne.s32.totalorder %s48, %s51
    %p57 = scmp.eq.s32.totalorder %s12, 0
    %p58 = por %p56, %p57
    %p59 = scmp.ne.s32.totalorder %s48, %s51
    %p60 = scmp.eq.s32.totalorder %s17, 1
    %p61 = por %p59, %p60
    %p62 = scmp.ne.s32.totalorder %s51, %s52
    %p63 = scmp.eq.s32.totalorder %s17, 0
    %p64 = por %p62, %p63
    %p65 = scmp.ne.s32.totalorder %s51, %s52
    %p66 = scmp.eq.s32.totalorder %s18, 1
    %p67 = por %p65, %p66
    %p69 = scmp.ne.s32.totalorder %s52, %s68
    %p70 = scmp.eq.s32.totalorder %s18, 0
    %p71 = por %p69, %p70
    %s73 = sadd.s32 %s72, 1
    %p76 = scmp.eq.s32.totalorder %s12, 1
    %p77 = scmp.ne.s32.totalorder %s72, %s74
    %p78 = scmp.eq.s32.totalorder %s12, 0
    %p79 = por %p77, %p78
    %p80 = scmp.ne.s32.totalorder %s72, %s74
    %p81 = scmp.eq.s32.totalorder %s17, 1
    %p82 = por %p80, %p81
    %p83 = scmp.ne.s32.totalorder %s74, %s75
    %p84 = scmp.eq.s32.totalorder %s17, 0
    %p85 = por %p83, %p84
    %p86 = scmp.ne.s32.totalorder %s74, %s75
    %p87 = scmp.eq.s32.totalorder %s18, 1
    %p88 = por %p86, %p87
    %p90 = scmp.ne.s32.totalorder %s75, %s89
    %p91 = scmp.eq.s32.totalorder %s18, 0
    %p92 = por %p90, %p91
    %s94 = sadd.s32 %s93, 1
    %p97 = scmp.eq.s32.totalorder %s12, 1
    %p98 = scmp.ne.s32.totalorder %s93, %s95
    %p99 = scmp.eq.s32.totalorder %s12, 0
    %p100 = por %p98, %p99
    %p101 = scmp.ne.s32.totalorder %s93, %s95
    %p102 = scmp.eq.s32.totalorder %s17, 1
    %p103 = por %p101, %p102
    %p104 = scmp.ne.s32.totalorder %s95, %s96
    %p105 = scmp.eq.s32.totalorder %s17, 0
    %p106 = por %p104, %p105
    %p107 = scmp.ne.s32.totalorder %s95, %s96
    %p108 = scmp.eq.s32.totalorder %s18, 1
    %p109 = por %p107, %p108
    %p111 = scmp.ne.s32.totalorder %s96, %s110
    %p112 = scmp.eq.s32.totalorder %s18, 0
    %p113 = por %p111, %p112
    %s115 = sadd.s32 %s114, 1
    %p118 = scmp.eq.s32.totalorder %s12, 1
    %p119 = scmp.ne.s32.totalorder %s114, %s116
    %p120 = scmp.eq.s32.totalorder %s12, 0
    %p121 = por %p119, %p120
    %p122 = scmp.ne.s32.totalorder %s114, %s116
    %p123 = scmp.eq.s32.totalorder %s17, 1
    %p124 = por %p122, %p123
    %p125 = scmp.ne.s32.totalorder %s116, %s117
    %p126 = scmp.eq.s32.totalorder %s17, 0
    %p127 = por %p125, %p126
    %p128 = scmp.ne.s32.totalorder %s116, %s117
    %p129 = scmp.eq.s32.totalorder %s18, 1
    %p130 = por %p128, %p129
    %p132 = scmp.ne.s32.totalorder %s117, %s131
    %p133 = scmp.eq.s32.totalorder %s18, 0
    %p134 = por %p132, %p133
    %s136 = sadd.s32 %s135, 1
    %p139 = scmp.eq.s32.totalorder %s12, 1
    %p140 = scmp.ne.s32.totalorder %s135, %s137
    %p141 = scmp.eq.s32.totalorder %s12, 0
    %p142 = por %p140, %p141
    %p143 = scmp.ne.s32.totalorder %s135, %s137
    %p144 = scmp.eq.s32.totalorder %s17, 1
    %p145 = por %p143, %p144
    %p146 = scmp.ne.s32.totalorder %s137, %s138
    %p147 = scmp.eq.s32.totalorder %s17, 0
    %p148 = por %p146, %p147
    %p149 = scmp.ne.s32.totalorder %s137, %s138
    %p150 = scmp.eq.s32.totalorder %s18, 1
    %p151 = por %p149, %p150
    %p153 = scmp.ne.s32.totalorder %s138, %s152
    %p154 = scmp.eq.s32.totalorder %s18, 0
    %p155 = por %p153, %p154
    %s156 = ssub.s32 %s12, %s19
    %p157 = scmp.eq.s32.totalorder %s156, 0
    %s159 = sadd.s32 %s158, 1
    %s160 = scalar_select %p157, %s158, %s159
    %p163 = pneg %p157
    %p164 = scmp.eq.s32.totalorder %s12, 1
    %p165 = por %p163, %p164
    %p166 = scmp.ne.s32.totalorder %s158, %s161
    %p167 = scmp.eq.s32.totalorder %s12, 0
    %p168 = por %p166, %p167
    %p169 = scmp.ne.s32.totalorder %s158, %s161
    %p170 = scmp.eq.s32.totalorder %s17, 1
    %p171 = por %p169, %p170
    %p172 = scmp.ne.s32.totalorder %s161, %s162
    %p173 = scmp.eq.s32.totalorder %s17, 0
    %p174 = por %p172, %p173
    %p175 = scmp.ne.s32.totalorder %s161, %s162
    %p176 = scmp.eq.s32.totalorder %s18, 1
    %p177 = por %p175, %p176
    %p179 = scmp.ne.s32.totalorder %s162, %s178
    %p180 = scmp.eq.s32.totalorder %s18, 0
    %p181 = por %p179, %p180
    %p182 = scmp.le.s32.totalorder 1, %s12
    %p183 = scmp.lt.s32.totalorder %s12, 3
    %p184 = pnand %p182, %p183
    %p185 = pneg %p184
    // Predicated region
    $region9: #{attention_forward.3} parent=5 // pred_check
      _
    $region10: #{attention_forward.3} parent=5 // pred_check_branch
      %187 = sbr.rel (%p184) target = $region12
    $region11: #{attention_forward.3} parent=5 // pred_region
      %s188 = ssub.s32 %s12, 1
      // Predicated region
      $region13: #{attention_forward.3} parent=11 // pred_check
        %p189 = pneg %p85
      $region14: #{attention_forward.3} parent=11 // pred_check_branch
        %191 = sbr.rel (%p189) target = $region16
      $region15: #{attention_forward.3} parent=11 // pred_region
        _
      $region16: #{attention_forward.3} parent=11 // pred_fallthru
        _
      // Predicated region
      $region17: #{attention_forward.3} parent=11 // pred_check
        %p192 = pneg %p106
      $region18: #{attention_forward.3} parent=11 // pred_check_branch
        %194 = sbr.rel (%p192) target = $region20
      $region19: #{attention_forward.3} parent=11 // pred_region
        _
      $region20: #{attention_forward.3} parent=11 // pred_fallthru
        _
      // Predicated region
      $region21: #{attention_forward.3} parent=11 // pred_check
        %p195 = pneg %p127
      $region22: #{attention_forward.3} parent=11 // pred_check_branch
        %197 = sbr.rel (%p195) target = $region24
      $region23: #{attention_forward.3} parent=11 // pred_region
        _
      $region24: #{attention_forward.3} parent=11 // pred_fallthru
        _
      // Predicated region
      $region25: #{attention_forward.3} parent=11 // pred_check
        %p198 = pneg %p148
      $region26: #{attention_forward.3} parent=11 // pred_check_branch
        %200 = sbr.rel (%p198) target = $region28
      $region27: #{attention_forward.3} parent=11 // pred_region
        _
      $region28: #{attention_forward.3} parent=11 // pred_fallthru
        _
    $region12: #{attention_forward.3} parent=5 // pred_fallthru
      _
    %p201 = scmp.lt.s32.totalorder %s12, 2
    // Predicated region
    $region29: #{attention_forward.3} parent=5 // pred_check
      %p202 = pneg %p201
    $region30: #{attention_forward.3} parent=5 // pred_check_branch
      %204 = sbr.rel (%p202) target = $region32
    $region31: #{attention_forward.3} parent=5 // pred_region
      // Predicated region
      $region33: #{attention_forward.3} parent=31 // pred_check
        %p205 = pneg %p32
      $region34: #{attention_forward.3} parent=31 // pred_check_branch
        %207 = sbr.rel (%p205) target = $region36
      $region35: #{attention_forward.3} parent=31 // pred_region
        %p208 = scmp.lt.s32.totalorder %s12, 1
        %s209 = scalar_select %p208, %s12, 1
        %s210 = smul.addr %s209, 24
        %s211 = smul.addr %s210, 4
        %s212 = scalar_lea.vmem %s0, %s211
      $region36: #{attention_forward.3} parent=31 // pred_fallthru
        _
      // Predicated region
      $region37: #{attention_forward.3} parent=31 // pred_check
        %p213 = pneg %p58
      $region38: #{attention_forward.3} parent=31 // pred_check_branch
        %215 = sbr.rel (%p213) target = $region40
      $region39: #{attention_forward.3} parent=31 // pred_region
        %p216 = scmp.lt.s32.totalorder %s12, 1
        %s217 = scalar_select %p216, %s12, 1
        %s218 = scalar_lea.vmem %s1, %s217
      $region40: #{attention_forward.3} parent=31 // pred_fallthru
        _
    $region32: #{attention_forward.3} parent=5 // pred_fallthru
      _
    %p219 = scmp.le.s32.totalorder 1, %s12
    %p220 = scmp.lt.s32.totalorder %s12, 3
    %p221 = pnand %p219, %p220
    %p222 = pneg %p221
    // Predicated region
    $region41: #{attention_forward.3} parent=5 // pred_check
      _
    $region42: #{attention_forward.3} parent=5 // pred_check_branch
      %224 = sbr.rel (%p221) target = $region44
    $region43: #{attention_forward.3} parent=5 // pred_region
      %s225 = ssub.s32 %s12, 1
      %p226 = scmp.lt.s32.totalorder %s17, 1
      %s227 = scalar_select %p226, %s17, 1
      %s228 = smul.addr %s227, 24
      %s229 = smul.addr %s228, 4
      %s230 = scalar_lea.vmem %s0, %s229
      %p231 = pneg %p38
      %p232 = pneg %p35
      %p233 = scmp.lt.s32.totalorder %s17, 1
      %s234 = scalar_select %p233, %s17, 1
      %s235 = scalar_lea.vmem %s1, %s234
      %p236 = pneg %p64
      %p237 = pneg %p61
      %p238 = pneg %p85
      %p239 = pneg %p82
      %p240 = pneg %p106
      %p241 = pneg %p103
      %p242 = pneg %p127
      %p243 = pneg %p124
      %p244 = pneg %p148
      %p245 = pneg %p145
      %p246 = pneg %p174
      %p247 = pneg %p171
      %p248 = scmp.lt.s32.totalorder %s17, 1
      %s249 = scalar_select %p248, %s17, 1
      %s250 = smul.addr %s249, 9
      %s251 = smul.addr %s250, 4
      %s252 = scalar_lea.vmem %s6, %s251
      %p253 = scmp.lt.s32.totalorder %s17, 1
      %s254 = scalar_select %p253, %s17, 1
      %s255 = smul.addr %s254, 24
      %s256 = smul.addr %s255, 4
      %s257 = scalar_lea.vmem %s0, %s256
      %p258 = scmp.lt.s32.totalorder %s17, 1
      %s259 = scalar_select %p258, %s17, 1
      %s260 = scalar_lea.vmem %s1, %s259
      %p261 = scmp.lt.s32.totalorder %s17, 1
      %s262 = scalar_select %p261, %s17, 1
      %s263 = smul.addr %s262, 9
      %s264 = smul.addr %s263, 4
      %s265 = scalar_lea.vmem %s6, %s264
      %v267 = vld [vmem:[%s257] sm:$0xf]
      %v268 = vld [vmem:[%s257 + $0x4] sm:$0x3]
      %v269 = vld [vmem:[%s257 + $0x8] sm:$0xf]
      %v270 = vld [vmem:[%s257 + $0xc] sm:$0x3]
      %v271 = vld [vmem:[%s257 + $0x10] sm:$0xf]
      %v272 = vld [vmem:[%s257 + $0x14] sm:$0x3]
      %v273 = vld [vmem:[%s257 + $0x18] sm:$0xf]
      %v274 = vld [vmem:[%s257 + $0x1c] sm:$0x3]
      %v275 = vld [vmem:[%s257 + $0x20] sm:$0xf]
      %v276 = vld [vmem:[%s257 + $0x24] sm:$0x3]
      %v277 = vld [vmem:[%s257 + $0x28] sm:$0xf]
      %v278 = vld [vmem:[%s257 + $0x2c] sm:$0x3]
      %v279 = vld [vmem:[%s257 + $0x30] sm:$0xf]
      %v280 = vld [vmem:[%s257 + $0x34] sm:$0x3]
      %v281 = vld [vmem:[%s257 + $0x38] sm:$0xf]
      %v282 = vld [vmem:[%s257 + $0x3c] sm:$0x3]
      %v283 = vld [vmem:[%s257 + $0x40] sm:$0xf]
      %v284 = vld [vmem:[%s257 + $0x44] sm:$0x3]
      %v285 = vld [vmem:[%s257 + $0x48] sm:$0xf]
      %v286 = vld [vmem:[%s257 + $0x4c] sm:$0x3]
      %v287 = vld [vmem:[%s257 + $0x50] sm:$0xf]
      %v288 = vld [vmem:[%s257 + $0x54] sm:$0x3]
      %v289 = vld [vmem:[%s257 + $0x58] sm:$0xf]
      %v290 = vld [vmem:[%s257 + $0x5c] sm:$0x3]
      %v291 = vunpack.c.l.bf16 %v267
      %v292 = vunpack.c.l.bf16 %v268
      %v293 = vunpack.c.l.bf16 %v269
      %v294 = vunpack.c.l.bf16 %v270
      %v295 = vunpack.c.l.bf16 %v271
      %v296 = vunpack.c.l.bf16 %v272
      %v297 = vunpack.c.l.bf16 %v273
      %v298 = vunpack.c.l.bf16 %v274
      %v299 = vunpack.c.l.bf16 %v275
      %v300 = vunpack.c.l.bf16 %v276
      %v301 = vunpack.c.l.bf16 %v277
      %v302 = vunpack.c.l.bf16 %v278
      %v303 = vunpack.c.l.bf16 %v279
      %v304 = vunpack.c.l.bf16 %v280
      %v305 = vunpack.c.l.bf16 %v281
      %v306 = vunpack.c.l.bf16 %v282
      %v307 = vunpack.c.l.bf16 %v283
      %v308 = vunpack.c.l.bf16 %v284
      %v309 = vunpack.c.l.bf16 %v285
      %v310 = vunpack.c.l.bf16 %v286
      %v311 = vunpack.c.l.bf16 %v287
      %v312 = vunpack.c.l.bf16 %v288
      %v313 = vunpack.c.l.bf16 %v289
      %v314 = vunpack.c.l.bf16 %v290
      %v315 = vld [vmem:[%s2] sm:$0x1]
      %v316 = vperm.slane %v315, 0
      %v317 = vmul.f32 %v291, %v316
      %v318 = vmul.f32 %v293, %v316
      %v319 = vmul.f32 %v295, %v316
      %v320 = vmul.f32 %v297, %v316
      %v321 = vmul.f32 %v299, %v316
      %v322 = vmul.f32 %v301, %v316
      %v323 = vmul.f32 %v303, %v316
      %v324 = vmul.f32 %v305, %v316
      %v325 = vadd.f32 %v317, 0.0
      %v326 = vadd.f32 %v318, 0.0
      %v327 = vadd.f32 %v319, 0.0
      %v328 = vadd.f32 %v320, 0.0
      %v329 = vadd.f32 %v321, 0.0
      %v330 = vadd.f32 %v322, 0.0
      %v331 = vadd.f32 %v323, 0.0
      %v332 = vadd.f32 %v324, 0.0
      %v333 = vld [vmem:[%s2 + $0x5] sm:$0x1]
      %v334 = vperm.slane %v333, 0
      %v335 = vmul.f32 %v293, %v334
      %v336 = vmul.f32 %v295, %v334
      %v337 = vmul.f32 %v297, %v334
      %v338 = vmul.f32 %v299, %v334
      %v339 = vmul.f32 %v301, %v334
      %v340 = vmul.f32 %v303, %v334
      %v341 = vmul.f32 %v305, %v334
      %v342 = vmul.f32 %v307, %v334
      %v343 = vadd.f32 %v325, %v335
      %v344 = vadd.f32 %v326, %v336
      %v345 = vadd.f32 %v327, %v337
      %v346 = vadd.f32 %v328, %v338
      %v347 = vadd.f32 %v329, %v339
      %v348 = vadd.f32 %v330, %v340
      %v349 = vadd.f32 %v331, %v341
      %v350 = vadd.f32 %v332, %v342
      %v351 = vld [vmem:[%s2 + $0xa] sm:$0x1]
      %v352 = vperm.slane %v351, 0
      %v353 = vmul.f32 %v295, %v352
      %v354 = vmul.f32 %v297, %v352
      %v355 = vmul.f32 %v299, %v352
      %v356 = vmul.f32 %v301, %v352
      %v357 = vmul.f32 %v303, %v352
      %v358 = vmul.f32 %v305, %v352
      %v359 = vmul.f32 %v307, %v352
      %v360 = vmul.f32 %v309, %v352
      %v361 = vadd.f32 %v343, %v353
      %v362 = vadd.f32 %v344, %v354
      %v363 = vadd.f32 %v345, %v355
      %v364 = vadd.f32 %v346, %v356
      %v365 = vadd.f32 %v347, %v357
      %v366 = vadd.f32 %v348, %v358
      %v367 = vadd.f32 %v349, %v359
      %v368 = vadd.f32 %v350, %v360
      %v369 = vld [vmem:[%s2 + $0xf] sm:$0x1]
      %v370 = vperm.slane %v369, 0
      %v371 = vmul.f32 %v297, %v370
      %v372 = vmul.f32 %v299, %v370
      %v373 = vmul.f32 %v301, %v370
      %v374 = vmul.f32 %v303, %v370
      %v375 = vmul.f32 %v305, %v370
      %v376 = vmul.f32 %v307, %v370
      %v377 = vmul.f32 %v309, %v370
      %v378 = vmul.f32 %v311, %v370
      %v379 = vadd.f32 %v361, %v371
      %v380 = vadd.f32 %v362, %v372
      %v381 = vadd.f32 %v363, %v373
      %v382 = vadd.f32 %v364, %v374
      %v383 = vadd.f32 %v365, %v375
      %v384 = vadd.f32 %v366, %v376
      %v385 = vadd.f32 %v367, %v377
      %v386 = vadd.f32 %v368, %v378
      %v387 = vld [vmem:[%s2 + $0x14] sm:$0x1]
      %v388 = vperm.slane %v387, 0
      %v389 = vmul.f32 %v299, %v388
      %v390 = vmul.f32 %v301, %v388
      %v391 = vmul.f32 %v303, %v388
      %v392 = vmul.f32 %v305, %v388
      %v393 = vmul.f32 %v307, %v388
      %v394 = vmul.f32 %v309, %v388
      %v395 = vmul.f32 %v311, %v388
      %v396 = vmul.f32 %v313, %v388
      %v397 = vadd.f32 %v379, %v389
      %v398 = vadd.f32 %v380, %v390
      %v399 = vadd.f32 %v381, %v391
      %v400 = vadd.f32 %v382, %v392
      %v401 = vadd.f32 %v383, %v393
      %v402 = vadd.f32 %v384, %v394
      %v403 = vadd.f32 %v385, %v395
      %v404 = vadd.f32 %v386, %v396
      %v405 = vld [vmem:[%s2 + $0x1] sm:$0x1]
      %v406 = vperm.slane %v405, 0
      %v407 = vmul.f32 %v291, %v406
      %v408 = vmul.f32 %v292, %v406
      %v409 = vmul.f32 %v293, %v406
      %v410 = vmul.f32 %v294, %v406
      %v411 = vmul.f32 %v295, %v406
      %v412 = vmul.f32 %v296, %v406
      %v413 = vmul.f32 %v297, %v406
      %v414 = vmul.f32 %v298, %v406
      %v415 = vmul.f32 %v299, %v406
      %v416 = vmul.f32 %v300, %v406
      %v417 = vmul.f32 %v301, %v406
      %v418 = vmul.f32 %v302, %v406
      %v419 = vmul.f32 %v303, %v406
      %v420 = vmul.f32 %v304, %v406
      %v421 = vmul.f32 %v305, %v406
      %v422 = vmul.f32 %v306, %v406
      %vm439 = vcmask 1046528
      %v440 = vrot.slane %v407, 1
      %v441 = vrot.slane %v408, 1
      %v442 = vsel %vm439, %v440, %v441
      %v443 = vrot.slane %v409, 1
      %v444 = vrot.slane %v410, 1
      %v445 = vsel %vm439, %v443, %v444
      %v446 = vrot.slane %v411, 1
      %v447 = vrot.slane %v412, 1
      %v448 = vsel %vm439, %v446, %v447
      %v449 = vrot.slane %v413, 1
      %v450 = vrot.slane %v414, 1
      %v451 = vsel %vm439, %v449, %v450
      %v452 = vrot.slane %v415, 1
      %v453 = vrot.slane %v416, 1
      %v454 = vsel %vm439, %v452, %v453
      %v455 = vrot.slane %v417, 1
      %v456 = vrot.slane %v418, 1
      %v457 = vsel %vm439, %v455, %v456
      %v458 = vrot.slane %v419, 1
      %v459 = vrot.slane %v420, 1
      %v460 = vsel %vm439, %v458, %v459
      %v461 = vrot.slane %v421, 1
      %v462 = vrot.slane %v422, 1
      %v463 = vsel %vm439, %v461, %v462
      %v472 = vadd.f32 %v397, %v442
      %v473 = vadd.f32 %v398, %v445
      %v474 = vadd.f32 %v399, %v448
      %v475 = vadd.f32 %v400, %v451
      %v476 = vadd.f32 %v401, %v454
      %v477 = vadd.f32 %v402, %v457
      %v478 = vadd.f32 %v403, %v460
      %v479 = vadd.f32 %v404, %v463
      %v480 = vld [vmem:[%s2 + $0x6] sm:$0x1]
      %v481 = vperm.slane %v480, 0
      %v482 = vmul.f32 %v293, %v481
      %v483 = vmul.f32 %v294, %v481
      %v484 = vmul.f32 %v295, %v481
      %v485 = vmul.f32 %v296, %v481
      %v486 = vmul.f32 %v297, %v481
      %v487 = vmul.f32 %v298, %v481
      %v488 = vmul.f32 %v299, %v481
      %v489 = vmul.f32 %v300, %v481
      %v490 = vmul.f32 %v301, %v481
      %v491 = vmul.f32 %v302, %v481
      %v492 = vmul.f32 %v303, %v481
      %v493 = vmul.f32 %v304, %v481
      %v494 = vmul.f32 %v305, %v481
      %v495 = vmul.f32 %v306, %v481
      %v496 = vmul.f32 %v307, %v481
      %v497 = vmul.f32 %v308, %v481
      %v514 = vrot.slane %v482, 1
      %v515 = vrot.slane %v483, 1
      %v516 = vsel %vm439, %v514, %v515
      %v517 = vrot.slane %v484, 1
      %v518 = vrot.slane %v485, 1
      %v519 = vsel %vm439, %v517, %v518
      %v520 = vrot.slane %v486, 1
      %v521 = vrot.slane %v487, 1
      %v522 = vsel %vm439, %v520, %v521
      %v523 = vrot.slane %v488, 1
      %v524 = vrot.slane %v489, 1
      %v525 = vsel %vm439, %v523, %v524
      %v526 = vrot.slane %v490, 1
      %v527 = vrot.slane %v491, 1
      %v528 = vsel %vm439, %v526, %v527
      %v529 = vrot.slane %v492, 1
      %v530 = vrot.slane %v493, 1
      %v531 = vsel %vm439, %v529, %v530
      %v532 = vrot.slane %v494, 1
      %v533 = vrot.slane %v495, 1
      %v534 = vsel %vm439, %v532, %v533
      %v535 = vrot.slane %v496, 1
      %v536 = vrot.slane %v497, 1
      %v537 = vsel %vm439, %v535, %v536
      %v546 = vadd.f32 %v472, %v516
      %v547 = vadd.f32 %v473, %v519
      %v548 = vadd.f32 %v474, %v522
      %v549 = vadd.f32 %v475, %v525
      %v550 = vadd.f32 %v476, %v528
      %v551 = vadd.f32 %v477, %v531
      %v552 = vadd.f32 %v478, %v534
      %v553 = vadd.f32 %v479, %v537
      %v554 = vld [vmem:[%s2 + $0xb] sm:$0x1]
      %v555 = vperm.slane %v554, 0
      %v556 = vmul.f32 %v295, %v555
      %v557 = vmul.f32 %v296, %v555
      %v558 = vmul.f32 %v297, %v555
      %v559 = vmul.f32 %v298, %v555
      %v560 = vmul.f32 %v299, %v555
      %v561 = vmul.f32 %v300, %v555
      %v562 = vmul.f32 %v301, %v555
      %v563 = vmul.f32 %v302, %v555
      %v564 = vmul.f32 %v303, %v555
      %v565 = vmul.f32 %v304, %v555
      %v566 = vmul.f32 %v305, %v555
      %v567 = vmul.f32 %v306, %v555
      %v568 = vmul.f32 %v307, %v555
      %v569 = vmul.f32 %v308, %v555
      %v570 = vmul.f32 %v309, %v555
      %v571 = vmul.f32 %v310, %v555
      %v588 = vrot.slane %v556, 1
      %v589 = vrot.slane %v557, 1
      %v590 = vsel %vm439, %v588, %v589
      %v591 = vrot.slane %v558, 1
      %v592 = vrot.slane %v559, 1
      %v593 = vsel %vm439, %v591, %v592
      %v594 = vrot.slane %v560, 1
      %v595 = vrot.slane %v561, 1
      %v596 = vsel %vm439, %v594, %v595
      %v597 = vrot.slane %v562, 1
      %v598 = vrot.slane %v563, 1
      %v599 = vsel %vm439, %v597, %v598
      %v600 = vrot.slane %v564, 1
      %v601 = vrot.slane %v565, 1
      %v602 = vsel %vm439, %v600, %v601
      %v603 = vrot.slane %v566, 1
      %v604 = vrot.slane %v567, 1
      %v605 = vsel %vm439, %v603, %v604
      %v606 = vrot.slane %v568, 1
      %v607 = vrot.slane %v569, 1
      %v608 = vsel %vm439, %v606, %v607
      %v609 = vrot.slane %v570, 1
      %v610 = vrot.slane %v571, 1
      %v611 = vsel %vm439, %v609, %v610
      %v620 = vadd.f32 %v546, %v590
      %v621 = vadd.f32 %v547, %v593
      %v622 = vadd.f32 %v548, %v596
      %v623 = vadd.f32 %v549, %v599
      %v624 = vadd.f32 %v550, %v602
      %v625 = vadd.f32 %v551, %v605
      %v626 = vadd.f32 %v552, %v608
      %v627 = vadd.f32 %v553, %v611
      %v628 = vld [vmem:[%s2 + $0x10] sm:$0x1]
      %v629 = vperm.slane %v628, 0
      %v630 = vmul.f32 %v297, %v629
      %v631 = vmul.f32 %v298, %v629
      %v632 = vmul.f32 %v299, %v629
      %v633 = vmul.f32 %v300, %v629
      %v634 = vmul.f32 %v301, %v629
      %v635 = vmul.f32 %v302, %v629
      %v636 = vmul.f32 %v303, %v629
      %v637 = vmul.f32 %v304, %v629
      %v638 = vmul.f32 %v305, %v629
      %v639 = vmul.f32 %v306, %v629
      %v640 = vmul.f32 %v307, %v629
      %v641 = vmul.f32 %v308, %v629
      %v642 = vmul.f32 %v309, %v629
      %v643 = vmul.f32 %v310, %v629
      %v644 = vmul.f32 %v311, %v629
      %v645 = vmul.f32 %v312, %v629
      %v662 = vrot.slane %v630, 1
      %v663 = vrot.slane %v631, 1
      %v664 = vsel %vm439, %v662, %v663
      %v665 = vrot.slane %v632, 1
      %v666 = vrot.slane %v633, 1
      %v667 = vsel %vm439, %v665, %v666
      %v668 = vrot.slane %v634, 1
      %v669 = vrot.slane %v635, 1
      %v670 = vsel %vm439, %v668, %v669
      %v671 = vrot.slane %v636, 1
      %v672 = vrot.slane %v637, 1
      %v673 = vsel %vm439, %v671, %v672
      %v674 = vrot.slane %v638, 1
      %v675 = vrot.slane %v639, 1
      %v676 = vsel %vm439, %v674, %v675
      %v677 = vrot.slane %v640, 1
      %v678 = vrot.slane %v641, 1
      %v679 = vsel %vm439, %v677, %v678
      %v680 = vrot.slane %v642, 1
      %v681 = vrot.slane %v643, 1
      %v682 = vsel %vm439, %v680, %v681
      %v683 = vrot.slane %v644, 1
      %v684 = vrot.slane %v645, 1
      %v685 = vsel %vm439, %v683, %v684
      %v694 = vadd.f32 %v620, %v664
      %v695 = vadd.f32 %v621, %v667
      %v696 = vadd.f32 %v622, %v670
      %v697 = vadd.f32 %v623, %v673
      %v698 = vadd.f32 %v624, %v676
      %v699 = vadd.f32 %v625, %v679
      %v700 = vadd.f32 %v626, %v682
      %v701 = vadd.f32 %v627, %v685
      %v702 = vld [vmem:[%s2 + $0x15] sm:$0x1]
      %v703 = vperm.slane %v702, 0
      %v704 = vmul.f32 %v299, %v703
      %v705 = vmul.f32 %v300, %v703
      %v706 = vmul.f32 %v301, %v703
      %v707 = vmul.f32 %v302, %v703
      %v708 = vmul.f32 %v303, %v703
      %v709 = vmul.f32 %v304, %v703
      %v710 = vmul.f32 %v305, %v703
      %v711 = vmul.f32 %v306, %v703
      %v712 = vmul.f32 %v307, %v703
      %v713 = vmul.f32 %v308, %v703
      %v714 = vmul.f32 %v309, %v703
      %v715 = vmul.f32 %v310, %v703
      %v716 = vmul.f32 %v311, %v703
      %v717 = vmul.f32 %v312, %v703
      %v718 = vmul.f32 %v313, %v703
      %v719 = vmul.f32 %v314, %v703
      %v736 = vrot.slane %v704, 1
      %v737 = vrot.slane %v705, 1
      %v738 = vsel %vm439, %v736, %v737
      %v739 = vrot.slane %v706, 1
      %v740 = vrot.slane %v707, 1
      %v741 = vsel %vm439, %v739, %v740
      %v742 = vrot.slane %v708, 1
      %v743 = vrot.slane %v709, 1
      %v744 = vsel %vm439, %v742, %v743
      %v745 = vrot.slane %v710, 1
      %v746 = vrot.slane %v711, 1
      %v747 = vsel %vm439, %v745, %v746
      %v748 = vrot.slane %v712, 1
      %v749 = vrot.slane %v713, 1
      %v750 = vsel %vm439, %v748, %v749
      %v751 = vrot.slane %v714, 1
      %v752 = vrot.slane %v715, 1
      %v753 = vsel %vm439, %v751, %v752
      %v754 = vrot.slane %v716, 1
      %v755 = vrot.slane %v717, 1
      %v756 = vsel %vm439, %v754, %v755
      %v757 = vrot.slane %v718, 1
      %v758 = vrot.slane %v719, 1
      %v759 = vsel %vm439, %v757, %v758
      %v768 = vadd.f32 %v694, %v738
      %v769 = vadd.f32 %v695, %v741
      %v770 = vadd.f32 %v696, %v744
      %v771 = vadd.f32 %v697, %v747
      %v772 = vadd.f32 %v698, %v750
      %v773 = vadd.f32 %v699, %v753
      %v774 = vadd.f32 %v700, %v756
      %v775 = vadd.f32 %v701, %v759
      %v776 = vld [vmem:[%s2 + $0x2] sm:$0x1]
      %v777 = vperm.slane %v776, 0
      %v778 = vmul.f32 %v291, %v777
      %v779 = vmul.f32 %v292, %v777
      %v780 = vmul.f32 %v293, %v777
      %v781 = vmul.f32 %v294, %v777
      %v782 = vmul.f32 %v295, %v777
      %v783 = vmul.f32 %v296, %v777
      %v784 = vmul.f32 %v297, %v777
      %v785 = vmul.f32 %v298, %v777
      %v786 = vmul.f32 %v299, %v777
      %v787 = vmul.f32 %v300, %v777
      %v788 = vmul.f32 %v301, %v777
      %v789 = vmul.f32 %v302, %v777
      %v790 = vmul.f32 %v303, %v777
      %v791 = vmul.f32 %v304, %v777
      %v792 = vmul.f32 %v305, %v777
      %v793 = vmul.f32 %v306, %v777
      %vm810 = vcmask 1045504
      %v811 = vrot.slane %v778, 2
      %v812 = vrot.slane %v779, 2
      %v813 = vsel %vm810, %v811, %v812
      %v814 = vrot.slane %v780, 2
      %v815 = vrot.slane %v781, 2
      %v816 = vsel %vm810, %v814, %v815
      %v817 = vrot.slane %v782, 2
      %v818 = vrot.slane %v783, 2
      %v819 = vsel %vm810, %v817, %v818
      %v820 = vrot.slane %v784, 2
      %v821 = vrot.slane %v785, 2
      %v822 = vsel %vm810, %v820, %v821
      %v823 = vrot.slane %v786, 2
      %v824 = vrot.slane %v787, 2
      %v825 = vsel %vm810, %v823, %v824
      %v826 = vrot.slane %v788, 2
      %v827 = vrot.slane %v789, 2
      %v828 = vsel %vm810, %v826, %v827
      %v829 = vrot.slane %v790, 2
      %v830 = vrot.slane %v791, 2
      %v831 = vsel %vm810, %v829, %v830
      %v832 = vrot.slane %v792, 2
      %v833 = vrot.slane %v793, 2
      %v834 = vsel %vm810, %v832, %v833
      %v843 = vadd.f32 %v768, %v813
      %v844 = vadd.f32 %v769, %v816
      %v845 = vadd.f32 %v770, %v819
      %v846 = vadd.f32 %v771, %v822
      %v847 = vadd.f32 %v772, %v825
      %v848 = vadd.f32 %v773, %v828
      %v849 = vadd.f32 %v774, %v831
      %v850 = vadd.f32 %v775, %v834
      %v851 = vld [vmem:[%s2 + $0x7] sm:$0x1]
      %v852 = vperm.slane %v851, 0
      %v853 = vmul.f32 %v293, %v852
      %v854 = vmul.f32 %v294, %v852
      %v855 = vmul.f32 %v295, %v852
      %v856 = vmul.f32 %v296, %v852
      %v857 = vmul.f32 %v297, %v852
      %v858 = vmul.f32 %v298, %v852
      %v859 = vmul.f32 %v299, %v852
      %v860 = vmul.f32 %v300, %v852
      %v861 = vmul.f32 %v301, %v852
      %v862 = vmul.f32 %v302, %v852
      %v863 = vmul.f32 %v303, %v852
      %v864 = vmul.f32 %v304, %v852
      %v865 = vmul.f32 %v305, %v852
      %v866 = vmul.f32 %v306, %v852
      %v867 = vmul.f32 %v307, %v852
      %v868 = vmul.f32 %v308, %v852
      %v885 = vrot.slane %v853, 2
      %v886 = vrot.slane %v854, 2
      %v887 = vsel %vm810, %v885, %v886
      %v888 = vrot.slane %v855, 2
      %v889 = vrot.slane %v856, 2
      %v890 = vsel %vm810, %v888, %v889
      %v891 = vrot.slane %v857, 2
      %v892 = vrot.slane %v858, 2
      %v893 = vsel %vm810, %v891, %v892
      %v894 = vrot.slane %v859, 2
      %v895 = vrot.slane %v860, 2
      %v896 = vsel %vm810, %v894, %v895
      %v897 = vrot.slane %v861, 2
      %v898 = vrot.slane %v862, 2
      %v899 = vsel %vm810, %v897, %v898
      %v900 = vrot.slane %v863, 2
      %v901 = vrot.slane %v864, 2
      %v902 = vsel %vm810, %v900, %v901
      %v903 = vrot.slane %v865, 2
      %v904 = vrot.slane %v866, 2
      %v905 = vsel %vm810, %v903, %v904
      %v906 = vrot.slane %v867, 2
      %v907 = vrot.slane %v868, 2
      %v908 = vsel %vm810, %v906, %v907
      %v917 = vadd.f32 %v843, %v887
      %v918 = vadd.f32 %v844, %v890
      %v919 = vadd.f32 %v845, %v893
      %v920 = vadd.f32 %v846, %v896
      %v921 = vadd.f32 %v847, %v899
      %v922 = vadd.f32 %v848, %v902
      %v923 = vadd.f32 %v849, %v905
      %v924 = vadd.f32 %v850, %v908
      %v925 = vld [vmem:[%s2 + $0xc] sm:$0x1]
      %v926 = vperm.slane %v925, 0
      %v927 = vmul.f32 %v295, %v926
      %v928 = vmul.f32 %v296, %v926
      %v929 = vmul.f32 %v297, %v926
      %v930 = vmul.f32 %v298, %v926
      %v931 = vmul.f32 %v299, %v926
      %v932 = vmul.f32 %v300, %v926
      %v933 = vmul.f32 %v301, %v926
      %v934 = vmul.f32 %v302, %v926
      %v935 = vmul.f32 %v303, %v926
      %v936 = vmul.f32 %v304, %v926
      %v937 = vmul.f32 %v305, %v926
      %v938 = vmul.f32 %v306, %v926
      %v939 = vmul.f32 %v307, %v926
      %v940 = vmul.f32 %v308, %v926
      %v941 = vmul.f32 %v309, %v926
      %v942 = vmul.f32 %v310, %v926
      %v959 = vrot.slane %v927, 2
      %v960 = vrot.slane %v928, 2
      %v961 = vsel %vm810, %v959, %v960
      %v962 = vrot.slane %v929, 2
      %v963 = vrot.slane %v930, 2
      %v964 = vsel %vm810, %v962, %v963
      %v965 = vrot.slane %v931, 2
      %v966 = vrot.slane %v932, 2
      %v967 = vsel %vm810, %v965, %v966
      %v968 = vrot.slane %v933, 2
      %v969 = vrot.slane %v934, 2
      %v970 = vsel %vm810, %v968, %v969
      %v971 = vrot.slane %v935, 2
      %v972 = vrot.slane %v936, 2
      %v973 = vsel %vm810, %v971, %v972
      %v974 = vrot.slane %v937, 2
      %v975 = vrot.slane %v938, 2
      %v976 = vsel %vm810, %v974, %v975
      %v977 = vrot.slane %v939, 2
      %v978 = vrot.slane %v940, 2
      %v979 = vsel %vm810, %v977, %v978
      %v980 = vrot.slane %v941, 2
      %v981 = vrot.slane %v942, 2
      %v982 = vsel %vm810, %v980, %v981
      %v991 = vadd.f32 %v917, %v961
      %v992 = vadd.f32 %v918, %v964
      %v993 = vadd.f32 %v919, %v967
      %v994 = vadd.f32 %v920, %v970
      %v995 = vadd.f32 %v921, %v973
      %v996 = vadd.f32 %v922, %v976
      %v997 = vadd.f32 %v923, %v979
      %v998 = vadd.f32 %v924, %v982
      %v999 = vld [vmem:[%s2 + $0x11] sm:$0x1]
      %v1000 = vperm.slane %v999, 0
      %v1001 = vmul.f32 %v297, %v1000
      %v1002 = vmul.f32 %v298, %v1000
      %v1003 = vmul.f32 %v299, %v1000
      %v1004 = vmul.f32 %v300, %v1000
      %v1005 = vmul.f32 %v301, %v1000
      %v1006 = vmul.f32 %v302, %v1000
      %v1007 = vmul.f32 %v303, %v1000
      %v1008 = vmul.f32 %v304, %v1000
      %v1009 = vmul.f32 %v305, %v1000
      %v1010 = vmul.f32 %v306, %v1000
      %v1011 = vmul.f32 %v307, %v1000
      %v1012 = vmul.f32 %v308, %v1000
      %v1013 = vmul.f32 %v309, %v1000
      %v1014 = vmul.f32 %v310, %v1000
      %v1015 = vmul.f32 %v311, %v1000
      %v1016 = vmul.f32 %v312, %v1000
      %v1033 = vrot.slane %v1001, 2
      %v1034 = vrot.slane %v1002, 2
      %v1035 = vsel %vm810, %v1033, %v1034
      %v1036 = vrot.slane %v1003, 2
      %v1037 = vrot.slane %v1004, 2
      %v1038 = vsel %vm810, %v1036, %v1037
      %v1039 = vrot.slane %v1005, 2
      %v1040 = vrot.slane %v1006, 2
      %v1041 = vsel %vm810, %v1039, %v1040
      %v1042 = vrot.slane %v1007, 2
      %v1043 = vrot.slane %v1008, 2
      %v1044 = vsel %vm810, %v1042, %v1043
      %v1045 = vrot.slane %v1009, 2
      %v1046 = vrot.slane %v1010, 2
      %v1047 = vsel %vm810, %v1045, %v1046
      %v1048 = vrot.slane %v1011, 2
      %v1049 = vrot.slane %v1012, 2
      %v1050 = vsel %vm810, %v1048, %v1049
      %v1051 = vrot.slane %v1013, 2
      %v1052 = vrot.slane %v1014, 2
      %v1053 = vsel %vm810, %v1051, %v1052
      %v1054 = vrot.slane %v1015, 2
      %v1055 = vrot.slane %v1016, 2
      %v1056 = vsel %vm810, %v1054, %v1055
      %v1065 = vadd.f32 %v991, %v1035
      %v1066 = vadd.f32 %v992, %v1038
      %v1067 = vadd.f32 %v993, %v1041
      %v1068 = vadd.f32 %v994, %v1044
      %v1069 = vadd.f32 %v995, %v1047
      %v1070 = vadd.f32 %v996, %v1050
      %v1071 = vadd.f32 %v997, %v1053
      %v1072 = vadd.f32 %v998, %v1056
      %v1073 = vld [vmem:[%s2 + $0x16] sm:$0x1]
      %v1074 = vperm.slane %v1073, 0
      %v1075 = vmul.f32 %v299, %v1074
      %v1076 = vmul.f32 %v300, %v1074
      %v1077 = vmul.f32 %v301, %v1074
      %v1078 = vmul.f32 %v302, %v1074
      %v1079 = vmul.f32 %v303, %v1074
      %v1080 = vmul.f32 %v304, %v1074
      %v1081 = vmul.f32 %v305, %v1074
      %v1082 = vmul.f32 %v306, %v1074
      %v1083 = vmul.f32 %v307, %v1074
      %v1084 = vmul.f32 %v308, %v1074
      %v1085 = vmul.f32 %v309, %v1074
      %v1086 = vmul.f32 %v310, %v1074
      %v1087 = vmul.f32 %v311, %v1074
      %v1088 = vmul.f32 %v312, %v1074
      %v1089 = vmul.f32 %v313, %v1074
      %v1090 = vmul.f32 %v314, %v1074
      %v1107 = vrot.slane %v1075, 2
      %v1108 = vrot.slane %v1076, 2
      %v1109 = vsel %vm810, %v1107, %v1108
      %v1110 = vrot.slane %v1077, 2
      %v1111 = vrot.slane %v1078, 2
      %v1112 = vsel %vm810, %v1110, %v1111
      %v1113 = vrot.slane %v1079, 2
      %v1114 = vrot.slane %v1080, 2
      %v1115 = vsel %vm810, %v1113, %v1114
      %v1116 = vrot.slane %v1081, 2
      %v1117 = vrot.slane %v1082, 2
      %v1118 = vsel %vm810, %v1116, %v1117
      %v1119 = vrot.slane %v1083, 2
      %v1120 = vrot.slane %v1084, 2
      %v1121 = vsel %vm810, %v1119, %v1120
      %v1122 = vrot.slane %v1085, 2
      %v1123 = vrot.slane %v1086, 2
      %v1124 = vsel %vm810, %v1122, %v1123
      %v1125 = vrot.slane %v1087, 2
      %v1126 = vrot.slane %v1088, 2
      %v1127 = vsel %vm810, %v1125, %v1126
      %v1128 = vrot.slane %v1089, 2
      %v1129 = vrot.slane %v1090, 2
      %v1130 = vsel %vm810, %v1128, %v1129
      %v1139 = vadd.f32 %v1065, %v1109
      %v1140 = vadd.f32 %v1066, %v1112
      %v1141 = vadd.f32 %v1067, %v1115
      %v1142 = vadd.f32 %v1068, %v1118
      %v1143 = vadd.f32 %v1069, %v1121
      %v1144 = vadd.f32 %v1070, %v1124
      %v1145 = vadd.f32 %v1071, %v1127
      %v1146 = vadd.f32 %v1072, %v1130
      %v1147 = vld [vmem:[%s2 + $0x3] sm:$0x1]
      %v1148 = vperm.slane %v1147, 0
      %v1149 = vmul.f32 %v291, %v1148
      %v1150 = vmul.f32 %v292, %v1148
      %v1151 = vmul.f32 %v293, %v1148
      %v1152 = vmul.f32 %v294, %v1148
      %v1153 = vmul.f32 %v295, %v1148
      %v1154 = vmul.f32 %v296, %v1148
      %v1155 = vmul.f32 %v297, %v1148
      %v1156 = vmul.f32 %v298, %v1148
      %v1157 = vmul.f32 %v299, %v1148
      %v1158 = vmul.f32 %v300, %v1148
      %v1159 = vmul.f32 %v301, %v1148
      %v1160 = vmul.f32 %v302, %v1148
      %v1161 = vmul.f32 %v303, %v1148
      %v1162 = vmul.f32 %v304, %v1148
      %v1163 = vmul.f32 %v305, %v1148
      %v1164 = vmul.f32 %v306, %v1148
      %vm1181 = vcmask 1044480
      %v1182 = vrot.slane %v1149, 3
      %v1183 = vrot.slane %v1150, 3
      %v1184 = vsel %vm1181, %v1182, %v1183
      %v1185 = vrot.slane %v1151, 3
      %v1186 = vrot.slane %v1152, 3
      %v1187 = vsel %vm1181, %v1185, %v1186
      %v1188 = vrot.slane %v1153, 3
      %v1189 = vrot.slane %v1154, 3
      %v1190 = vsel %vm1181, %v1188, %v1189
      %v1191 = vrot.slane %v1155, 3
      %v1192 = vrot.slane %v1156, 3
      %v1193 = vsel %vm1181, %v1191, %v1192
      %v1194 = vrot.slane %v1157, 3
      %v1195 = vrot.slane %v1158, 3
      %v1196 = vsel %vm1181, %v1194, %v1195
      %v1197 = vrot.slane %v1159, 3
      %v1198 = vrot.slane %v1160, 3
      %v1199 = vsel %vm1181, %v1197, %v1198
      %v1200 = vrot.slane %v1161, 3
      %v1201 = vrot.slane %v1162, 3
      %v1202 = vsel %vm1181, %v1200, %v1201
      %v1203 = vrot.slane %v1163, 3
      %v1204 = vrot.slane %v1164, 3
      %v1205 = vsel %vm1181, %v1203, %v1204
      %v1214 = vadd.f32 %v1139, %v1184
      %v1215 = vadd.f32 %v1140, %v1187
      %v1216 = vadd.f32 %v1141, %v1190
      %v1217 = vadd.f32 %v1142, %v1193
      %v1218 = vadd.f32 %v1143, %v1196
      %v1219 = vadd.f32 %v1144, %v1199
      %v1220 = vadd.f32 %v1145, %v1202
      %v1221 = vadd.f32 %v1146, %v1205
      %v1222 = vld [vmem:[%s2 + $0x8] sm:$0x1]
      %v1223 = vperm.slane %v1222, 0
      %v1224 = vmul.f32 %v293, %v1223
      %v1225 = vmul.f32 %v294, %v1223
      %v1226 = vmul.f32 %v295, %v1223
      %v1227 = vmul.f32 %v296, %v1223
      %v1228 = vmul.f32 %v297, %v1223
      %v1229 = vmul.f32 %v298, %v1223
      %v1230 = vmul.f32 %v299, %v1223
      %v1231 = vmul.f32 %v300, %v1223
      %v1232 = vmul.f32 %v301, %v1223
      %v1233 = vmul.f32 %v302, %v1223
      %v1234 = vmul.f32 %v303, %v1223
      %v1235 = vmul.f32 %v304, %v1223
      %v1236 = vmul.f32 %v305, %v1223
      %v1237 = vmul.f32 %v306, %v1223
      %v1238 = vmul.f32 %v307, %v1223
      %v1239 = vmul.f32 %v308, %v1223
      %v1256 = vrot.slane %v1224, 3
      %v1257 = vrot.slane %v1225, 3
      %v1258 = vsel %vm1181, %v1256, %v1257
      %v1259 = vrot.slane %v1226, 3
      %v1260 = vrot.slane %v1227, 3
      %v1261 = vsel %vm1181, %v1259, %v1260
      %v1262 = vrot.slane %v1228, 3
      %v1263 = vrot.slane %v1229, 3
      %v1264 = vsel %vm1181, %v1262, %v1263
      %v1265 = vrot.slane %v1230, 3
      %v1266 = vrot.slane %v1231, 3
      %v1267 = vsel %vm1181, %v1265, %v1266
      %v1268 = vrot.slane %v1232, 3
      %v1269 = vrot.slane %v1233, 3
      %v1270 = vsel %vm1181, %v1268, %v1269
      %v1271 = vrot.slane %v1234, 3
      %v1272 = vrot.slane %v1235, 3
      %v1273 = vsel %vm1181, %v1271, %v1272
      %v1274 = vrot.slane %v1236, 3
      %v1275 = vrot.slane %v1237, 3
      %v1276 = vsel %vm1181, %v1274, %v1275
      %v1277 = vrot.slane %v1238, 3
      %v1278 = vrot.slane %v1239, 3
      %v1279 = vsel %vm1181, %v1277, %v1278
      %v1288 = vadd.f32 %v1214, %v1258
      %v1289 = vadd.f32 %v1215, %v1261
      %v1290 = vadd.f32 %v1216, %v1264
      %v1291 = vadd.f32 %v1217, %v1267
      %v1292 = vadd.f32 %v1218, %v1270
      %v1293 = vadd.f32 %v1219, %v1273
      %v1294 = vadd.f32 %v1220, %v1276
      %v1295 = vadd.f32 %v1221, %v1279
      %v1296 = vld [vmem:[%s2 + $0xd] sm:$0x1]
      %v1297 = vperm.slane %v1296, 0
      %v1298 = vmul.f32 %v295, %v1297
      %v1299 = vmul.f32 %v296, %v1297
      %v1300 = vmul.f32 %v297, %v1297
      %v1301 = vmul.f32 %v298, %v1297
      %v1302 = vmul.f32 %v299, %v1297
      %v1303 = vmul.f32 %v300, %v1297
      %v1304 = vmul.f32 %v301, %v1297
      %v1305 = vmul.f32 %v302, %v1297
      %v1306 = vmul.f32 %v303, %v1297
      %v1307 = vmul.f32 %v304, %v1297
      %v1308 = vmul.f32 %v305, %v1297
      %v1309 = vmul.f32 %v306, %v1297
      %v1310 = vmul.f32 %v307, %v1297
      %v1311 = vmul.f32 %v308, %v1297
      %v1312 = vmul.f32 %v309, %v1297
      %v1313 = vmul.f32 %v310, %v1297
      %v1330 = vrot.slane %v1298, 3
      %v1331 = vrot.slane %v1299, 3
      %v1332 = vsel %vm1181, %v1330, %v1331
      %v1333 = vrot.slane %v1300, 3
      %v1334 = vrot.slane %v1301, 3
      %v1335 = vsel %vm1181, %v1333, %v1334
      %v1336 = vrot.slane %v1302, 3
      %v1337 = vrot.slane %v1303, 3
      %v1338 = vsel %vm1181, %v1336, %v1337
      %v1339 = vrot.slane %v1304, 3
      %v1340 = vrot.slane %v1305, 3
      %v1341 = vsel %vm1181, %v1339, %v1340
      %v1342 = vrot.slane %v1306, 3
      %v1343 = vrot.slane %v1307, 3
      %v1344 = vsel %vm1181, %v1342, %v1343
      %v1345 = vrot.slane %v1308, 3
      %v1346 = vrot.slane %v1309, 3
      %v1347 = vsel %vm1181, %v1345, %v1346
      %v1348 = vrot.slane %v1310, 3
      %v1349 = vrot.slane %v1311, 3
      %v1350 = vsel %vm1181, %v1348, %v1349
      %v1351 = vrot.slane %v1312, 3
      %v1352 = vrot.slane %v1313, 3
      %v1353 = vsel %vm1181, %v1351, %v1352
      %v1362 = vadd.f32 %v1288, %v1332
      %v1363 = vadd.f32 %v1289, %v1335
      %v1364 = vadd.f32 %v1290, %v1338
      %v1365 = vadd.f32 %v1291, %v1341
      %v1366 = vadd.f32 %v1292, %v1344
      %v1367 = vadd.f32 %v1293, %v1347
      %v1368 = vadd.f32 %v1294, %v1350
      %v1369 = vadd.f32 %v1295, %v1353
      %v1370 = vld [vmem:[%s2 + $0x12] sm:$0x1]
      %v1371 = vperm.slane %v1370, 0
      %v1372 = vmul.f32 %v297, %v1371
      %v1373 = vmul.f32 %v298, %v1371
      %v1374 = vmul.f32 %v299, %v1371
      %v1375 = vmul.f32 %v300, %v1371
      %v1376 = vmul.f32 %v301, %v1371
      %v1377 = vmul.f32 %v302, %v1371
      %v1378 = vmul.f32 %v303, %v1371
      %v1379 = vmul.f32 %v304, %v1371
      %v1380 = vmul.f32 %v305, %v1371
      %v1381 = vmul.f32 %v306, %v1371
      %v1382 = vmul.f32 %v307, %v1371
      %v1383 = vmul.f32 %v308, %v1371
      %v1384 = vmul.f32 %v309, %v1371
      %v1385 = vmul.f32 %v310, %v1371
      %v1386 = vmul.f32 %v311, %v1371
      %v1387 = vmul.f32 %v312, %v1371
      %v1404 = vrot.slane %v1372, 3
      %v1405 = vrot.slane %v1373, 3
      %v1406 = vsel %vm1181, %v1404, %v1405
      %v1407 = vrot.slane %v1374, 3
      %v1408 = vrot.slane %v1375, 3
      %v1409 = vsel %vm1181, %v1407, %v1408
      %v1410 = vrot.slane %v1376, 3
      %v1411 = vrot.slane %v1377, 3
      %v1412 = vsel %vm1181, %v1410, %v1411
      %v1413 = vrot.slane %v1378, 3
      %v1414 = vrot.slane %v1379, 3
      %v1415 = vsel %vm1181, %v1413, %v1414
      %v1416 = vrot.slane %v1380, 3
      %v1417 = vrot.slane %v1381, 3
      %v1418 = vsel %vm1181, %v1416, %v1417
      %v1419 = vrot.slane %v1382, 3
      %v1420 = vrot.slane %v1383, 3
      %v1421 = vsel %vm1181, %v1419, %v1420
      %v1422 = vrot.slane %v1384, 3
      %v1423 = vrot.slane %v1385, 3
      %v1424 = vsel %vm1181, %v1422, %v1423
      %v1425 = vrot.slane %v1386, 3
      %v1426 = vrot.slane %v1387, 3
      %v1427 = vsel %vm1181, %v1425, %v1426
      %v1436 = vadd.f32 %v1362, %v1406
      %v1437 = vadd.f32 %v1363, %v1409
      %v1438 = vadd.f32 %v1364, %v1412
      %v1439 = vadd.f32 %v1365, %v1415
      %v1440 = vadd.f32 %v1366, %v1418
      %v1441 = vadd.f32 %v1367, %v1421
      %v1442 = vadd.f32 %v1368, %v1424
      %v1443 = vadd.f32 %v1369, %v1427
      %v1444 = vld [vmem:[%s2 + $0x17] sm:$0x1]
      %v1445 = vperm.slane %v1444, 0
      %v1446 = vmul.f32 %v299, %v1445
      %v1447 = vmul.f32 %v300, %v1445
      %v1448 = vmul.f32 %v301, %v1445
      %v1449 = vmul.f32 %v302, %v1445
      %v1450 = vmul.f32 %v303, %v1445
      %v1451 = vmul.f32 %v304, %v1445
      %v1452 = vmul.f32 %v305, %v1445
      %v1453 = vmul.f32 %v306, %v1445
      %v1454 = vmul.f32 %v307, %v1445
      %v1455 = vmul.f32 %v308, %v1445
      %v1456 = vmul.f32 %v309, %v1445
      %v1457 = vmul.f32 %v310, %v1445
      %v1458 = vmul.f32 %v311, %v1445
      %v1459 = vmul.f32 %v312, %v1445
      %v1460 = vmul.f32 %v313, %v1445
      %v1461 = vmul.f32 %v314, %v1445
      %v1478 = vrot.slane %v1446, 3
      %v1479 = vrot.slane %v1447, 3
      %v1480 = vsel %vm1181, %v1478, %v1479
      %v1481 = vrot.slane %v1448, 3
      %v1482 = vrot.slane %v1449, 3
      %v1483 = vsel %vm1181, %v1481, %v1482
      %v1484 = vrot.slane %v1450, 3
      %v1485 = vrot.slane %v1451, 3
      %v1486 = vsel %vm1181, %v1484, %v1485
      %v1487 = vrot.slane %v1452, 3
      %v1488 = vrot.slane %v1453, 3
      %v1489 = vsel %vm1181, %v1487, %v1488
      %v1490 = vrot.slane %v1454, 3
      %v1491 = vrot.slane %v1455, 3
      %v1492 = vsel %vm1181, %v1490, %v1491
      %v1493 = vrot.slane %v1456, 3
      %v1494 = vrot.slane %v1457, 3
      %v1495 = vsel %vm1181, %v1493, %v1494
      %v1496 = vrot.slane %v1458, 3
      %v1497 = vrot.slane %v1459, 3
      %v1498 = vsel %vm1181, %v1496, %v1497
      %v1499 = vrot.slane %v1460, 3
      %v1500 = vrot.slane %v1461, 3
      %v1501 = vsel %vm1181, %v1499, %v1500
      %v1510 = vadd.f32 %v1436, %v1480
      %v1511 = vadd.f32 %v1437, %v1483
      %v1512 = vadd.f32 %v1438, %v1486
      %v1513 = vadd.f32 %v1439, %v1489
      %v1514 = vadd.f32 %v1440, %v1492
      %v1515 = vadd.f32 %v1441, %v1495
      %v1516 = vadd.f32 %v1442, %v1498
      %v1517 = vadd.f32 %v1443, %v1501
      %v1518 = vld [vmem:[%s2 + $0x4] sm:$0x1]
      %v1519 = vperm.slane %v1518, 0
      %v1520 = vmul.f32 %v291, %v1519
      %v1521 = vmul.f32 %v292, %v1519
      %v1522 = vmul.f32 %v293, %v1519
      %v1523 = vmul.f32 %v294, %v1519
      %v1524 = vmul.f32 %v295, %v1519
      %v1525 = vmul.f32 %v296, %v1519
      %v1526 = vmul.f32 %v297, %v1519
      %v1527 = vmul.f32 %v298, %v1519
      %v1528 = vmul.f32 %v299, %v1519
      %v1529 = vmul.f32 %v300, %v1519
      %v1530 = vmul.f32 %v301, %v1519
      %v1531 = vmul.f32 %v302, %v1519
      %v1532 = vmul.f32 %v303, %v1519
      %v1533 = vmul.f32 %v304, %v1519
      %v1534 = vmul.f32 %v305, %v1519
      %v1535 = vmul.f32 %v306, %v1519
      %vm1552 = vcmask 1043456
      %v1553 = vrot.slane %v1520, 4
      %v1554 = vrot.slane %v1521, 4
      %v1555 = vsel %vm1552, %v1553, %v1554
      %v1556 = vrot.slane %v1522, 4
      %v1557 = vrot.slane %v1523, 4
      %v1558 = vsel %vm1552, %v1556, %v1557
      %v1559 = vrot.slane %v1524, 4
      %v1560 = vrot.slane %v1525, 4
      %v1561 = vsel %vm1552, %v1559, %v1560
      %v1562 = vrot.slane %v1526, 4
      %v1563 = vrot.slane %v1527, 4
      %v1564 = vsel %vm1552, %v1562, %v1563
      %v1565 = vrot.slane %v1528, 4
      %v1566 = vrot.slane %v1529, 4
      %v1567 = vsel %vm1552, %v1565, %v1566
      %v1568 = vrot.slane %v1530, 4
      %v1569 = vrot.slane %v1531, 4
      %v1570 = vsel %vm1552, %v1568, %v1569
      %v1571 = vrot.slane %v1532, 4
      %v1572 = vrot.slane %v1533, 4
      %v1573 = vsel %vm1552, %v1571, %v1572
      %v1574 = vrot.slane %v1534, 4
      %v1575 = vrot.slane %v1535, 4
      %v1576 = vsel %vm1552, %v1574, %v1575
      %v1585 = vadd.f32 %v1510, %v1555
      %v1586 = vadd.f32 %v1511, %v1558
      %v1587 = vadd.f32 %v1512, %v1561
      %v1588 = vadd.f32 %v1513, %v1564
      %v1589 = vadd.f32 %v1514, %v1567
      %v1590 = vadd.f32 %v1515, %v1570
      %v1591 = vadd.f32 %v1516, %v1573
      %v1592 = vadd.f32 %v1517, %v1576
      %v1593 = vld [vmem:[%s2 + $0x9] sm:$0x1]
      %v1594 = vperm.slane %v1593, 0
      %v1595 = vmul.f32 %v293, %v1594
      %v1596 = vmul.f32 %v294, %v1594
      %v1597 = vmul.f32 %v295, %v1594
      %v1598 = vmul.f32 %v296, %v1594
      %v1599 = vmul.f32 %v297, %v1594
      %v1600 = vmul.f32 %v298, %v1594
      %v1601 = vmul.f32 %v299, %v1594
      %v1602 = vmul.f32 %v300, %v1594
      %v1603 = vmul.f32 %v301, %v1594
      %v1604 = vmul.f32 %v302, %v1594
      %v1605 = vmul.f32 %v303, %v1594
      %v1606 = vmul.f32 %v304, %v1594
      %v1607 = vmul.f32 %v305, %v1594
      %v1608 = vmul.f32 %v306, %v1594
      %v1609 = vmul.f32 %v307, %v1594
      %v1610 = vmul.f32 %v308, %v1594
      %v1627 = vrot.slane %v1595, 4
      %v1628 = vrot.slane %v1596, 4
      %v1629 = vsel %vm1552, %v1627, %v1628
      %v1630 = vrot.slane %v1597, 4
      %v1631 = vrot.slane %v1598, 4
      %v1632 = vsel %vm1552, %v1630, %v1631
      %v1633 = vrot.slane %v1599, 4
      %v1634 = vrot.slane %v1600, 4
      %v1635 = vsel %vm1552, %v1633, %v1634
      %v1636 = vrot.slane %v1601, 4
      %v1637 = vrot.slane %v1602, 4
      %v1638 = vsel %vm1552, %v1636, %v1637
      %v1639 = vrot.slane %v1603, 4
      %v1640 = vrot.slane %v1604, 4
      %v1641 = vsel %vm1552, %v1639, %v1640
      %v1642 = vrot.slane %v1605, 4
      %v1643 = vrot.slane %v1606, 4
      %v1644 = vsel %vm1552, %v1642, %v1643
      %v1645 = vrot.slane %v1607, 4
      %v1646 = vrot.slane %v1608, 4
      %v1647 = vsel %vm1552, %v1645, %v1646
      %v1648 = vrot.slane %v1609, 4
      %v1649 = vrot.slane %v1610, 4
      %v1650 = vsel %vm1552, %v1648, %v1649
      %v1659 = vadd.f32 %v1585, %v1629
      %v1660 = vadd.f32 %v1586, %v1632
      %v1661 = vadd.f32 %v1587, %v1635
      %v1662 = vadd.f32 %v1588, %v1638
      %v1663 = vadd.f32 %v1589, %v1641
      %v1664 = vadd.f32 %v1590, %v1644
      %v1665 = vadd.f32 %v1591, %v1647
      %v1666 = vadd.f32 %v1592, %v1650
      %v1667 = vld [vmem:[%s2 + $0xe] sm:$0x1]
      %v1668 = vperm.slane %v1667, 0
      %v1669 = vmul.f32 %v295, %v1668
      %v1670 = vmul.f32 %v296, %v1668
      %v1671 = vmul.f32 %v297, %v1668
      %v1672 = vmul.f32 %v298, %v1668
      %v1673 = vmul.f32 %v299, %v1668
      %v1674 = vmul.f32 %v300, %v1668
      %v1675 = vmul.f32 %v301, %v1668
      %v1676 = vmul.f32 %v302, %v1668
      %v1677 = vmul.f32 %v303, %v1668
      %v1678 = vmul.f32 %v304, %v1668
      %v1679 = vmul.f32 %v305, %v1668
      %v1680 = vmul.f32 %v306, %v1668
      %v1681 = vmul.f32 %v307, %v1668
      %v1682 = vmul.f32 %v308, %v1668
      %v1683 = vmul.f32 %v309, %v1668
      %v1684 = vmul.f32 %v310, %v1668
      %v1701 = vrot.slane %v1669, 4
      %v1702 = vrot.slane %v1670, 4
      %v1703 = vsel %vm1552, %v1701, %v1702
      %v1704 = vrot.slane %v1671, 4
      %v1705 = vrot.slane %v1672, 4
      %v1706 = vsel %vm1552, %v1704, %v1705
      %v1707 = vrot.slane %v1673, 4
      %v1708 = vrot.slane %v1674, 4
      %v1709 = vsel %vm1552, %v1707, %v1708
      %v1710 = vrot.slane %v1675, 4
      %v1711 = vrot.slane %v1676, 4
      %v1712 = vsel %vm1552, %v1710, %v1711
      %v1713 = vrot.slane %v1677, 4
      %v1714 = vrot.slane %v1678, 4
      %v1715 = vsel %vm1552, %v1713, %v1714
      %v1716 = vrot.slane %v1679, 4
      %v1717 = vrot.slane %v1680, 4
      %v1718 = vsel %vm1552, %v1716, %v1717
      %v1719 = vrot.slane %v1681, 4
      %v1720 = vrot.slane %v1682, 4
      %v1721 = vsel %vm1552, %v1719, %v1720
      %v1722 = vrot.slane %v1683, 4
      %v1723 = vrot.slane %v1684, 4
      %v1724 = vsel %vm1552, %v1722, %v1723
      %v1733 = vadd.f32 %v1659, %v1703
      %v1734 = vadd.f32 %v1660, %v1706
      %v1735 = vadd.f32 %v1661, %v1709
      %v1736 = vadd.f32 %v1662, %v1712
      %v1737 = vadd.f32 %v1663, %v1715
      %v1738 = vadd.f32 %v1664, %v1718
      %v1739 = vadd.f32 %v1665, %v1721
      %v1740 = vadd.f32 %v1666, %v1724
      %v1741 = vld [vmem:[%s2 + $0x13] sm:$0x1]
      %v1742 = vperm.slane %v1741, 0
      %v1743 = vmul.f32 %v297, %v1742
      %v1744 = vmul.f32 %v298, %v1742
      %v1745 = vmul.f32 %v299, %v1742
      %v1746 = vmul.f32 %v300, %v1742
      %v1747 = vmul.f32 %v301, %v1742
      %v1748 = vmul.f32 %v302, %v1742
      %v1749 = vmul.f32 %v303, %v1742
      %v1750 = vmul.f32 %v304, %v1742
      %v1751 = vmul.f32 %v305, %v1742
      %v1752 = vmul.f32 %v306, %v1742
      %v1753 = vmul.f32 %v307, %v1742
      %v1754 = vmul.f32 %v308, %v1742
      %v1755 = vmul.f32 %v309, %v1742
      %v1756 = vmul.f32 %v310, %v1742
      %v1757 = vmul.f32 %v311, %v1742
      %v1758 = vmul.f32 %v312, %v1742
      %v1775 = vrot.slane %v1743, 4
      %v1776 = vrot.slane %v1744, 4
      %v1777 = vsel %vm1552, %v1775, %v1776
      %v1778 = vrot.slane %v1745, 4
      %v1779 = vrot.slane %v1746, 4
      %v1780 = vsel %vm1552, %v1778, %v1779
      %v1781 = vrot.slane %v1747, 4
      %v1782 = vrot.slane %v1748, 4
      %v1783 = vsel %vm1552, %v1781, %v1782
      %v1784 = vrot.slane %v1749, 4
      %v1785 = vrot.slane %v1750, 4
      %v1786 = vsel %vm1552, %v1784, %v1785
      %v1787 = vrot.slane %v1751, 4
      %v1788 = vrot.slane %v1752, 4
      %v1789 = vsel %vm1552, %v1787, %v1788
      %v1790 = vrot.slane %v1753, 4
      %v1791 = vrot.slane %v1754, 4
      %v1792 = vsel %vm1552, %v1790, %v1791
      %v1793 = vrot.slane %v1755, 4
      %v1794 = vrot.slane %v1756, 4
      %v1795 = vsel %vm1552, %v1793, %v1794
      %v1796 = vrot.slane %v1757, 4
      %v1797 = vrot.slane %v1758, 4
      %v1798 = vsel %vm1552, %v1796, %v1797
      %v1807 = vadd.f32 %v1733, %v1777
      %v1808 = vadd.f32 %v1734, %v1780
      %v1809 = vadd.f32 %v1735, %v1783
      %v1810 = vadd.f32 %v1736, %v1786
      %v1811 = vadd.f32 %v1737, %v1789
      %v1812 = vadd.f32 %v1738, %v1792
      %v1813 = vadd.f32 %v1739, %v1795
      %v1814 = vadd.f32 %v1740, %v1798
      %v1815 = vld [vmem:[%s2 + $0x18] sm:$0x1]
      %v1816 = vperm.slane %v1815, 0
      %v1817 = vmul.f32 %v299, %v1816
      %v1818 = vmul.f32 %v300, %v1816
      %v1819 = vmul.f32 %v301, %v1816
      %v1820 = vmul.f32 %v302, %v1816
      %v1821 = vmul.f32 %v303, %v1816
      %v1822 = vmul.f32 %v304, %v1816
      %v1823 = vmul.f32 %v305, %v1816
      %v1824 = vmul.f32 %v306, %v1816
      %v1825 = vmul.f32 %v307, %v1816
      %v1826 = vmul.f32 %v308, %v1816
      %v1827 = vmul.f32 %v309, %v1816
      %v1828 = vmul.f32 %v310, %v1816
      %v1829 = vmul.f32 %v311, %v1816
      %v1830 = vmul.f32 %v312, %v1816
      %v1831 = vmul.f32 %v313, %v1816
      %v1832 = vmul.f32 %v314, %v1816
      %v1849 = vrot.slane %v1817, 4
      %v1850 = vrot.slane %v1818, 4
      %v1851 = vsel %vm1552, %v1849, %v1850
      %v1852 = vrot.slane %v1819, 4
      %v1853 = vrot.slane %v1820, 4
      %v1854 = vsel %vm1552, %v1852, %v1853
      %v1855 = vrot.slane %v1821, 4
      %v1856 = vrot.slane %v1822, 4
      %v1857 = vsel %vm1552, %v1855, %v1856
      %v1858 = vrot.slane %v1823, 4
      %v1859 = vrot.slane %v1824, 4
      %v1860 = vsel %vm1552, %v1858, %v1859
      %v1861 = vrot.slane %v1825, 4
      %v1862 = vrot.slane %v1826, 4
      %v1863 = vsel %vm1552, %v1861, %v1862
      %v1864 = vrot.slane %v1827, 4
      %v1865 = vrot.slane %v1828, 4
      %v1866 = vsel %vm1552, %v1864, %v1865
      %v1867 = vrot.slane %v1829, 4
      %v1868 = vrot.slane %v1830, 4
      %v1869 = vsel %vm1552, %v1867, %v1868
      %v1870 = vrot.slane %v1831, 4
      %v1871 = vrot.slane %v1832, 4
      %v1872 = vsel %vm1552, %v1870, %v1871
      %v1881 = vadd.f32 %v1807, %v1851
      %v1882 = vadd.f32 %v1808, %v1854
      %v1883 = vadd.f32 %v1809, %v1857
      %v1884 = vadd.f32 %v1810, %v1860
      %v1885 = vadd.f32 %v1811, %v1863
      %v1886 = vadd.f32 %v1812, %v1866
      %v1887 = vadd.f32 %v1813, %v1869
      %v1888 = vadd.f32 %v1814, %v1872
      %v1889 = vpack.c.bf16 %v1882, %v1881
      %v1890 = vpack.c.bf16 %v1884, %v1883
      %v1891 = vpack.c.bf16 %v1886, %v1885
      %v1892 = vpack.c.bf16 %v1888, %v1887
      %v1893 = vld [vmem:[%s3] sm:$0xf]
      %v1894 = vld [vmem:[%s3 + $0x4] sm:$0xf]
      %v1895 = vld [vmem:[%s3 + $0x8] sm:$0xf]
      %v1896 = vld [vmem:[%s3 + $0xc] sm:$0xf]
      %v1897 = vld [vmem:[%s3 + $0x10] sm:$0xf]
      %v1898 = vld [vmem:[%s3 + $0x14] sm:$0xf]
      %v1899 = vld [vmem:[%s3 + $0x18] sm:$0xf]
      %v1900 = vld [vmem:[%s3 + $0x1c] sm:$0xf]
      %v1909 = vunpack.c.l.b16 %v1893
      %v1910 = vunpack.c.l.b16 %v1894
      %v1911 = vunpack.c.l.b16 %v1895
      %v1912 = vunpack.c.l.b16 %v1896
      %v1913 = vunpack.c.l.b16 %v1897
      %v1914 = vunpack.c.l.b16 %v1898
      %v1915 = vunpack.c.l.b16 %v1899
      %v1916 = vunpack.c.l.b16 %v1900
      %v1917 = vpack.c.b16 %v1910, %v1909
      %v1918 = vpack.c.b16 %v1912, %v1911
      %v1919 = vpack.c.b16 %v1914, %v1913
      %v1920 = vpack.c.b16 %v1916, %v1915
      %vm1925 = vcmask 523264
      %v1927 = vsel %vm1925, %v1889, 0
      %v1930 = vsel %vm1925, %v1890, 0
      %v1933 = vsel %vm1925, %v1891, 0
      %v1936 = vsel %vm1925, %v1892, 0
      %1938 = vmatpush.bf16.msra.mxu0 0
      %1939 = vmatpush.bf16.msra.mxu0 0
      %1940 = vmatpush.bf16.msra.mxu0 0
      %1941 = vmatpush.bf16.msra.mxu0 0
      %1942 = vmatpush.bf16.msra.mxu0 %v1920
      %1943 = vmatpush.bf16.msra.mxu0 %v1919
      %1944 = vmatpush.bf16.msra.mxu0 %v1918
      %1945 = vmatpush.bf16.msra.mxu0 %v1917
      %1946 = vmatmul.bf16.gmra.mxu0 %v1927
      %v1947 = vpop.f32.mrf.mxu0
      %v1948 = vadd.f32 0.0, %v1947
      %v1949 = vpop.f32.mrf.mxu0
      %v1950 = vadd.f32 0.0, %v1949
      %1951 = vmatmul.bf16.gmra.mxu0 %v1930
      %v1952 = vpop.f32.mrf.mxu0
      %v1953 = vadd.f32 0.0, %v1952
      %v1954 = vpop.f32.mrf.mxu0
      %v1955 = vadd.f32 0.0, %v1954
      %1956 = vmatmul.bf16.gmra.mxu0 %v1933
      %v1957 = vpop.f32.mrf.mxu0
      %v1958 = vadd.f32 0.0, %v1957
      %v1959 = vpop.f32.mrf.mxu0
      %v1960 = vadd.f32 0.0, %v1959
      %1961 = vmatmul.bf16.gmra.mxu0 %v1936
      %v1962 = vpop.f32.mrf.mxu0
      %v1963 = vadd.f32 0.0, %v1962
      %v1964 = vpop.f32.mrf.mxu0
      %v1965 = vadd.f32 0.0, %v1964
      %1966 = vdwg.mxu0
      %v1967 = vld [vmem:[%s260] sm:$0x1]
      %v1968 = vld [vmem:[%s4] sm:$0xf]
      %v1969 = vld [vmem:[%s4 + $0x4] sm:$0xf]
      %v1970 = vld [vmem:[%s4 + $0x8] sm:$0xf]
      %v1971 = vld [vmem:[%s4 + $0xc] sm:$0xf]
      %v1972 = vld [vmem:[%s4 + $0x10] sm:$0xf]
      %v1973 = vld [vmem:[%s4 + $0x14] sm:$0xf]
      %v1974 = vld [vmem:[%s4 + $0x18] sm:$0xf]
      %v1975 = vld [vmem:[%s4 + $0x1c] sm:$0xf]
      %v1976 = vld [vmem:[%s5] sm:$0x1]
      %v1985 = vunpack.c.l.b16 %v1968
      %v1986 = vunpack.c.l.b16 %v1969
      %v1987 = vunpack.c.l.b16 %v1970
      %v1988 = vunpack.c.l.b16 %v1971
      %v1989 = vunpack.c.l.b16 %v1972
      %v1990 = vunpack.c.l.b16 %v1973
      %v1991 = vunpack.c.l.b16 %v1974
      %v1992 = vunpack.c.l.b16 %v1975
      %v1993 = vpack.c.b16 %v1986, %v1985
      %v1994 = vpack.c.b16 %v1988, %v1987
      %v1995 = vpack.c.b16 %v1990, %v1989
      %v1996 = vpack.c.b16 %v1992, %v1991
      %v2002 = vsel %vm1925, %v1967, 0
      %2004 = vmatpush.bf16.msra.mxu0 0
      %2005 = vmatpush.bf16.msra.mxu0 0
      %2006 = vmatpush.bf16.msra.mxu0 0
      %2007 = vmatpush.bf16.msra.mxu0 0
      %2008 = vmatpush.bf16.msra.mxu0 %v1996
      %2009 = vmatpush.bf16.msra.mxu0 %v1995
      %2010 = vmatpush.bf16.msra.mxu0 %v1994
      %2011 = vmatpush.bf16.msra.mxu0 %v1993
      %2012 = vmatmul.bf16.gmra.mxu0 %v2002
      %v2013 = vpop.f32.mrf.mxu0
      %v2014 = vadd.f32 %v1976, %v2013
      %v2015 = vpop.f32.mrf.mxu0
      %2016 = vdwg.mxu0
      %vm2025 = vcmask 1040384
      %v2026 = vrot.slane %v1948, 7
      %v2027 = vrot.slane %v1950, 7
      %v2028 = vsel %vm2025, %v2026, %v2027
      %v2029 = vrot.slane %v1953, 7
      %v2030 = vsel %vm2025, %v2027, %v2029
      %v2031 = vrot.slane %v1955, 7
      %v2032 = vsel %vm2025, %v2029, %v2031
      %v2033 = vrot.slane %v1958, 7
      %v2034 = vsel %vm2025, %v2031, %v2033
      %v2035 = vrot.slane %v1960, 7
      %v2036 = vsel %vm2025, %v2033, %v2035
      %v2037 = vrot.slane %v1963, 7
      %v2038 = vsel %vm2025, %v2035, %v2037
      %v2039 = vrot.slane %v1965, 7
      %v2040 = vsel %vm2025, %v2037, %v2039
      %v2050 = vsel %vm2025, %v2014, %v2026
      %v2051 = vpack.c.bf16 %v2050, %v2050
      %v2052 = vpack.c.bf16 %v2028, %v2028
      %v2053 = vpack.c.bf16 %v2030, %v2030
      %v2054 = vpack.c.bf16 %v2032, %v2032
      %v2055 = vpack.c.bf16 %v2034, %v2034
      %v2056 = vpack.c.bf16 %v2036, %v2036
      %v2057 = vpack.c.bf16 %v2038, %v2038
      %v2058 = vpack.c.bf16 %v2040, %v2040
      %v2059 = vpack.c.bf16 %v2039, %v2039
      %2060 = vst [vmem:[%s265] sm:$0xf] %v2051
      %2061 = vst [vmem:[%s265 + $0x4] sm:$0xf] %v2052
      %2062 = vst [vmem:[%s265 + $0x8] sm:$0xf] %v2053
      %2063 = vst [vmem:[%s265 + $0xc] sm:$0xf] %v2054
      %2064 = vst [vmem:[%s265 + $0x10] sm:$0xf] %v2055
      %2065 = vst [vmem:[%s265 + $0x14] sm:$0xf] %v2056
      %2066 = vst [vmem:[%s265 + $0x18] sm:$0xf] %v2057
      %2067 = vst [vmem:[%s265 + $0x1c] sm:$0xf] %v2058
      %vm2068 = vcmask 1040384
      %vm2069 = vsmask.f32 256
      %vm2070 = vmand %vm2068, %vm2069
      %v2071 = vld [vmem:[%s265 + $0x20] sm:$0x1]
      %v2072 = vsel %vm2070, %v2059, %v2071
      %2073 = vst [vmem:[%s265 + $0x20] sm:$0x1] %v2072
      %p2074 = scmp.lt.s32.totalorder %s17, 1
      %s2075 = scalar_select %p2074, %s17, 1
      %s2076 = smul.addr %s2075, 9
      %s2077 = smul.addr %s2076, 4
      %s2078 = scalar_lea.vmem %s6, %s2077
      // Predicated region
      $region45: #{attention_forward.3} parent=43 // pred_check
        %p2079 = pneg %p171
      $region46: #{attention_forward.3} parent=43 // pred_check_branch
        %2081 = sbr.rel (%p2079) target = $region48
      $region47: #{attention_forward.3} parent=43 // pred_region
        _
      $region48: #{attention_forward.3} parent=43 // pred_fallthru
        _
    $region44: #{attention_forward.3} parent=5 // pred_fallthru
      _
    %p2082 = scmp.le.s32.totalorder 2, %s12
    // Predicated region
    $region49: #{attention_forward.3} parent=5 // pred_check
      %p2083 = pneg %p2082
    $region50: #{attention_forward.3} parent=5 // pred_check_branch
      %2085 = sbr.rel (%p2083) target = $region52
    $region51: #{attention_forward.3} parent=5 // pred_region
      %s2086 = ssub.s32 %s12, 2
      // Predicated region
      $region53: #{attention_forward.3} parent=51 // pred_check
        %p2087 = pneg %p177
      $region54: #{attention_forward.3} parent=51 // pred_check_branch
        %2089 = sbr.rel (%p2087) target = $region56
      $region55: #{attention_forward.3} parent=51 // pred_region
        %p2090 = scmp.lt.s32.totalorder %s18, 1
        %s2091 = scalar_select %p2090, %s18, 1
        %s2092 = smul.addr %s2091, 9
        %s2093 = smul.addr %s2092, 4
        %s2094 = scalar_lea.vmem %s6, %s2093
      $region56: #{attention_forward.3} parent=51 // pred_fallthru
        _
    $region52: #{attention_forward.3} parent=5 // pred_fallthru
      _
  $region6: #{attention_forward.3} parent=0 // loop_footer
    %s16 = sadd.s32 1, %s12
  $region7: #{attention_forward.3} parent=0 // loop_footer_branch
    %11 = sbr.rel target = $region3
  $region8: #{attention_forward.3} parent=0 // loop_exit
    _

// kernel: attention_forward.5
$region0: #{attention_forward.5}
  #allocation0 [shape = 'u32[]', space=smem, size = 0x4, offset = 0x4, fixed_abs, tag = 'smem constant byte address 0x4 - core index']
  #allocation1 [shape = 'u32[72,128]{1,0:T(1,128)}', space=vmem, size = 0x9000, scoped, tag = 'internal scratch']
  %s0 = inlined_call_operand.vmem [shape: bf16[2,65,128], index: 0, kind: input, shape index: {}]
  %s1 = inlined_call_operand.vmem [shape: bf16[2,65,256], index: 1, kind: input, shape index: {}]
  %s2 = inlined_call_operand.vmem [shape: f32[65,128], index: 2, kind: input, shape index: {}]
  %s3 = inlined_call_operand.vmem [shape: f32[65,128], index: 3, kind: input, shape index: {}]
  %s4 = inlined_call_operand.vmem [shape: f32[65,128], index: 4, kind: input, shape index: {}]
  %s5 = inlined_call_operand.vmem [shape: f32[65,128], index: 5, kind: input, shape index: {}]
  %s6 = inlined_call_operand.vmem [shape: bf16[128,64], index: 6, kind: input, shape index: {}]
  %s7 = inlined_call_operand.vmem [shape: f32[1,64], index: 7, kind: input, shape index: {}]
  %s8 = inlined_call_operand.vmem [shape: f32[2,65,64], index: 8, kind: output, shape index: {}]
  %s9 = sld [smem:[#allocation0]]
  $region65: #{attention_forward.5} parent=0
    _
  %s11 = ssub.s32 1, %s9
  %s12 = scalar_select 0, %s11, %s9
  loop: start=0, step=1, limit=4
  $region2: #{attention_forward.5} parent=0 // loop_pre_header
    _
  $region3: #{attention_forward.5} parent=0 // loop_header
    %s14 = sphi 0, %s18
    %p15 = scmp.ge.s32.totalorder %s14, 4
    %s24 = sphi 0, %s26
    %s27 = sphi 0, %s24
    %s28 = sphi 0, %s27
    %s44 = sphi 0, %s28
    %s50 = sphi 0, %s52
    %s53 = sphi 0, %s50
    %s54 = sphi 0, %s53
    %s70 = sphi 0, %s54
    %s74 = sphi 0, %s74
    %s76 = sphi 0, %s74
    %s77 = sphi 0, %s76
    %s91 = sphi 0, %s77
    %s95 = sphi 0, %s95
    %s97 = sphi 0, %s95
    %s98 = sphi 0, %s97
    %s112 = sphi 0, %s98
    %s116 = sphi 0, %s116
    %s118 = sphi 0, %s116
    %s119 = sphi 0, %s118
    %s133 = sphi 0, %s119
    %s137 = sphi 0, %s137
    %s139 = sphi 0, %s137
    %s140 = sphi 0, %s139
    %s154 = sphi 0, %s140
    %s158 = sphi 0, %s158
    %s160 = sphi 0, %s158
    %s161 = sphi 0, %s160
    %s175 = sphi 0, %s161
    %s179 = sphi 0, %s179
    %s181 = sphi 0, %s179
    %s182 = sphi 0, %s181
    %s196 = sphi 0, %s182
    %s202 = sphi 0, %s204
    %s205 = sphi 0, %s202
    %s206 = sphi 0, %s205
    %s222 = sphi 0, %s206
  $region4: #{attention_forward.5} parent=0 // loop_header_branch
    %17 = sbr.rel (%p15) target = $region8
  $region5: #{attention_forward.5} parent=0 // loop_body
    %s19 = ssub.s32 %s14, 1
    %s20 = ssub.s32 %s14, 2
    %s21 = sadd.s32 %s14, 1
    %s22 = ssub.s32 %s14, %s21
    %p23 = scmp.eq.s32.totalorder %s22, 0
    %s25 = sadd.s32 %s24, 1
    %s26 = scalar_select %p23, %s24, %s25
    %p29 = pneg %p23
    %p30 = scmp.eq.s32.totalorder %s14, 1
    %p31 = por %p29, %p30
    %p32 = scmp.ne.s32.totalorder %s24, %s27
    %p33 = scmp.eq.s32.totalorder %s14, 0
    %p34 = por %p32, %p33
    %p35 = scmp.ne.s32.totalorder %s24, %s27
    %p36 = scmp.eq.s32.totalorder %s19, 1
    %p37 = por %p35, %p36
    %p38 = scmp.ne.s32.totalorder %s27, %s28
    %p39 = scmp.eq.s32.totalorder %s19, 0
    %p40 = por %p38, %p39
    %p41 = scmp.ne.s32.totalorder %s27, %s28
    %p42 = scmp.eq.s32.totalorder %s20, 1
    %p43 = por %p41, %p42
    %p45 = scmp.ne.s32.totalorder %s28, %s44
    %p46 = scmp.eq.s32.totalorder %s20, 0
    %p47 = por %p45, %p46
    %s48 = ssub.s32 %s14, %s21
    %p49 = scmp.eq.s32.totalorder %s48, 0
    %s51 = sadd.s32 %s50, 1
    %s52 = scalar_select %p49, %s50, %s51
    %p55 = pneg %p49
    %p56 = scmp.eq.s32.totalorder %s14, 1
    %p57 = por %p55, %p56
    %p58 = scmp.ne.s32.totalorder %s50, %s53
    %p59 = scmp.eq.s32.totalorder %s14, 0
    %p60 = por %p58, %p59
    %p61 = scmp.ne.s32.totalorder %s50, %s53
    %p62 = scmp.eq.s32.totalorder %s19, 1
    %p63 = por %p61, %p62
    %p64 = scmp.ne.s32.totalorder %s53, %s54
    %p65 = scmp.eq.s32.totalorder %s19, 0
    %p66 = por %p64, %p65
    %p67 = scmp.ne.s32.totalorder %s53, %s54
    %p68 = scmp.eq.s32.totalorder %s20, 1
    %p69 = por %p67, %p68
    %p71 = scmp.ne.s32.totalorder %s54, %s70
    %p72 = scmp.eq.s32.totalorder %s20, 0
    %p73 = por %p71, %p72
    %s75 = sadd.s32 %s74, 1
    %p78 = scmp.eq.s32.totalorder %s14, 1
    %p79 = scmp.ne.s32.totalorder %s74, %s76
    %p80 = scmp.eq.s32.totalorder %s14, 0
    %p81 = por %p79, %p80
    %p82 = scmp.ne.s32.totalorder %s74, %s76
    %p83 = scmp.eq.s32.totalorder %s19, 1
    %p84 = por %p82, %p83
    %p85 = scmp.ne.s32.totalorder %s76, %s77
    %p86 = scmp.eq.s32.totalorder %s19, 0
    %p87 = por %p85, %p86
    %p88 = scmp.ne.s32.totalorder %s76, %s77
    %p89 = scmp.eq.s32.totalorder %s20, 1
    %p90 = por %p88, %p89
    %p92 = scmp.ne.s32.totalorder %s77, %s91
    %p93 = scmp.eq.s32.totalorder %s20, 0
    %p94 = por %p92, %p93
    %s96 = sadd.s32 %s95, 1
    %p99 = scmp.eq.s32.totalorder %s14, 1
    %p100 = scmp.ne.s32.totalorder %s95, %s97
    %p101 = scmp.eq.s32.totalorder %s14, 0
    %p102 = por %p100, %p101
    %p103 = scmp.ne.s32.totalorder %s95, %s97
    %p104 = scmp.eq.s32.totalorder %s19, 1
    %p105 = por %p103, %p104
    %p106 = scmp.ne.s32.totalorder %s97, %s98
    %p107 = scmp.eq.s32.totalorder %s19, 0
    %p108 = por %p106, %p107
    %p109 = scmp.ne.s32.totalorder %s97, %s98
    %p110 = scmp.eq.s32.totalorder %s20, 1
    %p111 = por %p109, %p110
    %p113 = scmp.ne.s32.totalorder %s98, %s112
    %p114 = scmp.eq.s32.totalorder %s20, 0
    %p115 = por %p113, %p114
    %s117 = sadd.s32 %s116, 1
    %p120 = scmp.eq.s32.totalorder %s14, 1
    %p121 = scmp.ne.s32.totalorder %s116, %s118
    %p122 = scmp.eq.s32.totalorder %s14, 0
    %p123 = por %p121, %p122
    %p124 = scmp.ne.s32.totalorder %s116, %s118
    %p125 = scmp.eq.s32.totalorder %s19, 1
    %p126 = por %p124, %p125
    %p127 = scmp.ne.s32.totalorder %s118, %s119
    %p128 = scmp.eq.s32.totalorder %s19, 0
    %p129 = por %p127, %p128
    %p130 = scmp.ne.s32.totalorder %s118, %s119
    %p131 = scmp.eq.s32.totalorder %s20, 1
    %p132 = por %p130, %p131
    %p134 = scmp.ne.s32.totalorder %s119, %s133
    %p135 = scmp.eq.s32.totalorder %s20, 0
    %p136 = por %p134, %p135
    %s138 = sadd.s32 %s137, 1
    %p141 = scmp.eq.s32.totalorder %s14, 1
    %p142 = scmp.ne.s32.totalorder %s137, %s139
    %p143 = scmp.eq.s32.totalorder %s14, 0
    %p144 = por %p142, %p143
    %p145 = scmp.ne.s32.totalorder %s137, %s139
    %p146 = scmp.eq.s32.totalorder %s19, 1
    %p147 = por %p145, %p146
    %p148 = scmp.ne.s32.totalorder %s139, %s140
    %p149 = scmp.eq.s32.totalorder %s19, 0
    %p150 = por %p148, %p149
    %p151 = scmp.ne.s32.totalorder %s139, %s140
    %p152 = scmp.eq.s32.totalorder %s20, 1
    %p153 = por %p151, %p152
    %p155 = scmp.ne.s32.totalorder %s140, %s154
    %p156 = scmp.eq.s32.totalorder %s20, 0
    %p157 = por %p155, %p156
    %s159 = sadd.s32 %s158, 1
    %p162 = scmp.eq.s32.totalorder %s14, 1
    %p163 = scmp.ne.s32.totalorder %s158, %s160
    %p164 = scmp.eq.s32.totalorder %s14, 0
    %p165 = por %p163, %p164
    %p166 = scmp.ne.s32.totalorder %s158, %s160
    %p167 = scmp.eq.s32.totalorder %s19, 1
    %p168 = por %p166, %p167
    %p169 = scmp.ne.s32.totalorder %s160, %s161
    %p170 = scmp.eq.s32.totalorder %s19, 0
    %p171 = por %p169, %p170
    %p172 = scmp.ne.s32.totalorder %s160, %s161
    %p173 = scmp.eq.s32.totalorder %s20, 1
    %p174 = por %p172, %p173
    %p176 = scmp.ne.s32.totalorder %s161, %s175
    %p177 = scmp.eq.s32.totalorder %s20, 0
    %p178 = por %p176, %p177
    %s180 = sadd.s32 %s179, 1
    %p183 = scmp.eq.s32.totalorder %s14, 1
    %p184 = scmp.ne.s32.totalorder %s179, %s181
    %p185 = scmp.eq.s32.totalorder %s14, 0
    %p186 = por %p184, %p185
    %p187 = scmp.ne.s32.totalorder %s179, %s181
    %p188 = scmp.eq.s32.totalorder %s19, 1
    %p189 = por %p187, %p188
    %p190 = scmp.ne.s32.totalorder %s181, %s182
    %p191 = scmp.eq.s32.totalorder %s19, 0
    %p192 = por %p190, %p191
    %p193 = scmp.ne.s32.totalorder %s181, %s182
    %p194 = scmp.eq.s32.totalorder %s20, 1
    %p195 = por %p193, %p194
    %p197 = scmp.ne.s32.totalorder %s182, %s196
    %p198 = scmp.eq.s32.totalorder %s20, 0
    %p199 = por %p197, %p198
    %s200 = ssub.s32 %s14, %s21
    %p201 = scmp.eq.s32.totalorder %s200, 0
    %s203 = sadd.s32 %s202, 1
    %s204 = scalar_select %p201, %s202, %s203
    %p207 = pneg %p201
    %p208 = scmp.eq.s32.totalorder %s14, 1
    %p209 = por %p207, %p208
    %p210 = scmp.ne.s32.totalorder %s202, %s205
    %p211 = scmp.eq.s32.totalorder %s14, 0
    %p212 = por %p210, %p211
    %p213 = scmp.ne.s32.totalorder %s202, %s205
    %p214 = scmp.eq.s32.totalorder %s19, 1
    %p215 = por %p213, %p214
    %p216 = scmp.ne.s32.totalorder %s205, %s206
    %p217 = scmp.eq.s32.totalorder %s19, 0
    %p218 = por %p216, %p217
    %p219 = scmp.ne.s32.totalorder %s205, %s206
    %p220 = scmp.eq.s32.totalorder %s20, 1
    %p221 = por %p219, %p220
    %p223 = scmp.ne.s32.totalorder %s206, %s222
    %p224 = scmp.eq.s32.totalorder %s20, 0
    %p225 = por %p223, %p224
    %p226 = scmp.le.s32.totalorder 1, %s14
    %p227 = scmp.lt.s32.totalorder %s14, 3
    %p228 = pnand %p226, %p227
    %p229 = pneg %p228
    // Predicated region
    $region9: #{attention_forward.5} parent=5 // pred_check
      _
    $region10: #{attention_forward.5} parent=5 // pred_check_branch
      %231 = sbr.rel (%p228) target = $region12
    $region11: #{attention_forward.5} parent=5 // pred_region
      %s232 = ssub.s32 %s14, 1
      // Predicated region
      $region13: #{attention_forward.5} parent=11 // pred_check
        %p233 = pneg %p87
      $region14: #{attention_forward.5} parent=11 // pred_check_branch
        %235 = sbr.rel (%p233) target = $region16
      $region15: #{attention_forward.5} parent=11 // pred_region
        _
      $region16: #{attention_forward.5} parent=11 // pred_fallthru
        _
      // Predicated region
      $region17: #{attention_forward.5} parent=11 // pred_check
        %p236 = pneg %p108
      $region18: #{attention_forward.5} parent=11 // pred_check_branch
        %238 = sbr.rel (%p236) target = $region20
      $region19: #{attention_forward.5} parent=11 // pred_region
        _
      $region20: #{attention_forward.5} parent=11 // pred_fallthru
        _
      // Predicated region
      $region21: #{attention_forward.5} parent=11 // pred_check
        %p239 = pneg %p129
      $region22: #{attention_forward.5} parent=11 // pred_check_branch
        %241 = sbr.rel (%p239) target = $region24
      $region23: #{attention_forward.5} parent=11 // pred_region
        _
      $region24: #{attention_forward.5} parent=11 // pred_fallthru
        _
      // Predicated region
      $region25: #{attention_forward.5} parent=11 // pred_check
        %p242 = pneg %p150
      $region26: #{attention_forward.5} parent=11 // pred_check_branch
        %244 = sbr.rel (%p242) target = $region28
      $region27: #{attention_forward.5} parent=11 // pred_region
        _
      $region28: #{attention_forward.5} parent=11 // pred_fallthru
        _
      // Predicated region
      $region29: #{attention_forward.5} parent=11 // pred_check
        %p245 = pneg %p171
      $region30: #{attention_forward.5} parent=11 // pred_check_branch
        %247 = sbr.rel (%p245) target = $region32
      $region31: #{attention_forward.5} parent=11 // pred_region
        _
      $region32: #{attention_forward.5} parent=11 // pred_fallthru
        _
      // Predicated region
      $region33: #{attention_forward.5} parent=11 // pred_check
        %p248 = pneg %p192
      $region34: #{attention_forward.5} parent=11 // pred_check_branch
        %250 = sbr.rel (%p248) target = $region36
      $region35: #{attention_forward.5} parent=11 // pred_region
        _
      $region36: #{attention_forward.5} parent=11 // pred_fallthru
        _
    $region12: #{attention_forward.5} parent=5 // pred_fallthru
      _
    %p251 = scmp.lt.s32.totalorder %s14, 2
    // Predicated region
    $region37: #{attention_forward.5} parent=5 // pred_check
      %p252 = pneg %p251
    $region38: #{attention_forward.5} parent=5 // pred_check_branch
      %254 = sbr.rel (%p252) target = $region40
    $region39: #{attention_forward.5} parent=5 // pred_region
      // Predicated region
      $region41: #{attention_forward.5} parent=39 // pred_check
        %p255 = pneg %p34
      $region42: #{attention_forward.5} parent=39 // pred_check_branch
        %257 = sbr.rel (%p255) target = $region44
      $region43: #{attention_forward.5} parent=39 // pred_region
        %p258 = scmp.lt.s32.totalorder %s14, 1
        %s259 = scalar_select %p258, %s14, 1
        %s260 = smul.addr %s259, 9
        %s261 = smul.addr %s260, 4
        %s262 = scalar_lea.vmem %s0, %s261
      $region44: #{attention_forward.5} parent=39 // pred_fallthru
        _
      // Predicated region
      $region45: #{attention_forward.5} parent=39 // pred_check
        %p263 = pneg %p60
      $region46: #{attention_forward.5} parent=39 // pred_check_branch
        %265 = sbr.rel (%p263) target = $region48
      $region47: #{attention_forward.5} parent=39 // pred_region
        %p266 = scmp.lt.s32.totalorder %s14, 1
        %s267 = scalar_select %p266, %s14, 1
        %s268 = smul.addr %s267, 18
        %s269 = smul.addr %s268, 4
        %s270 = scalar_lea.vmem %s1, %s269
      $region48: #{attention_forward.5} parent=39 // pred_fallthru
        _
    $region40: #{attention_forward.5} parent=5 // pred_fallthru
      _
    %p271 = scmp.le.s32.totalorder 1, %s14
    %p272 = scmp.lt.s32.totalorder %s14, 3
    %p273 = pnand %p271, %p272
    %p274 = pneg %p273
    // Predicated region
    $region49: #{attention_forward.5} parent=5 // pred_check
      _
    $region50: #{attention_forward.5} parent=5 // pred_check_branch
      %276 = sbr.rel (%p273) target = $region52
    $region51: #{attention_forward.5} parent=5 // pred_region
      %s277 = ssub.s32 %s14, 1
      %p278 = scmp.lt.s32.totalorder %s19, 1
      %s279 = scalar_select %p278, %s19, 1
      %s280 = smul.addr %s279, 9
      %s281 = smul.addr %s280, 4
      %s282 = scalar_lea.vmem %s0, %s281
      %p283 = pneg %p40
      %p284 = pneg %p37
      %p285 = scmp.lt.s32.totalorder %s19, 1
      %s286 = scalar_select %p285, %s19, 1
      %s287 = smul.addr %s286, 18
      %s288 = smul.addr %s287, 4
      %s289 = scalar_lea.vmem %s1, %s288
      %p290 = pneg %p66
      %p291 = pneg %p63
      %p292 = pneg %p87
      %p293 = pneg %p84
      %p294 = pneg %p108
      %p295 = pneg %p105
      %p296 = pneg %p129
      %p297 = pneg %p126
      %p298 = pneg %p150
      %p299 = pneg %p147
      %p300 = pneg %p171
      %p301 = pneg %p168
      %p302 = pneg %p192
      %p303 = pneg %p189
      %p304 = pneg %p218
      %p305 = pneg %p215
      %p306 = scmp.lt.s32.totalorder %s19, 1
      %s307 = scalar_select %p306, %s19, 1
      %s308 = smul.addr %s307, 9
      %s309 = smul.addr %s308, 8
      %s310 = scalar_lea.vmem %s8, %s309
      %p311 = scmp.lt.s32.totalorder %s19, 1
      %s312 = scalar_select %p311, %s19, 1
      %s313 = smul.addr %s312, 9
      %s314 = smul.addr %s313, 4
      %s315 = scalar_lea.vmem %s0, %s314
      %p316 = scmp.lt.s32.totalorder %s19, 1
      %s317 = scalar_select %p316, %s19, 1
      %s318 = smul.addr %s317, 18
      %s319 = smul.addr %s318, 4
      %s320 = scalar_lea.vmem %s1, %s319
      %p321 = scmp.lt.s32.totalorder %s19, 1
      %s322 = scalar_select %p321, %s19, 1
      %s323 = smul.addr %s322, 9
      %s324 = smul.addr %s323, 8
      %s325 = scalar_lea.vmem %s8, %s324
      %v327 = vld [vmem:[%s315] sm:$0xf]
      %v328 = vld [vmem:[%s315 + $0x4] sm:$0xf]
      %v329 = vld [vmem:[%s315 + $0x8] sm:$0xf]
      %v330 = vld [vmem:[%s315 + $0xc] sm:$0xf]
      %v331 = vld [vmem:[%s315 + $0x10] sm:$0xf]
      %v332 = vld [vmem:[%s315 + $0x14] sm:$0xf]
      %v333 = vld [vmem:[%s315 + $0x18] sm:$0xf]
      %v334 = vld [vmem:[%s315 + $0x1c] sm:$0xf]
      %v335 = vld [vmem:[%s315 + $0x20] sm:$0x1]
      %v336 = vunpack.c.l.bf16 %v327
      %v337 = vunpack.c.l.bf16 %v328
      %v338 = vunpack.c.l.bf16 %v329
      %v339 = vunpack.c.l.bf16 %v330
      %v340 = vunpack.c.l.bf16 %v331
      %v341 = vunpack.c.l.bf16 %v332
      %v342 = vunpack.c.l.bf16 %v333
      %v343 = vunpack.c.l.bf16 %v334
      %v344 = vunpack.c.l.bf16 %v335
      %v345 = vld [vmem:[%s320] sm:$0xff]
      %v346 = vld [vmem:[%s320 + $0x8] sm:$0xff]
      %v347 = vld [vmem:[%s320 + $0x10] sm:$0xff]
      %v348 = vld [vmem:[%s320 + $0x18] sm:$0xff]
      %v349 = vld [vmem:[%s320 + $0x20] sm:$0xff]
      %v350 = vld [vmem:[%s320 + $0x28] sm:$0xff]
      %v351 = vld [vmem:[%s320 + $0x30] sm:$0xff]
      %v352 = vld [vmem:[%s320 + $0x38] sm:$0xff]
      %v353 = vld [vmem:[%s320 + $0x40] sm:$0x11]
      %v354 = vunpack.c.l.bf16 %v345
      %v355 = vunpack.c.l.bf16 %v346
      %v356 = vunpack.c.l.bf16 %v347
      %v357 = vunpack.c.l.bf16 %v348
      %v358 = vunpack.c.l.bf16 %v349
      %v359 = vunpack.c.l.bf16 %v350
      %v360 = vunpack.c.l.bf16 %v351
      %v361 = vunpack.c.l.bf16 %v352
      %v362 = vunpack.c.l.bf16 %v353
      %v363 = vlaneseq
      %v364 = vand.u32 %v363, 127
      %vm365 = vcmp.lt.s32.totalorder %v364, 0
      %v366 = vsub.s32 0, %v364
      %v367 = vsel %vm365, %v366, %v364
      %v368 = vshrl.u32 %v367, 1
      %v369 = vand.u32 %v367, 1
      %v370 = vsub.s32 0, %v369
      %v371 = vsel %vm365, %v370, %v369
      %vm372 = vcmp.ne.s32.totalorder %v371, 0
      %vm373 = vcmp.lt.s32.totalorder %v371, 0
      %vm374 = vmand %vm373, %vm372
      %v375 = vadd.s32 %v371, 2
      %v376 = vsel %vm374, %v375, %v371
      %vm377 = vcmp.eq.s32.totalorder %v376, 0
      %v378 = vld [vmem:[%s3] sm:$0xff]
      %v379 = vld [vmem:[%s3 + $0x8] sm:$0xff]
      %v380 = vld [vmem:[%s3 + $0x10] sm:$0xff]
      %v381 = vld [vmem:[%s3 + $0x18] sm:$0xff]
      %v382 = vld [vmem:[%s3 + $0x20] sm:$0xff]
      %v383 = vld [vmem:[%s3 + $0x28] sm:$0xff]
      %v384 = vld [vmem:[%s3 + $0x30] sm:$0xff]
      %v385 = vld [vmem:[%s3 + $0x38] sm:$0xff]
      %v386 = vld [vmem:[%s3 + $0x40] sm:$0x1]
      %v387 = vmul.f32 %v336, %v378
      %v388 = vmul.f32 %v337, %v379
      %v389 = vmul.f32 %v338, %v380
      %v390 = vmul.f32 %v339, %v381
      %v391 = vmul.f32 %v340, %v382
      %v392 = vmul.f32 %v341, %v383
      %v393 = vmul.f32 %v342, %v384
      %v394 = vmul.f32 %v343, %v385
      %v395 = vmul.f32 %v344, %v386
      %396 = vrot.lane.b32.xlu0 %v336, 127
      %v397 = vpop.permute.xlu0 %396
      %398 = vrot.lane.b32.xlu0 %v337, 127
      %v399 = vpop.permute.xlu0 %398
      %400 = vrot.lane.b32.xlu0 %v338, 127
      %v401 = vpop.permute.xlu0 %400
      %402 = vrot.lane.b32.xlu0 %v339, 127
      %v403 = vpop.permute.xlu0 %402
      %404 = vrot.lane.b32.xlu0 %v340, 127
      %v405 = vpop.permute.xlu0 %404
      %406 = vrot.lane.b32.xlu0 %v341, 127
      %v407 = vpop.permute.xlu0 %406
      %408 = vrot.lane.b32.xlu0 %v342, 127
      %v409 = vpop.permute.xlu0 %408
      %410 = vrot.lane.b32.xlu0 %v343, 127
      %v411 = vpop.permute.xlu0 %410
      %412 = vrot.lane.b32.xlu0 %v344, 127
      %v413 = vpop.permute.xlu0 %412
      %414 = vrot.lane.b32.xlu0 %v336, 1
      %v415 = vpop.permute.xlu0 %414
      %416 = vrot.lane.b32.xlu0 %v337, 1
      %v417 = vpop.permute.xlu0 %416
      %418 = vrot.lane.b32.xlu0 %v338, 1
      %v419 = vpop.permute.xlu0 %418
      %420 = vrot.lane.b32.xlu0 %v339, 1
      %v421 = vpop.permute.xlu0 %420
      %422 = vrot.lane.b32.xlu0 %v340, 1
      %v423 = vpop.permute.xlu0 %422
      %424 = vrot.lane.b32.xlu0 %v341, 1
      %v425 = vpop.permute.xlu0 %424
      %426 = vrot.lane.b32.xlu0 %v342, 1
      %v427 = vpop.permute.xlu0 %426
      %428 = vrot.lane.b32.xlu0 %v343, 1
      %v429 = vpop.permute.xlu0 %428
      %430 = vrot.lane.b32.xlu0 %v344, 1
      %v431 = vpop.permute.xlu0 %430
      %v432 = vsel %vm377, %v397, %v415
      %v433 = vsel %vm377, %v399, %v417
      %v434 = vsel %vm377, %v401, %v419
      %v435 = vsel %vm377, %v403, %v421
      %v436 = vsel %vm377, %v405, %v423
      %v437 = vsel %vm377, %v407, %v425
      %v438 = vsel %vm377, %v409, %v427
      %v439 = vsel %vm377, %v411, %v429
      %v440 = vsel %vm377, %v413, %v431
      %v441 = vld [vmem:[%s2] sm:$0xff]
      %v442 = vld [vmem:[%s2 + $0x8] sm:$0xff]
      %v443 = vld [vmem:[%s2 + $0x10] sm:$0xff]
      %v444 = vld [vmem:[%s2 + $0x18] sm:$0xff]
      %v445 = vld [vmem:[%s2 + $0x20] sm:$0xff]
      %v446 = vld [vmem:[%s2 + $0x28] sm:$0xff]
      %v447 = vld [vmem:[%s2 + $0x30] sm:$0xff]
      %v448 = vld [vmem:[%s2 + $0x38] sm:$0xff]
      %v449 = vld [vmem:[%s2 + $0x40] sm:$0x1]
      %v450 = vmul.f32 %v432, %v441
      %v451 = vmul.f32 %v433, %v442
      %v452 = vmul.f32 %v434, %v443
      %v453 = vmul.f32 %v435, %v444
      %v454 = vmul.f32 %v436, %v445
      %v455 = vmul.f32 %v437, %v446
      %v456 = vmul.f32 %v438, %v447
      %v457 = vmul.f32 %v439, %v448
      %v458 = vmul.f32 %v440, %v449
      %v459 = vadd.f32 %v387, %v450
      %v460 = vadd.f32 %v388, %v451
      %v461 = vadd.f32 %v389, %v452
      %v462 = vadd.f32 %v390, %v453
      %v463 = vadd.f32 %v391, %v454
      %v464 = vadd.f32 %v392, %v455
      %v465 = vadd.f32 %v393, %v456
      %v466 = vadd.f32 %v394, %v457
      %v467 = vadd.f32 %v395, %v458
      %v468 = vpack.c.bf16 %v459, %v459
      %v469 = vpack.c.bf16 %v460, %v460
      %v470 = vpack.c.bf16 %v461, %v461
      %v471 = vpack.c.bf16 %v462, %v462
      %v472 = vpack.c.bf16 %v463, %v463
      %v473 = vpack.c.bf16 %v464, %v464
      %v474 = vpack.c.bf16 %v465, %v465
      %v475 = vpack.c.bf16 %v466, %v466
      %v476 = vpack.c.bf16 %v467, %v467
      %v477 = vld [vmem:[%s5] sm:$0xff]
      %v478 = vld [vmem:[%s5 + $0x8] sm:$0xff]
      %v479 = vld [vmem:[%s5 + $0x10] sm:$0xff]
      %v480 = vld [vmem:[%s5 + $0x18] sm:$0xff]
      %v481 = vld [vmem:[%s5 + $0x20] sm:$0xff]
      %v482 = vld [vmem:[%s5 + $0x28] sm:$0xff]
      %v483 = vld [vmem:[%s5 + $0x30] sm:$0xff]
      %v484 = vld [vmem:[%s5 + $0x38] sm:$0xff]
      %v485 = vld [vmem:[%s5 + $0x40] sm:$0x1]
      %v486 = vmul.f32 %v354, %v477
      %v487 = vmul.f32 %v355, %v478
      %v488 = vmul.f32 %v356, %v479
      %v489 = vmul.f32 %v357, %v480
      %v490 = vmul.f32 %v358, %v481
      %v491 = vmul.f32 %v359, %v482
      %v492 = vmul.f32 %v360, %v483
      %v493 = vmul.f32 %v361, %v484
      %v494 = vmul.f32 %v362, %v485
      %495 = vrot.lane.b32.xlu0 %v354, 127
      %v496 = vpop.permute.xlu0 %495
      %497 = vrot.lane.b32.xlu0 %v355, 127
      %v498 = vpop.permute.xlu0 %497
      %499 = vrot.lane.b32.xlu0 %v356, 127
      %v500 = vpop.permute.xlu0 %499
      %501 = vrot.lane.b32.xlu0 %v357, 127
      %v502 = vpop.permute.xlu0 %501
      %503 = vrot.lane.b32.xlu0 %v358, 127
      %v504 = vpop.permute.xlu0 %503
      %505 = vrot.lane.b32.xlu0 %v359, 127
      %v506 = vpop.permute.xlu0 %505
      %507 = vrot.lane.b32.xlu0 %v360, 127
      %v508 = vpop.permute.xlu0 %507
      %509 = vrot.lane.b32.xlu0 %v361, 127
      %v510 = vpop.permute.xlu0 %509
      %511 = vrot.lane.b32.xlu0 %v362, 127
      %v512 = vpop.permute.xlu0 %511
      %513 = vrot.lane.b32.xlu0 %v354, 1
      %v514 = vpop.permute.xlu0 %513
      %515 = vrot.lane.b32.xlu0 %v355, 1
      %v516 = vpop.permute.xlu0 %515
      %517 = vrot.lane.b32.xlu0 %v356, 1
      %v518 = vpop.permute.xlu0 %517
      %519 = vrot.lane.b32.xlu0 %v357, 1
      %v520 = vpop.permute.xlu0 %519
      %521 = vrot.lane.b32.xlu0 %v358, 1
      %v522 = vpop.permute.xlu0 %521
      %523 = vrot.lane.b32.xlu0 %v359, 1
      %v524 = vpop.permute.xlu0 %523
      %525 = vrot.lane.b32.xlu0 %v360, 1
      %v526 = vpop.permute.xlu0 %525
      %527 = vrot.lane.b32.xlu0 %v361, 1
      %v528 = vpop.permute.xlu0 %527
      %529 = vrot.lane.b32.xlu0 %v362, 1
      %v530 = vpop.permute.xlu0 %529
      %v531 = vsel %vm377, %v496, %v514
      %v532 = vsel %vm377, %v498, %v516
      %v533 = vsel %vm377, %v500, %v518
      %v534 = vsel %vm377, %v502, %v520
      %v535 = vsel %vm377, %v504, %v522
      %v536 = vsel %vm377, %v506, %v524
      %v537 = vsel %vm377, %v508, %v526
      %v538 = vsel %vm377, %v510, %v528
      %v539 = vsel %vm377, %v512, %v530
      %v540 = vld [vmem:[%s4] sm:$0xff]
      %v541 = vld [vmem:[%s4 + $0x8] sm:$0xff]
      %v542 = vld [vmem:[%s4 + $0x10] sm:$0xff]
      %v543 = vld [vmem:[%s4 + $0x18] sm:$0xff]
      %v544 = vld [vmem:[%s4 + $0x20] sm:$0xff]
      %v545 = vld [vmem:[%s4 + $0x28] sm:$0xff]
      %v546 = vld [vmem:[%s4 + $0x30] sm:$0xff]
      %v547 = vld [vmem:[%s4 + $0x38] sm:$0xff]
      %v548 = vld [vmem:[%s4 + $0x40] sm:$0x1]
      %v549 = vmul.f32 %v531, %v540
      %v550 = vmul.f32 %v532, %v541
      %v551 = vmul.f32 %v533, %v542
      %v552 = vmul.f32 %v534, %v543
      %v553 = vmul.f32 %v535, %v544
      %v554 = vmul.f32 %v536, %v545
      %v555 = vmul.f32 %v537, %v546
      %v556 = vmul.f32 %v538, %v547
      %v557 = vmul.f32 %v539, %v548
      %v558 = vadd.f32 %v486, %v549
      %v559 = vadd.f32 %v487, %v550
      %v560 = vadd.f32 %v488, %v551
      %v561 = vadd.f32 %v489, %v552
      %v562 = vadd.f32 %v490, %v553
      %v563 = vadd.f32 %v491, %v554
      %v564 = vadd.f32 %v492, %v555
      %v565 = vadd.f32 %v493, %v556
      %v566 = vadd.f32 %v494, %v557
      %567 = vxpose.xlu0.b32.start [1/16] %v558, 128
      %568 = vxpose.xlu0.b32.cont [2/16] %v559, 128
      %569 = vxpose.xlu0.b32.cont [3/16] %v560, 128
      %570 = vxpose.xlu0.b32.cont [4/16] %v561, 128
      %571 = vxpose.xlu0.b32.cont [5/16] %v562, 128
      %572 = vxpose.xlu0.b32.cont [6/16] %v563, 128
      %573 = vxpose.xlu0.b32.cont [7/16] %v564, 128
      %574 = vxpose.xlu0.b32.cont [8/16] %v565, 128
      %575 = vxpose.xlu0.b32.cont [9/16] %v566, 128
      %576 = vxpose.xlu0.b32.cont [10/16] 0.0, 128
      %577 = vxpose.xlu0.b32.cont [11/16] 0.0, 128
      %578 = vxpose.xlu0.b32.cont [12/16] 0.0, 128
      %579 = vxpose.xlu0.b32.cont [13/16] 0.0, 128
      %580 = vxpose.xlu0.b32.cont [14/16] 0.0, 128
      %581 = vxpose.xlu0.b32.cont [15/16] 0.0, 128
      %582 = vxpose.xlu0.b32.end [16/16] 0.0, 128
      %v583 = vpop.trf.xlu0
      %v584 = vpop.trf.xlu0
      %v585 = vpop.trf.xlu0
      %v586 = vpop.trf.xlu0
      %v587 = vpop.trf.xlu0
      %v588 = vpop.trf.xlu0
      %v589 = vpop.trf.xlu0
      %v590 = vpop.trf.xlu0
      %v591 = vpop.trf.xlu0
      %v592 = vpop.trf.xlu0
      %v593 = vpop.trf.xlu0
      %v594 = vpop.trf.xlu0
      %v595 = vpop.trf.xlu0
      %v596 = vpop.trf.xlu0
      %v597 = vpop.trf.xlu0
      %v598 = vpop.trf.xlu0
      %v599 = vpack.c.bf16 %v583, %v583
      %v600 = vpack.c.bf16 %v584, %v584
      %v601 = vpack.c.bf16 %v585, %v585
      %v602 = vpack.c.bf16 %v586, %v586
      %v603 = vpack.c.bf16 %v587, %v587
      %v604 = vpack.c.bf16 %v588, %v588
      %v605 = vpack.c.bf16 %v589, %v589
      %v606 = vpack.c.bf16 %v590, %v590
      %v607 = vpack.c.bf16 %v591, %v591
      %v608 = vpack.c.bf16 %v592, %v592
      %v609 = vpack.c.bf16 %v593, %v593
      %v610 = vpack.c.bf16 %v594, %v594
      %v611 = vpack.c.bf16 %v595, %v595
      %v612 = vpack.c.bf16 %v596, %v596
      %v613 = vpack.c.bf16 %v597, %v597
      %v614 = vpack.c.bf16 %v598, %v598
      %v624 = vunpack.c.l.b16 %v468
      %v625 = vunpack.c.l.b16 %v469
      %v626 = vunpack.c.l.b16 %v470
      %v627 = vunpack.c.l.b16 %v471
      %v628 = vunpack.c.l.b16 %v472
      %v629 = vunpack.c.l.b16 %v473
      %v630 = vunpack.c.l.b16 %v474
      %v631 = vunpack.c.l.b16 %v475
      %v632 = vunpack.c.l.b16 %v476
      %v633 = vpack.c.b16 %v625, %v624
      %v634 = vpack.c.b16 %v627, %v626
      %v635 = vpack.c.b16 %v629, %v628
      %v636 = vpack.c.b16 %v631, %v630
      %v637 = vpack.c.b16 %v632, %v632
      %v642 = vunpack.c.l.b16 %v599
      %v643 = vunpack.c.l.b16 %v600
      %v644 = vunpack.c.l.b16 %v601
      %v645 = vunpack.c.l.b16 %v602
      %v646 = vpack.c.b16 %v643, %v642
      %v647 = vpack.c.b16 %v645, %v644
      %vm650 = vcmask 261120
      %v652 = vsel %vm650, %v633, 0
      %v655 = vsel %vm650, %v634, 0
      %v658 = vsel %vm650, %v635, 0
      %v661 = vsel %vm650, %v636, 0
      %v664 = vsel %vm650, %v637, 0
      %666 = vmatpush.bf16.msra.mxu0 0
      %667 = vmatpush.bf16.msra.mxu0 0
      %668 = vmatpush.bf16.msra.mxu0 0
      %669 = vmatpush.bf16.msra.mxu0 0
      %670 = vmatpush.bf16.msra.mxu0 0
      %671 = vmatpush.bf16.msra.mxu0 0
      %672 = vmatpush.bf16.msra.mxu0 %v647
      %673 = vmatpush.bf16.msra.mxu0 %v646
      %674 = vmatmul.bf16.gmra.mxu0 %v652
      %v675 = vpop.f32.mrf.mxu0
      %v676 = vadd.f32 0.0, %v675
      %v677 = vpop.f32.mrf.mxu0
      %v678 = vadd.f32 0.0, %v677
      %679 = vmatmul.bf16.gmra.mxu0 %v655
      %v680 = vpop.f32.mrf.mxu0
      %v681 = vadd.f32 0.0, %v680
      %v682 = vpop.f32.mrf.mxu0
      %v683 = vadd.f32 0.0, %v682
      %684 = vmatmul.bf16.gmra.mxu0 %v658
      %v685 = vpop.f32.mrf.mxu0
      %v686 = vadd.f32 0.0, %v685
      %v687 = vpop.f32.mrf.mxu0
      %v688 = vadd.f32 0.0, %v687
      %689 = vmatmul.bf16.gmra.mxu0 %v661
      %v690 = vpop.f32.mrf.mxu0
      %v691 = vadd.f32 0.0, %v690
      %v692 = vpop.f32.mrf.mxu0
      %v693 = vadd.f32 0.0, %v692
      %694 = vmatmul.bf16.gmra.mxu0 %v664
      %v695 = vpop.f32.mrf.mxu0
      %v696 = vadd.f32 0.0, %v695
      %v697 = vpop.f32.mrf.mxu0
      %698 = vdwg.mxu0
      %vm699 = vcmask 531456
      %v700 = vsel %vm699, %v676, -inf
      %701 = vmax.xlane.f32.xlu0 %v700
      %v702 = vpop.xlane.xlu0 %701
      %v703 = vsel %vm699, %v678, -inf
      %704 = vmax.xlane.f32.xlu0 %v703
      %v705 = vpop.xlane.xlu0 %704
      %v706 = vsel %vm699, %v681, -inf
      %707 = vmax.xlane.f32.xlu0 %v706
      %v708 = vpop.xlane.xlu0 %707
      %v709 = vsel %vm699, %v683, -inf
      %710 = vmax.xlane.f32.xlu0 %v709
      %v711 = vpop.xlane.xlu0 %710
      %v712 = vsel %vm699, %v686, -inf
      %713 = vmax.xlane.f32.xlu0 %v712
      %v714 = vpop.xlane.xlu0 %713
      %v715 = vsel %vm699, %v688, -inf
      %716 = vmax.xlane.f32.xlu0 %v715
      %v717 = vpop.xlane.xlu0 %716
      %v718 = vsel %vm699, %v691, -inf
      %719 = vmax.xlane.f32.xlu0 %v718
      %v720 = vpop.xlane.xlu0 %719
      %v721 = vsel %vm699, %v693, -inf
      %722 = vmax.xlane.f32.xlu0 %v721
      %v723 = vpop.xlane.xlu0 %722
      %vm724 = vcmask 524288
      %v725 = vsel %vm724, %v696, -inf
      %726 = vmax.xlane.f32.xlu0 %v725
      %v727 = vpop.xlane.xlu0 %726
      %v728 = vsub.f32 %v676, %v702
      %v729 = vsub.f32 %v678, %v705
      %v730 = vsub.f32 %v681, %v708
      %v731 = vsub.f32 %v683, %v711
      %v732 = vsub.f32 %v686, %v714
      %v733 = vsub.f32 %v688, %v717
      %v734 = vsub.f32 %v691, %v720
      %v735 = vsub.f32 %v693, %v723
      %v736 = vsub.f32 %v696, %v727
      %v737 = vmul.f32 %v728, 1.442695
      %v738 = vpow.pop %v737
      %v739 = vmul.f32 %v729, 1.442695
      %v740 = vpow.pop %v739
      %v741 = vmul.f32 %v730, 1.442695
      %v742 = vpow.pop %v741
      %v743 = vmul.f32 %v731, 1.442695
      %v744 = vpow.pop %v743
      %v745 = vmul.f32 %v732, 1.442695
      %v746 = vpow.pop %v745
      %v747 = vmul.f32 %v733, 1.442695
      %v748 = vpow.pop %v747
      %v749 = vmul.f32 %v734, 1.442695
      %v750 = vpow.pop %v749
      %v751 = vmul.f32 %v735, 1.442695
      %v752 = vpow.pop %v751
      %v753 = vmul.f32 %v736, 1.442695
      %v754 = vpow.pop %v753
      %v755 = vsel %vm699, %v738, 0.0
      %756 = vadd.xlane.f32.xlu0 %v755
      %v757 = vpop.xlane.xlu0 %756
      %v758 = vsel %vm699, %v740, 0.0
      %759 = vadd.xlane.f32.xlu0 %v758
      %v760 = vpop.xlane.xlu0 %759
      %v761 = vsel %vm699, %v742, 0.0
      %762 = vadd.xlane.f32.xlu0 %v761
      %v763 = vpop.xlane.xlu0 %762
      %v764 = vsel %vm699, %v744, 0.0
      %765 = vadd.xlane.f32.xlu0 %v764
      %v766 = vpop.xlane.xlu0 %765
      %v767 = vsel %vm699, %v746, 0.0
      %768 = vadd.xlane.f32.xlu0 %v767
      %v769 = vpop.xlane.xlu0 %768
      %v770 = vsel %vm699, %v748, 0.0
      %771 = vadd.xlane.f32.xlu0 %v770
      %v772 = vpop.xlane.xlu0 %771
      %v773 = vsel %vm699, %v750, 0.0
      %774 = vadd.xlane.f32.xlu0 %v773
      %v775 = vpop.xlane.xlu0 %774
      %v776 = vsel %vm699, %v752, 0.0
      %777 = vadd.xlane.f32.xlu0 %v776
      %v778 = vpop.xlane.xlu0 %777
      %v779 = vsel %vm724, %v754, 0.0
      %780 = vadd.xlane.f32.xlu0 %v779
      %v781 = vpop.xlane.xlu0 %780
      %v782 = vrcp.pop %v757
      %v783 = vrcp.pop %v760
      %v784 = vrcp.pop %v763
      %v785 = vrcp.pop %v766
      %v786 = vrcp.pop %v769
      %v787 = vrcp.pop %v772
      %v788 = vrcp.pop %v775
      %v789 = vrcp.pop %v778
      %v790 = vrcp.pop %v781
      %v791 = vmul.f32 %v738, %v782
      %v792 = vmul.f32 %v740, %v783
      %v793 = vmul.f32 %v742, %v784
      %v794 = vmul.f32 %v744, %v785
      %v795 = vmul.f32 %v746, %v786
      %v796 = vmul.f32 %v748, %v787
      %v797 = vmul.f32 %v750, %v788
      %v798 = vmul.f32 %v752, %v789
      %v799 = vmul.f32 %v754, %v790
      %v800 = vpack.c.bf16 %v792, %v791
      %v801 = vpack.c.bf16 %v794, %v793
      %v802 = vpack.c.bf16 %v796, %v795
      %v803 = vpack.c.bf16 %v798, %v797
      %v804 = vpack.c.bf16 %v799, %v799
      %v814 = vunpack.c.h.b16 %v345
      %v815 = vunpack.c.h.b16 %v346
      %v816 = vunpack.c.h.b16 %v347
      %v817 = vunpack.c.h.b16 %v348
      %v818 = vunpack.c.h.b16 %v349
      %v819 = vunpack.c.h.b16 %v350
      %v820 = vunpack.c.h.b16 %v351
      %v821 = vunpack.c.h.b16 %v352
      %v822 = vunpack.c.h.b16 %v353
      %v823 = vpack.c.b16 %v815, %v814
      %v824 = vpack.c.b16 %v817, %v816
      %v825 = vpack.c.b16 %v819, %v818
      %v826 = vpack.c.b16 %v821, %v820
      %v827 = vpack.c.b16 %v822, %v822
      %v833 = vsel %vm699, %v800, 0
      %v836 = vsel %vm699, %v801, 0
      %v839 = vsel %vm699, %v802, 0
      %v842 = vsel %vm699, %v803, 0
      %v845 = vsel %vm699, %v804, 0
      %vm847 = vcmask 1040384
      %v848 = vsel 0, 4294967295, 65535
      %v849 = vsel %vm847, %v848, 0
      %v851 = vand.u32 %v827, %v849
      %853 = vmatpush.bf16.msra.mxu0 0
      %854 = vmatpush.bf16.msra.mxu0 0
      %855 = vmatpush.bf16.msra.mxu0 0
      %856 = vmatpush.bf16.msra.mxu0 %v851
      %857 = vmatpush.bf16.msra.mxu0 %v826
      %858 = vmatpush.bf16.msra.mxu0 %v825
      %859 = vmatpush.bf16.msra.mxu0 %v824
      %860 = vmatpush.bf16.msra.mxu0 %v823
      %861 = vmatmul.bf16.gmra.mxu0 %v833
      %v862 = vpop.f32.mrf.mxu0
      %v863 = vadd.f32 0.0, %v862
      %v864 = vpop.f32.mrf.mxu0
      %v865 = vadd.f32 0.0, %v864
      %866 = vmatmul.bf16.gmra.mxu0 %v836
      %v867 = vpop.f32.mrf.mxu0
      %v868 = vadd.f32 0.0, %v867
      %v869 = vpop.f32.mrf.mxu0
      %v870 = vadd.f32 0.0, %v869
      %871 = vmatmul.bf16.gmra.mxu0 %v839
      %v872 = vpop.f32.mrf.mxu0
      %v873 = vadd.f32 0.0, %v872
      %v874 = vpop.f32.mrf.mxu0
      %v875 = vadd.f32 0.0, %v874
      %876 = vmatmul.bf16.gmra.mxu0 %v842
      %v877 = vpop.f32.mrf.mxu0
      %v878 = vadd.f32 0.0, %v877
      %v879 = vpop.f32.mrf.mxu0
      %v880 = vadd.f32 0.0, %v879
      %881 = vmatmul.bf16.gmra.mxu0 %v845
      %v882 = vpop.f32.mrf.mxu0
      %v883 = vadd.f32 0.0, %v882
      %v884 = vpop.f32.mrf.mxu0
      %885 = vdwg.mxu0
      %v886 = vpack.c.bf16 %v865, %v863
      %v887 = vpack.c.bf16 %v870, %v868
      %v888 = vpack.c.bf16 %v875, %v873
      %v889 = vpack.c.bf16 %v880, %v878
      %v890 = vpack.c.bf16 %v883, %v883
      %v891 = vld [vmem:[%s6] sm:$0xf]
      %v892 = vld [vmem:[%s6 + $0x4] sm:$0xf]
      %v893 = vld [vmem:[%s6 + $0x8] sm:$0xf]
      %v894 = vld [vmem:[%s6 + $0xc] sm:$0xf]
      %895 = vrot.lane.b32.xlu0 %v633, 96
      %v896 = vpop.permute.xlu0 %895
      %897 = vrot.lane.b32.xlu0 %v634, 96
      %v898 = vpop.permute.xlu0 %897
      %899 = vrot.lane.b32.xlu0 %v635, 96
      %v900 = vpop.permute.xlu0 %899
      %901 = vrot.lane.b32.xlu0 %v636, 96
      %v902 = vpop.permute.xlu0 %901
      %903 = vrot.lane.b32.xlu0 %v637, 96
      %v904 = vpop.permute.xlu0 %903
      %v909 = vunpack.c.l.b16 %v603
      %v910 = vunpack.c.l.b16 %v604
      %v911 = vunpack.c.l.b16 %v605
      %v912 = vunpack.c.l.b16 %v606
      %v913 = vpack.c.b16 %v910, %v909
      %v914 = vpack.c.b16 %v912, %v911
      %v918 = vsel %vm650, %v896, 0
      %v921 = vsel %vm650, %v898, 0
      %v924 = vsel %vm650, %v900, 0
      %v927 = vsel %vm650, %v902, 0
      %v930 = vsel %vm650, %v904, 0
      %932 = vmatpush.bf16.msra.mxu0 0
      %933 = vmatpush.bf16.msra.mxu0 0
      %934 = vmatpush.bf16.msra.mxu0 0
      %935 = vmatpush.bf16.msra.mxu0 0
      %936 = vmatpush.bf16.msra.mxu0 0
      %937 = vmatpush.bf16.msra.mxu0 0
      %938 = vmatpush.bf16.msra.mxu0 %v914
      %939 = vmatpush.bf16.msra.mxu0 %v913
      %940 = vmatmul.bf16.gmra.mxu0 %v918
      %v941 = vpop.f32.mrf.mxu0
      %v942 = vadd.f32 0.0, %v941
      %v943 = vpop.f32.mrf.mxu0
      %v944 = vadd.f32 0.0, %v943
      %945 = vmatmul.bf16.gmra.mxu0 %v921
      %v946 = vpop.f32.mrf.mxu0
      %v947 = vadd.f32 0.0, %v946
      %v948 = vpop.f32.mrf.mxu0
      %v949 = vadd.f32 0.0, %v948
      %950 = vmatmul.bf16.gmra.mxu0 %v924
      %v951 = vpop.f32.mrf.mxu0
      %v952 = vadd.f32 0.0, %v951
      %v953 = vpop.f32.mrf.mxu0
      %v954 = vadd.f32 0.0, %v953
      %955 = vmatmul.bf16.gmra.mxu0 %v927
      %v956 = vpop.f32.mrf.mxu0
      %v957 = vadd.f32 0.0, %v956
      %v958 = vpop.f32.mrf.mxu0
      %v959 = vadd.f32 0.0, %v958
      %960 = vmatmul.bf16.gmra.mxu0 %v930
      %v961 = vpop.f32.mrf.mxu0
      %v962 = vadd.f32 0.0, %v961
      %v963 = vpop.f32.mrf.mxu0
      %964 = vdwg.mxu0
      %v965 = vsel %vm699, %v942, -inf
      %966 = vmax.xlane.f32.xlu0 %v965
      %v967 = vpop.xlane.xlu0 %966
      %v968 = vsel %vm699, %v944, -inf
      %969 = vmax.xlane.f32.xlu0 %v968
      %v970 = vpop.xlane.xlu0 %969
      %v971 = vsel %vm699, %v947, -inf
      %972 = vmax.xlane.f32.xlu0 %v971
      %v973 = vpop.xlane.xlu0 %972
      %v974 = vsel %vm699, %v949, -inf
      %975 = vmax.xlane.f32.xlu0 %v974
      %v976 = vpop.xlane.xlu0 %975
      %v977 = vsel %vm699, %v952, -inf
      %978 = vmax.xlane.f32.xlu0 %v977
      %v979 = vpop.xlane.xlu0 %978
      %v980 = vsel %vm699, %v954, -inf
      %981 = vmax.xlane.f32.xlu0 %v980
      %v982 = vpop.xlane.xlu0 %981
      %v983 = vsel %vm699, %v957, -inf
      %984 = vmax.xlane.f32.xlu0 %v983
      %v985 = vpop.xlane.xlu0 %984
      %v986 = vsel %vm699, %v959, -inf
      %987 = vmax.xlane.f32.xlu0 %v986
      %v988 = vpop.xlane.xlu0 %987
      %v989 = vsel %vm724, %v962, -inf
      %990 = vmax.xlane.f32.xlu0 %v989
      %v991 = vpop.xlane.xlu0 %990
      %v992 = vsub.f32 %v942, %v967
      %v993 = vsub.f32 %v944, %v970
      %v994 = vsub.f32 %v947, %v973
      %v995 = vsub.f32 %v949, %v976
      %v996 = vsub.f32 %v952, %v979
      %v997 = vsub.f32 %v954, %v982
      %v998 = vsub.f32 %v957, %v985
      %v999 = vsub.f32 %v959, %v988
      %v1000 = vsub.f32 %v962, %v991
      %v1001 = vmul.f32 %v992, 1.442695
      %v1002 = vpow.pop %v1001
      %v1003 = vmul.f32 %v993, 1.442695
      %v1004 = vpow.pop %v1003
      %v1005 = vmul.f32 %v994, 1.442695
      %v1006 = vpow.pop %v1005
      %v1007 = vmul.f32 %v995, 1.442695
      %v1008 = vpow.pop %v1007
      %v1009 = vmul.f32 %v996, 1.442695
      %v1010 = vpow.pop %v1009
      %v1011 = vmul.f32 %v997, 1.442695
      %v1012 = vpow.pop %v1011
      %v1013 = vmul.f32 %v998, 1.442695
      %v1014 = vpow.pop %v1013
      %v1015 = vmul.f32 %v999, 1.442695
      %v1016 = vpow.pop %v1015
      %v1017 = vmul.f32 %v1000, 1.442695
      %v1018 = vpow.pop %v1017
      %v1019 = vsel %vm699, %v1002, 0.0
      %1020 = vadd.xlane.f32.xlu0 %v1019
      %v1021 = vpop.xlane.xlu0 %1020
      %v1022 = vsel %vm699, %v1004, 0.0
      %1023 = vadd.xlane.f32.xlu0 %v1022
      %v1024 = vpop.xlane.xlu0 %1023
      %v1025 = vsel %vm699, %v1006, 0.0
      %1026 = vadd.xlane.f32.xlu0 %v1025
      %v1027 = vpop.xlane.xlu0 %1026
      %v1028 = vsel %vm699, %v1008, 0.0
      %1029 = vadd.xlane.f32.xlu0 %v1028
      %v1030 = vpop.xlane.xlu0 %1029
      %v1031 = vsel %vm699, %v1010, 0.0
      %1032 = vadd.xlane.f32.xlu0 %v1031
      %v1033 = vpop.xlane.xlu0 %1032
      %v1034 = vsel %vm699, %v1012, 0.0
      %1035 = vadd.xlane.f32.xlu0 %v1034
      %v1036 = vpop.xlane.xlu0 %1035
      %v1037 = vsel %vm699, %v1014, 0.0
      %1038 = vadd.xlane.f32.xlu0 %v1037
      %v1039 = vpop.xlane.xlu0 %1038
      %v1040 = vsel %vm699, %v1016, 0.0
      %1041 = vadd.xlane.f32.xlu0 %v1040
      %v1042 = vpop.xlane.xlu0 %1041
      %v1043 = vsel %vm724, %v1018, 0.0
      %1044 = vadd.xlane.f32.xlu0 %v1043
      %v1045 = vpop.xlane.xlu0 %1044
      %v1046 = vrcp.pop %v1021
      %v1047 = vrcp.pop %v1024
      %v1048 = vrcp.pop %v1027
      %v1049 = vrcp.pop %v1030
      %v1050 = vrcp.pop %v1033
      %v1051 = vrcp.pop %v1036
      %v1052 = vrcp.pop %v1039
      %v1053 = vrcp.pop %v1042
      %v1054 = vrcp.pop %v1045
      %v1055 = vmul.f32 %v1002, %v1046
      %v1056 = vmul.f32 %v1004, %v1047
      %v1057 = vmul.f32 %v1006, %v1048
      %v1058 = vmul.f32 %v1008, %v1049
      %v1059 = vmul.f32 %v1010, %v1050
      %v1060 = vmul.f32 %v1012, %v1051
      %v1061 = vmul.f32 %v1014, %v1052
      %v1062 = vmul.f32 %v1016, %v1053
      %v1063 = vmul.f32 %v1018, %v1054
      %v1064 = vpack.c.bf16 %v1056, %v1055
      %v1065 = vpack.c.bf16 %v1058, %v1057
      %v1066 = vpack.c.bf16 %v1060, %v1059
      %v1067 = vpack.c.bf16 %v1062, %v1061
      %v1068 = vpack.c.bf16 %v1063, %v1063
      %1069 = vrot.lane.b32.xlu0 %v823, 96
      %v1070 = vpop.permute.xlu0 %1069
      %1071 = vrot.lane.b32.xlu0 %v824, 96
      %v1072 = vpop.permute.xlu0 %1071
      %1073 = vrot.lane.b32.xlu0 %v825, 96
      %v1074 = vpop.permute.xlu0 %1073
      %1075 = vrot.lane.b32.xlu0 %v826, 96
      %v1076 = vpop.permute.xlu0 %1075
      %1077 = vrot.lane.b32.xlu0 %v827, 96
      %v1078 = vpop.permute.xlu0 %1077
      %v1084 = vsel %vm699, %v1064, 0
      %v1087 = vsel %vm699, %v1065, 0
      %v1090 = vsel %vm699, %v1066, 0
      %v1093 = vsel %vm699, %v1067, 0
      %v1096 = vsel %vm699, %v1068, 0
      %v1099 = vand.u32 %v1078, %v849
      %1101 = vmatpush.bf16.msra.mxu0 0
      %1102 = vmatpush.bf16.msra.mxu0 0
      %1103 = vmatpush.bf16.msra.mxu0 0
      %1104 = vmatpush.bf16.msra.mxu0 %v1099
      %1105 = vmatpush.bf16.msra.mxu0 %v1076
      %1106 = vmatpush.bf16.msra.mxu0 %v1074
      %1107 = vmatpush.bf16.msra.mxu0 %v1072
      %1108 = vmatpush.bf16.msra.mxu0 %v1070
      %1109 = vmatmul.bf16.gmra.mxu0 %v1084
      %v1110 = vpop.f32.mrf.mxu0
      %v1111 = vadd.f32 0.0, %v1110
      %v1112 = vpop.f32.mrf.mxu0
      %v1113 = vadd.f32 0.0, %v1112
      %1114 = vmatmul.bf16.gmra.mxu0 %v1087
      %v1115 = vpop.f32.mrf.mxu0
      %v1116 = vadd.f32 0.0, %v1115
      %v1117 = vpop.f32.mrf.mxu0
      %v1118 = vadd.f32 0.0, %v1117
      %1119 = vmatmul.bf16.gmra.mxu0 %v1090
      %v1120 = vpop.f32.mrf.mxu0
      %v1121 = vadd.f32 0.0, %v1120
      %v1122 = vpop.f32.mrf.mxu0
      %v1123 = vadd.f32 0.0, %v1122
      %1124 = vmatmul.bf16.gmra.mxu0 %v1093
      %v1125 = vpop.f32.mrf.mxu0
      %v1126 = vadd.f32 0.0, %v1125
      %v1127 = vpop.f32.mrf.mxu0
      %v1128 = vadd.f32 0.0, %v1127
      %1129 = vmatmul.bf16.gmra.mxu0 %v1096
      %v1130 = vpop.f32.mrf.mxu0
      %v1131 = vadd.f32 0.0, %v1130
      %v1132 = vpop.f32.mrf.mxu0
      %1133 = vdwg.mxu0
      %v1134 = vpack.c.bf16 %v1113, %v1111
      %v1135 = vpack.c.bf16 %v1118, %v1116
      %v1136 = vpack.c.bf16 %v1123, %v1121
      %v1137 = vpack.c.bf16 %v1128, %v1126
      %v1138 = vpack.c.bf16 %v1131, %v1131
      %v1139 = vld [vmem:[%s6 + $0x10] sm:$0xf]
      %v1140 = vld [vmem:[%s6 + $0x14] sm:$0xf]
      %v1141 = vld [vmem:[%s6 + $0x18] sm:$0xf]
      %v1142 = vld [vmem:[%s6 + $0x1c] sm:$0xf]
      %v1147 = vunpack.c.l.b16 %v1139
      %v1148 = vunpack.c.l.b16 %v1140
      %v1149 = vunpack.c.l.b16 %v1141
      %v1150 = vunpack.c.l.b16 %v1142
      %v1151 = vpack.c.b16 %v1148, %v1147
      %v1152 = vpack.c.b16 %v1150, %v1149
      %v1156 = vsel %vm650, %v1134, 0
      %v1159 = vsel %vm650, %v1135, 0
      %v1162 = vsel %vm650, %v1136, 0
      %v1165 = vsel %vm650, %v1137, 0
      %v1168 = vsel %vm650, %v1138, 0
      %1170 = vmatpush.bf16.msra.mxu0 0
      %1171 = vmatpush.bf16.msra.mxu0 0
      %1172 = vmatpush.bf16.msra.mxu0 0
      %1173 = vmatpush.bf16.msra.mxu0 0
      %1174 = vmatpush.bf16.msra.mxu0 0
      %1175 = vmatpush.bf16.msra.mxu0 0
      %1176 = vmatpush.bf16.msra.mxu0 %v1152
      %1177 = vmatpush.bf16.msra.mxu0 %v1151
      %1178 = vmatmul.bf16.gmra.mxu0 %v1156
      %v1179 = vpop.f32.mrf.mxu0
      %v1180 = vadd.f32 0.0, %v1179
      %v1181 = vpop.f32.mrf.mxu0
      %v1182 = vadd.f32 0.0, %v1181
      %1183 = vmatmul.bf16.gmra.mxu0 %v1159
      %v1184 = vpop.f32.mrf.mxu0
      %v1185 = vadd.f32 0.0, %v1184
      %v1186 = vpop.f32.mrf.mxu0
      %v1187 = vadd.f32 0.0, %v1186
      %1188 = vmatmul.bf16.gmra.mxu0 %v1162
      %v1189 = vpop.f32.mrf.mxu0
      %v1190 = vadd.f32 0.0, %v1189
      %v1191 = vpop.f32.mrf.mxu0
      %v1192 = vadd.f32 0.0, %v1191
      %1193 = vmatmul.bf16.gmra.mxu0 %v1165
      %v1194 = vpop.f32.mrf.mxu0
      %v1195 = vadd.f32 0.0, %v1194
      %v1196 = vpop.f32.mrf.mxu0
      %v1197 = vadd.f32 0.0, %v1196
      %1198 = vmatmul.bf16.gmra.mxu0 %v1168
      %v1199 = vpop.f32.mrf.mxu0
      %v1200 = vadd.f32 0.0, %v1199
      %v1201 = vpop.f32.mrf.mxu0
      %1202 = vdwg.mxu0
      %v1207 = vunpack.c.l.b16 %v891
      %v1208 = vunpack.c.l.b16 %v892
      %v1209 = vunpack.c.l.b16 %v893
      %v1210 = vunpack.c.l.b16 %v894
      %v1211 = vpack.c.b16 %v1208, %v1207
      %v1212 = vpack.c.b16 %v1210, %v1209
      %v1216 = vsel %vm650, %v886, 0
      %v1219 = vsel %vm650, %v887, 0
      %v1222 = vsel %vm650, %v888, 0
      %v1225 = vsel %vm650, %v889, 0
      %v1228 = vsel %vm650, %v890, 0
      %1230 = vmatpush.bf16.msra.mxu0 0
      %1231 = vmatpush.bf16.msra.mxu0 0
      %1232 = vmatpush.bf16.msra.mxu0 0
      %1233 = vmatpush.bf16.msra.mxu0 0
      %1234 = vmatpush.bf16.msra.mxu0 0
      %1235 = vmatpush.bf16.msra.mxu0 0
      %1236 = vmatpush.bf16.msra.mxu0 %v1212
      %1237 = vmatpush.bf16.msra.mxu0 %v1211
      %1238 = vmatmul.bf16.gmra.mxu0 %v1216
      %v1239 = vpop.f32.mrf.mxu0
      %v1240 = vadd.f32 %v1180, %v1239
      %v1241 = vpop.f32.mrf.mxu0
      %v1242 = vadd.f32 %v1182, %v1241
      %1243 = vmatmul.bf16.gmra.mxu0 %v1219
      %v1244 = vpop.f32.mrf.mxu0
      %v1245 = vadd.f32 %v1185, %v1244
      %v1246 = vpop.f32.mrf.mxu0
      %v1247 = vadd.f32 %v1187, %v1246
      %1248 = vmatmul.bf16.gmra.mxu0 %v1222
      %v1249 = vpop.f32.mrf.mxu0
      %v1250 = vadd.f32 %v1190, %v1249
      %v1251 = vpop.f32.mrf.mxu0
      %v1252 = vadd.f32 %v1192, %v1251
      %1253 = vmatmul.bf16.gmra.mxu0 %v1225
      %v1254 = vpop.f32.mrf.mxu0
      %v1255 = vadd.f32 %v1195, %v1254
      %v1256 = vpop.f32.mrf.mxu0
      %v1257 = vadd.f32 %v1197, %v1256
      %1258 = vmatmul.bf16.gmra.mxu0 %v1228
      %v1259 = vpop.f32.mrf.mxu0
      %v1260 = vadd.f32 %v1200, %v1259
      %v1261 = vpop.f32.mrf.mxu0
      %1262 = vdwg.mxu0
      %1263 = vrot.lane.b32.xlu0 %v633, 64
      %v1264 = vpop.permute.xlu0 %1263
      %1265 = vrot.lane.b32.xlu0 %v634, 64
      %v1266 = vpop.permute.xlu0 %1265
      %1267 = vrot.lane.b32.xlu0 %v635, 64
      %v1268 = vpop.permute.xlu0 %1267
      %1269 = vrot.lane.b32.xlu0 %v636, 64
      %v1270 = vpop.permute.xlu0 %1269
      %1271 = vrot.lane.b32.xlu0 %v637, 64
      %v1272 = vpop.permute.xlu0 %1271
      %v1277 = vunpack.c.l.b16 %v607
      %v1278 = vunpack.c.l.b16 %v608
      %v1279 = vunpack.c.l.b16 %v609
      %v1280 = vunpack.c.l.b16 %v610
      %v1281 = vpack.c.b16 %v1278, %v1277
      %v1282 = vpack.c.b16 %v1280, %v1279
      %v1286 = vsel %vm650, %v1264, 0
      %v1289 = vsel %vm650, %v1266, 0
      %v1292 = vsel %vm650, %v1268, 0
      %v1295 = vsel %vm650, %v1270, 0
      %v1298 = vsel %vm650, %v1272, 0
      %1300 = vmatpush.bf16.msra.mxu0 0
      %1301 = vmatpush.bf16.msra.mxu0 0
      %1302 = vmatpush.bf16.msra.mxu0 0
      %1303 = vmatpush.bf16.msra.mxu0 0
      %1304 = vmatpush.bf16.msra.mxu0 0
      %1305 = vmatpush.bf16.msra.mxu0 0
      %1306 = vmatpush.bf16.msra.mxu0 %v1282
      %1307 = vmatpush.bf16.msra.mxu0 %v1281
      %1308 = vmatmul.bf16.gmra.mxu0 %v1286
      %v1309 = vpop.f32.mrf.mxu0
      %v1310 = vadd.f32 0.0, %v1309
      %v1311 = vpop.f32.mrf.mxu0
      %v1312 = vadd.f32 0.0, %v1311
      %1313 = vmatmul.bf16.gmra.mxu0 %v1289
      %v1314 = vpop.f32.mrf.mxu0
      %v1315 = vadd.f32 0.0, %v1314
      %v1316 = vpop.f32.mrf.mxu0
      %v1317 = vadd.f32 0.0, %v1316
      %1318 = vmatmul.bf16.gmra.mxu0 %v1292
      %v1319 = vpop.f32.mrf.mxu0
      %v1320 = vadd.f32 0.0, %v1319
      %v1321 = vpop.f32.mrf.mxu0
      %v1322 = vadd.f32 0.0, %v1321
      %1323 = vmatmul.bf16.gmra.mxu0 %v1295
      %v1324 = vpop.f32.mrf.mxu0
      %v1325 = vadd.f32 0.0, %v1324
      %v1326 = vpop.f32.mrf.mxu0
      %v1327 = vadd.f32 0.0, %v1326
      %1328 = vmatmul.bf16.gmra.mxu0 %v1298
      %v1329 = vpop.f32.mrf.mxu0
      %v1330 = vadd.f32 0.0, %v1329
      %v1331 = vpop.f32.mrf.mxu0
      %1332 = vdwg.mxu0
      %v1333 = vsel %vm699, %v1310, -inf
      %1334 = vmax.xlane.f32.xlu0 %v1333
      %v1335 = vpop.xlane.xlu0 %1334
      %v1336 = vsel %vm699, %v1312, -inf
      %1337 = vmax.xlane.f32.xlu0 %v1336
      %v1338 = vpop.xlane.xlu0 %1337
      %v1339 = vsel %vm699, %v1315, -inf
      %1340 = vmax.xlane.f32.xlu0 %v1339
      %v1341 = vpop.xlane.xlu0 %1340
      %v1342 = vsel %vm699, %v1317, -inf
      %1343 = vmax.xlane.f32.xlu0 %v1342
      %v1344 = vpop.xlane.xlu0 %1343
      %v1345 = vsel %vm699, %v1320, -inf
      %1346 = vmax.xlane.f32.xlu0 %v1345
      %v1347 = vpop.xlane.xlu0 %1346
      %v1348 = vsel %vm699, %v1322, -inf
      %1349 = vmax.xlane.f32.xlu0 %v1348
      %v1350 = vpop.xlane.xlu0 %1349
      %v1351 = vsel %vm699, %v1325, -inf
      %1352 = vmax.xlane.f32.xlu0 %v1351
      %v1353 = vpop.xlane.xlu0 %1352
      %v1354 = vsel %vm699, %v1327, -inf
      %1355 = vmax.xlane.f32.xlu0 %v1354
      %v1356 = vpop.xlane.xlu0 %1355
      %v1357 = vsel %vm724, %v1330, -inf
      %1358 = vmax.xlane.f32.xlu0 %v1357
      %v1359 = vpop.xlane.xlu0 %1358
      %v1360 = vsub.f32 %v1310, %v1335
      %v1361 = vsub.f32 %v1312, %v1338
      %v1362 = vsub.f32 %v1315, %v1341
      %v1363 = vsub.f32 %v1317, %v1344
      %v1364 = vsub.f32 %v1320, %v1347
      %v1365 = vsub.f32 %v1322, %v1350
      %v1366 = vsub.f32 %v1325, %v1353
      %v1367 = vsub.f32 %v1327, %v1356
      %v1368 = vsub.f32 %v1330, %v1359
      %v1369 = vmul.f32 %v1360, 1.442695
      %v1370 = vpow.pop %v1369
      %v1371 = vmul.f32 %v1361, 1.442695
      %v1372 = vpow.pop %v1371
      %v1373 = vmul.f32 %v1362, 1.442695
      %v1374 = vpow.pop %v1373
      %v1375 = vmul.f32 %v1363, 1.442695
      %v1376 = vpow.pop %v1375
      %v1377 = vmul.f32 %v1364, 1.442695
      %v1378 = vpow.pop %v1377
      %v1379 = vmul.f32 %v1365, 1.442695
      %v1380 = vpow.pop %v1379
      %v1381 = vmul.f32 %v1366, 1.442695
      %v1382 = vpow.pop %v1381
      %v1383 = vmul.f32 %v1367, 1.442695
      %v1384 = vpow.pop %v1383
      %v1385 = vmul.f32 %v1368, 1.442695
      %v1386 = vpow.pop %v1385
      %v1387 = vsel %vm699, %v1370, 0.0
      %1388 = vadd.xlane.f32.xlu0 %v1387
      %v1389 = vpop.xlane.xlu0 %1388
      %v1390 = vsel %vm699, %v1372, 0.0
      %1391 = vadd.xlane.f32.xlu0 %v1390
      %v1392 = vpop.xlane.xlu0 %1391
      %v1393 = vsel %vm699, %v1374, 0.0
      %1394 = vadd.xlane.f32.xlu0 %v1393
      %v1395 = vpop.xlane.xlu0 %1394
      %v1396 = vsel %vm699, %v1376, 0.0
      %1397 = vadd.xlane.f32.xlu0 %v1396
      %v1398 = vpop.xlane.xlu0 %1397
      %v1399 = vsel %vm699, %v1378, 0.0
      %1400 = vadd.xlane.f32.xlu0 %v1399
      %v1401 = vpop.xlane.xlu0 %1400
      %v1402 = vsel %vm699, %v1380, 0.0
      %1403 = vadd.xlane.f32.xlu0 %v1402
      %v1404 = vpop.xlane.xlu0 %1403
      %v1405 = vsel %vm699, %v1382, 0.0
      %1406 = vadd.xlane.f32.xlu0 %v1405
      %v1407 = vpop.xlane.xlu0 %1406
      %v1408 = vsel %vm699, %v1384, 0.0
      %1409 = vadd.xlane.f32.xlu0 %v1408
      %v1410 = vpop.xlane.xlu0 %1409
      %v1411 = vsel %vm724, %v1386, 0.0
      %1412 = vadd.xlane.f32.xlu0 %v1411
      %v1413 = vpop.xlane.xlu0 %1412
      %v1414 = vrcp.pop %v1389
      %v1415 = vrcp.pop %v1392
      %v1416 = vrcp.pop %v1395
      %v1417 = vrcp.pop %v1398
      %v1418 = vrcp.pop %v1401
      %v1419 = vrcp.pop %v1404
      %v1420 = vrcp.pop %v1407
      %v1421 = vrcp.pop %v1410
      %v1422 = vrcp.pop %v1413
      %v1423 = vmul.f32 %v1370, %v1414
      %v1424 = vmul.f32 %v1372, %v1415
      %v1425 = vmul.f32 %v1374, %v1416
      %v1426 = vmul.f32 %v1376, %v1417
      %v1427 = vmul.f32 %v1378, %v1418
      %v1428 = vmul.f32 %v1380, %v1419
      %v1429 = vmul.f32 %v1382, %v1420
      %v1430 = vmul.f32 %v1384, %v1421
      %v1431 = vmul.f32 %v1386, %v1422
      %v1432 = vpack.c.bf16 %v1424, %v1423
      %v1433 = vpack.c.bf16 %v1426, %v1425
      %v1434 = vpack.c.bf16 %v1428, %v1427
      %v1435 = vpack.c.bf16 %v1430, %v1429
      %v1436 = vpack.c.bf16 %v1431, %v1431
      %1437 = vrot.lane.b32.xlu0 %v823, 64
      %v1438 = vpop.permute.xlu0 %1437
      %1439 = vrot.lane.b32.xlu0 %v824, 64
      %v1440 = vpop.permute.xlu0 %1439
      %1441 = vrot.lane.b32.xlu0 %v825, 64
      %v1442 = vpop.permute.xlu0 %1441
      %1443 = vrot.lane.b32.xlu0 %v826, 64
      %v1444 = vpop.permute.xlu0 %1443
      %1445 = vrot.lane.b32.xlu0 %v827, 64
      %v1446 = vpop.permute.xlu0 %1445
      %v1452 = vsel %vm699, %v1432, 0
      %v1455 = vsel %vm699, %v1433, 0
      %v1458 = vsel %vm699, %v1434, 0
      %v1461 = vsel %vm699, %v1435, 0
      %v1464 = vsel %vm699, %v1436, 0
      %v1467 = vand.u32 %v1446, %v849
      %1469 = vmatpush.bf16.msra.mxu0 0
      %1470 = vmatpush.bf16.msra.mxu0 0
      %1471 = vmatpush.bf16.msra.mxu0 0
      %1472 = vmatpush.bf16.msra.mxu0 %v1467
      %1473 = vmatpush.bf16.msra.mxu0 %v1444
      %1474 = vmatpush.bf16.msra.mxu0 %v1442
      %1475 = vmatpush.bf16.msra.mxu0 %v1440
      %1476 = vmatpush.bf16.msra.mxu0 %v1438
      %1477 = vmatmul.bf16.gmra.mxu0 %v1452
      %v1478 = vpop.f32.mrf.mxu0
      %v1479 = vadd.f32 0.0, %v1478
      %v1480 = vpop.f32.mrf.mxu0
      %v1481 = vadd.f32 0.0, %v1480
      %1482 = vmatmul.bf16.gmra.mxu0 %v1455
      %v1483 = vpop.f32.mrf.mxu0
      %v1484 = vadd.f32 0.0, %v1483
      %v1485 = vpop.f32.mrf.mxu0
      %v1486 = vadd.f32 0.0, %v1485
      %1487 = vmatmul.bf16.gmra.mxu0 %v1458
      %v1488 = vpop.f32.mrf.mxu0
      %v1489 = vadd.f32 0.0, %v1488
      %v1490 = vpop.f32.mrf.mxu0
      %v1491 = vadd.f32 0.0, %v1490
      %1492 = vmatmul.bf16.gmra.mxu0 %v1461
      %v1493 = vpop.f32.mrf.mxu0
      %v1494 = vadd.f32 0.0, %v1493
      %v1495 = vpop.f32.mrf.mxu0
      %v1496 = vadd.f32 0.0, %v1495
      %1497 = vmatmul.bf16.gmra.mxu0 %v1464
      %v1498 = vpop.f32.mrf.mxu0
      %v1499 = vadd.f32 0.0, %v1498
      %v1500 = vpop.f32.mrf.mxu0
      %1501 = vdwg.mxu0
      %v1502 = vpack.c.bf16 %v1481, %v1479
      %v1503 = vpack.c.bf16 %v1486, %v1484
      %v1504 = vpack.c.bf16 %v1491, %v1489
      %v1505 = vpack.c.bf16 %v1496, %v1494
      %v1506 = vpack.c.bf16 %v1499, %v1499
      %v1507 = vld [vmem:[%s6 + $0x20] sm:$0xf]
      %v1508 = vld [vmem:[%s6 + $0x24] sm:$0xf]
      %v1509 = vld [vmem:[%s6 + $0x28] sm:$0xf]
      %v1510 = vld [vmem:[%s6 + $0x2c] sm:$0xf]
      %v1515 = vunpack.c.l.b16 %v1507
      %v1516 = vunpack.c.l.b16 %v1508
      %v1517 = vunpack.c.l.b16 %v1509
      %v1518 = vunpack.c.l.b16 %v1510
      %v1519 = vpack.c.b16 %v1516, %v1515
      %v1520 = vpack.c.b16 %v1518, %v1517
      %v1524 = vsel %vm650, %v1502, 0
      %v1527 = vsel %vm650, %v1503, 0
      %v1530 = vsel %vm650, %v1504, 0
      %v1533 = vsel %vm650, %v1505, 0
      %v1536 = vsel %vm650, %v1506, 0
      %1538 = vmatpush.bf16.msra.mxu0 0
      %1539 = vmatpush.bf16.msra.mxu0 0
      %1540 = vmatpush.bf16.msra.mxu0 0
      %1541 = vmatpush.bf16.msra.mxu0 0
      %1542 = vmatpush.bf16.msra.mxu0 0
      %1543 = vmatpush.bf16.msra.mxu0 0
      %1544 = vmatpush.bf16.msra.mxu0 %v1520
      %1545 = vmatpush.bf16.msra.mxu0 %v1519
      %1546 = vmatmul.bf16.gmra.mxu0 %v1524
      %v1547 = vpop.f32.mrf.mxu0
      %v1548 = vadd.f32 0.0, %v1547
      %v1549 = vpop.f32.mrf.mxu0
      %v1550 = vadd.f32 0.0, %v1549
      %1551 = vmatmul.bf16.gmra.mxu0 %v1527
      %v1552 = vpop.f32.mrf.mxu0
      %v1553 = vadd.f32 0.0, %v1552
      %v1554 = vpop.f32.mrf.mxu0
      %v1555 = vadd.f32 0.0, %v1554
      %1556 = vmatmul.bf16.gmra.mxu0 %v1530
      %v1557 = vpop.f32.mrf.mxu0
      %v1558 = vadd.f32 0.0, %v1557
      %v1559 = vpop.f32.mrf.mxu0
      %v1560 = vadd.f32 0.0, %v1559
      %1561 = vmatmul.bf16.gmra.mxu0 %v1533
      %v1562 = vpop.f32.mrf.mxu0
      %v1563 = vadd.f32 0.0, %v1562
      %v1564 = vpop.f32.mrf.mxu0
      %v1565 = vadd.f32 0.0, %v1564
      %1566 = vmatmul.bf16.gmra.mxu0 %v1536
      %v1567 = vpop.f32.mrf.mxu0
      %v1568 = vadd.f32 0.0, %v1567
      %v1569 = vpop.f32.mrf.mxu0
      %1570 = vdwg.mxu0
      %v1571 = vadd.f32 %v1240, %v1548
      %v1572 = vadd.f32 %v1242, %v1550
      %v1573 = vadd.f32 %v1245, %v1553
      %v1574 = vadd.f32 %v1247, %v1555
      %v1575 = vadd.f32 %v1250, %v1558
      %v1576 = vadd.f32 %v1252, %v1560
      %v1577 = vadd.f32 %v1255, %v1563
      %v1578 = vadd.f32 %v1257, %v1565
      %v1579 = vadd.f32 %v1260, %v1568
      %1580 = vrot.lane.b32.xlu0 %v633, 32
      %v1581 = vpop.permute.xlu0 %1580
      %1582 = vrot.lane.b32.xlu0 %v634, 32
      %v1583 = vpop.permute.xlu0 %1582
      %1584 = vrot.lane.b32.xlu0 %v635, 32
      %v1585 = vpop.permute.xlu0 %1584
      %1586 = vrot.lane.b32.xlu0 %v636, 32
      %v1587 = vpop.permute.xlu0 %1586
      %1588 = vrot.lane.b32.xlu0 %v637, 32
      %v1589 = vpop.permute.xlu0 %1588
      %v1594 = vunpack.c.l.b16 %v611
      %v1595 = vunpack.c.l.b16 %v612
      %v1596 = vunpack.c.l.b16 %v613
      %v1597 = vunpack.c.l.b16 %v614
      %v1598 = vpack.c.b16 %v1595, %v1594
      %v1599 = vpack.c.b16 %v1597, %v1596
      %v1603 = vsel %vm650, %v1581, 0
      %v1606 = vsel %vm650, %v1583, 0
      %v1609 = vsel %vm650, %v1585, 0
      %v1612 = vsel %vm650, %v1587, 0
      %v1615 = vsel %vm650, %v1589, 0
      %1617 = vmatpush.bf16.msra.mxu0 0
      %1618 = vmatpush.bf16.msra.mxu0 0
      %1619 = vmatpush.bf16.msra.mxu0 0
      %1620 = vmatpush.bf16.msra.mxu0 0
      %1621 = vmatpush.bf16.msra.mxu0 0
      %1622 = vmatpush.bf16.msra.mxu0 0
      %1623 = vmatpush.bf16.msra.mxu0 %v1599
      %1624 = vmatpush.bf16.msra.mxu0 %v1598
      %1625 = vmatmul.bf16.gmra.mxu0 %v1603
      %v1626 = vpop.f32.mrf.mxu0
      %v1627 = vadd.f32 0.0, %v1626
      %v1628 = vpop.f32.mrf.mxu0
      %v1629 = vadd.f32 0.0, %v1628
      %1630 = vmatmul.bf16.gmra.mxu0 %v1606
      %v1631 = vpop.f32.mrf.mxu0
      %v1632 = vadd.f32 0.0, %v1631
      %v1633 = vpop.f32.mrf.mxu0
      %v1634 = vadd.f32 0.0, %v1633
      %1635 = vmatmul.bf16.gmra.mxu0 %v1609
      %v1636 = vpop.f32.mrf.mxu0
      %v1637 = vadd.f32 0.0, %v1636
      %v1638 = vpop.f32.mrf.mxu0
      %v1639 = vadd.f32 0.0, %v1638
      %1640 = vmatmul.bf16.gmra.mxu0 %v1612
      %v1641 = vpop.f32.mrf.mxu0
      %v1642 = vadd.f32 0.0, %v1641
      %v1643 = vpop.f32.mrf.mxu0
      %v1644 = vadd.f32 0.0, %v1643
      %1645 = vmatmul.bf16.gmra.mxu0 %v1615
      %v1646 = vpop.f32.mrf.mxu0
      %v1647 = vadd.f32 0.0, %v1646
      %v1648 = vpop.f32.mrf.mxu0
      %1649 = vdwg.mxu0
      %v1650 = vsel %vm699, %v1627, -inf
      %1651 = vmax.xlane.f32.xlu0 %v1650
      %v1652 = vpop.xlane.xlu0 %1651
      %v1653 = vsel %vm699, %v1629, -inf
      %1654 = vmax.xlane.f32.xlu0 %v1653
      %v1655 = vpop.xlane.xlu0 %1654
      %v1656 = vsel %vm699, %v1632, -inf
      %1657 = vmax.xlane.f32.xlu0 %v1656
      %v1658 = vpop.xlane.xlu0 %1657
      %v1659 = vsel %vm699, %v1634, -inf
      %1660 = vmax.xlane.f32.xlu0 %v1659
      %v1661 = vpop.xlane.xlu0 %1660
      %v1662 = vsel %vm699, %v1637, -inf
      %1663 = vmax.xlane.f32.xlu0 %v1662
      %v1664 = vpop.xlane.xlu0 %1663
      %v1665 = vsel %vm699, %v1639, -inf
      %1666 = vmax.xlane.f32.xlu0 %v1665
      %v1667 = vpop.xlane.xlu0 %1666
      %v1668 = vsel %vm699, %v1642, -inf
      %1669 = vmax.xlane.f32.xlu0 %v1668
      %v1670 = vpop.xlane.xlu0 %1669
      %v1671 = vsel %vm699, %v1644, -inf
      %1672 = vmax.xlane.f32.xlu0 %v1671
      %v1673 = vpop.xlane.xlu0 %1672
      %v1674 = vsel %vm724, %v1647, -inf
      %1675 = vmax.xlane.f32.xlu0 %v1674
      %v1676 = vpop.xlane.xlu0 %1675
      %v1677 = vsub.f32 %v1627, %v1652
      %v1678 = vsub.f32 %v1629, %v1655
      %v1679 = vsub.f32 %v1632, %v1658
      %v1680 = vsub.f32 %v1634, %v1661
      %v1681 = vsub.f32 %v1637, %v1664
      %v1682 = vsub.f32 %v1639, %v1667
      %v1683 = vsub.f32 %v1642, %v1670
      %v1684 = vsub.f32 %v1644, %v1673
      %v1685 = vsub.f32 %v1647, %v1676
      %v1686 = vmul.f32 %v1677, 1.442695
      %v1687 = vpow.pop %v1686
      %v1688 = vmul.f32 %v1678, 1.442695
      %v1689 = vpow.pop %v1688
      %v1690 = vmul.f32 %v1679, 1.442695
      %v1691 = vpow.pop %v1690
      %v1692 = vmul.f32 %v1680, 1.442695
      %v1693 = vpow.pop %v1692
      %v1694 = vmul.f32 %v1681, 1.442695
      %v1695 = vpow.pop %v1694
      %v1696 = vmul.f32 %v1682, 1.442695
      %v1697 = vpow.pop %v1696
      %v1698 = vmul.f32 %v1683, 1.442695
      %v1699 = vpow.pop %v1698
      %v1700 = vmul.f32 %v1684, 1.442695
      %v1701 = vpow.pop %v1700
      %v1702 = vmul.f32 %v1685, 1.442695
      %v1703 = vpow.pop %v1702
      %v1704 = vsel %vm699, %v1687, 0.0
      %1705 = vadd.xlane.f32.xlu0 %v1704
      %v1706 = vpop.xlane.xlu0 %1705
      %v1707 = vsel %vm699, %v1689, 0.0
      %1708 = vadd.xlane.f32.xlu0 %v1707
      %v1709 = vpop.xlane.xlu0 %1708
      %v1710 = vsel %vm699, %v1691, 0.0
      %1711 = vadd.xlane.f32.xlu0 %v1710
      %v1712 = vpop.xlane.xlu0 %1711
      %v1713 = vsel %vm699, %v1693, 0.0
      %1714 = vadd.xlane.f32.xlu0 %v1713
      %v1715 = vpop.xlane.xlu0 %1714
      %v1716 = vsel %vm699, %v1695, 0.0
      %1717 = vadd.xlane.f32.xlu0 %v1716
      %v1718 = vpop.xlane.xlu0 %1717
      %v1719 = vsel %vm699, %v1697, 0.0
      %1720 = vadd.xlane.f32.xlu0 %v1719
      %v1721 = vpop.xlane.xlu0 %1720
      %v1722 = vsel %vm699, %v1699, 0.0
      %1723 = vadd.xlane.f32.xlu0 %v1722
      %v1724 = vpop.xlane.xlu0 %1723
      %v1725 = vsel %vm699, %v1701, 0.0
      %1726 = vadd.xlane.f32.xlu0 %v1725
      %v1727 = vpop.xlane.xlu0 %1726
      %v1728 = vsel %vm724, %v1703, 0.0
      %1729 = vadd.xlane.f32.xlu0 %v1728
      %v1730 = vpop.xlane.xlu0 %1729
      %v1731 = vrcp.pop %v1706
      %v1732 = vrcp.pop %v1709
      %v1733 = vrcp.pop %v1712
      %v1734 = vrcp.pop %v1715
      %v1735 = vrcp.pop %v1718
      %v1736 = vrcp.pop %v1721
      %v1737 = vrcp.pop %v1724
      %v1738 = vrcp.pop %v1727
      %v1739 = vrcp.pop %v1730
      %v1740 = vmul.f32 %v1687, %v1731
      %v1741 = vmul.f32 %v1689, %v1732
      %v1742 = vmul.f32 %v1691, %v1733
      %v1743 = vmul.f32 %v1693, %v1734
      %v1744 = vmul.f32 %v1695, %v1735
      %v1745 = vmul.f32 %v1697, %v1736
      %v1746 = vmul.f32 %v1699, %v1737
      %v1747 = vmul.f32 %v1701, %v1738
      %v1748 = vmul.f32 %v1703, %v1739
      %v1749 = vpack.c.bf16 %v1741, %v1740
      %v1750 = vpack.c.bf16 %v1743, %v1742
      %v1751 = vpack.c.bf16 %v1745, %v1744
      %v1752 = vpack.c.bf16 %v1747, %v1746
      %v1753 = vpack.c.bf16 %v1748, %v1748
      %1754 = vrot.lane.b32.xlu0 %v823, 32
      %v1755 = vpop.permute.xlu0 %1754
      %1756 = vrot.lane.b32.xlu0 %v824, 32
      %v1757 = vpop.permute.xlu0 %1756
      %1758 = vrot.lane.b32.xlu0 %v825, 32
      %v1759 = vpop.permute.xlu0 %1758
      %1760 = vrot.lane.b32.xlu0 %v826, 32
      %v1761 = vpop.permute.xlu0 %1760
      %1762 = vrot.lane.b32.xlu0 %v827, 32
      %v1763 = vpop.permute.xlu0 %1762
      %v1769 = vsel %vm699, %v1749, 0
      %v1772 = vsel %vm699, %v1750, 0
      %v1775 = vsel %vm699, %v1751, 0
      %v1778 = vsel %vm699, %v1752, 0
      %v1781 = vsel %vm699, %v1753, 0
      %v1784 = vand.u32 %v1763, %v849
      %1786 = vmatpush.bf16.msra.mxu0 0
      %1787 = vmatpush.bf16.msra.mxu0 0
      %1788 = vmatpush.bf16.msra.mxu0 0
      %1789 = vmatpush.bf16.msra.mxu0 %v1784
      %1790 = vmatpush.bf16.msra.mxu0 %v1761
      %1791 = vmatpush.bf16.msra.mxu0 %v1759
      %1792 = vmatpush.bf16.msra.mxu0 %v1757
      %1793 = vmatpush.bf16.msra.mxu0 %v1755
      %1794 = vmatmul.bf16.gmra.mxu0 %v1769
      %v1795 = vpop.f32.mrf.mxu0
      %v1796 = vadd.f32 0.0, %v1795
      %v1797 = vpop.f32.mrf.mxu0
      %v1798 = vadd.f32 0.0, %v1797
      %1799 = vmatmul.bf16.gmra.mxu0 %v1772
      %v1800 = vpop.f32.mrf.mxu0
      %v1801 = vadd.f32 0.0, %v1800
      %v1802 = vpop.f32.mrf.mxu0
      %v1803 = vadd.f32 0.0, %v1802
      %1804 = vmatmul.bf16.gmra.mxu0 %v1775
      %v1805 = vpop.f32.mrf.mxu0
      %v1806 = vadd.f32 0.0, %v1805
      %v1807 = vpop.f32.mrf.mxu0
      %v1808 = vadd.f32 0.0, %v1807
      %1809 = vmatmul.bf16.gmra.mxu0 %v1778
      %v1810 = vpop.f32.mrf.mxu0
      %v1811 = vadd.f32 0.0, %v1810
      %v1812 = vpop.f32.mrf.mxu0
      %v1813 = vadd.f32 0.0, %v1812
      %1814 = vmatmul.bf16.gmra.mxu0 %v1781
      %v1815 = vpop.f32.mrf.mxu0
      %v1816 = vadd.f32 0.0, %v1815
      %v1817 = vpop.f32.mrf.mxu0
      %1818 = vdwg.mxu0
      %v1819 = vpack.c.bf16 %v1798, %v1796
      %v1820 = vpack.c.bf16 %v1803, %v1801
      %v1821 = vpack.c.bf16 %v1808, %v1806
      %v1822 = vpack.c.bf16 %v1813, %v1811
      %v1823 = vpack.c.bf16 %v1816, %v1816
      %v1824 = vld [vmem:[%s6 + $0x30] sm:$0xf]
      %v1825 = vld [vmem:[%s6 + $0x34] sm:$0xf]
      %v1826 = vld [vmem:[%s6 + $0x38] sm:$0xf]
      %v1827 = vld [vmem:[%s6 + $0x3c] sm:$0xf]
      %v1832 = vunpack.c.l.b16 %v1824
      %v1833 = vunpack.c.l.b16 %v1825
      %v1834 = vunpack.c.l.b16 %v1826
      %v1835 = vunpack.c.l.b16 %v1827
      %v1836 = vpack.c.b16 %v1833, %v1832
      %v1837 = vpack.c.b16 %v1835, %v1834
      %v1841 = vsel %vm650, %v1819, 0
      %v1844 = vsel %vm650, %v1820, 0
      %v1847 = vsel %vm650, %v1821, 0
      %v1850 = vsel %vm650, %v1822, 0
      %v1853 = vsel %vm650, %v1823, 0
      %1855 = vmatpush.bf16.msra.mxu0 0
      %1856 = vmatpush.bf16.msra.mxu0 0
      %1857 = vmatpush.bf16.msra.mxu0 0
      %1858 = vmatpush.bf16.msra.mxu0 0
      %1859 = vmatpush.bf16.msra.mxu0 0
      %1860 = vmatpush.bf16.msra.mxu0 0
      %1861 = vmatpush.bf16.msra.mxu0 %v1837
      %1862 = vmatpush.bf16.msra.mxu0 %v1836
      %1863 = vmatmul.bf16.gmra.mxu0 %v1841
      %v1864 = vpop.f32.mrf.mxu0
      %v1865 = vadd.f32 0.0, %v1864
      %v1866 = vpop.f32.mrf.mxu0
      %v1867 = vadd.f32 0.0, %v1866
      %1868 = vmatmul.bf16.gmra.mxu0 %v1844
      %v1869 = vpop.f32.mrf.mxu0
      %v1870 = vadd.f32 0.0, %v1869
      %v1871 = vpop.f32.mrf.mxu0
      %v1872 = vadd.f32 0.0, %v1871
      %1873 = vmatmul.bf16.gmra.mxu0 %v1847
      %v1874 = vpop.f32.mrf.mxu0
      %v1875 = vadd.f32 0.0, %v1874
      %v1876 = vpop.f32.mrf.mxu0
      %v1877 = vadd.f32 0.0, %v1876
      %1878 = vmatmul.bf16.gmra.mxu0 %v1850
      %v1879 = vpop.f32.mrf.mxu0
      %v1880 = vadd.f32 0.0, %v1879
      %v1881 = vpop.f32.mrf.mxu0
      %v1882 = vadd.f32 0.0, %v1881
      %1883 = vmatmul.bf16.gmra.mxu0 %v1853
      %v1884 = vpop.f32.mrf.mxu0
      %v1885 = vadd.f32 0.0, %v1884
      %v1886 = vpop.f32.mrf.mxu0
      %1887 = vdwg.mxu0
      %v1888 = vadd.f32 %v1571, %v1865
      %v1889 = vadd.f32 %v1572, %v1867
      %v1890 = vadd.f32 %v1573, %v1870
      %v1891 = vadd.f32 %v1574, %v1872
      %v1892 = vadd.f32 %v1575, %v1875
      %v1893 = vadd.f32 %v1576, %v1877
      %v1894 = vadd.f32 %v1577, %v1880
      %v1895 = vadd.f32 %v1578, %v1882
      %v1896 = vadd.f32 %v1579, %v1885
      %v1897 = vld [vmem:[%s7] sm:$0x1]
      %v1899 = vperm.slane %v1897, 0
      %v1901 = vadd.f32 %v1888, %v1899
      %v1902 = vadd.f32 %v1889, %v1899
      %v1903 = vadd.f32 %v1890, %v1899
      %v1904 = vadd.f32 %v1891, %v1899
      %v1905 = vadd.f32 %v1892, %v1899
      %v1906 = vadd.f32 %v1893, %v1899
      %v1907 = vadd.f32 %v1894, %v1899
      %v1908 = vadd.f32 %v1895, %v1899
      %v1909 = vadd.f32 %v1896, %v1899
      %vm1910 = vcmask 523264
      %1911 = vst.msk [vmem:[%s325] sm:$0xff] %vm1910, %v1901
      %1912 = vst.msk [vmem:[%s325 + $0x8] sm:$0xff] %vm1910, %v1902
      %1913 = vst.msk [vmem:[%s325 + $0x10] sm:$0xff] %vm1910, %v1903
      %1914 = vst.msk [vmem:[%s325 + $0x18] sm:$0xff] %vm1910, %v1904
      %1915 = vst.msk [vmem:[%s325 + $0x20] sm:$0xff] %vm1910, %v1905
      %1916 = vst.msk [vmem:[%s325 + $0x28] sm:$0xff] %vm1910, %v1906
      %1917 = vst.msk [vmem:[%s325 + $0x30] sm:$0xff] %vm1910, %v1907
      %1918 = vst.msk [vmem:[%s325 + $0x38] sm:$0xff] %vm1910, %v1908
      %vm1919 = vcmask 516096
      %1920 = vst.msk [vmem:[%s325 + $0x40] sm:$0x1] %vm1919, %v1909
      %p1921 = scmp.lt.s32.totalorder %s19, 1
      %s1922 = scalar_select %p1921, %s19, 1
      %s1923 = smul.addr %s1922, 9
      %s1924 = smul.addr %s1923, 8
      %s1925 = scalar_lea.vmem %s8, %s1924
      // Predicated region
      $region53: #{attention_forward.5} parent=51 // pred_check
        %p1926 = pneg %p215
      $region54: #{attention_forward.5} parent=51 // pred_check_branch
        %1928 = sbr.rel (%p1926) target = $region56
      $region55: #{attention_forward.5} parent=51 // pred_region
        _
      $region56: #{attention_forward.5} parent=51 // pred_fallthru
        _
    $region52: #{attention_forward.5} parent=5 // pred_fallthru
      _
    %p1929 = scmp.le.s32.totalorder 2, %s14
    // Predicated region
    $region57: #{attention_forward.5} parent=5 // pred_check
      %p1930 = pneg %p1929
    $region58: #{attention_forward.5} parent=5 // pred_check_branch
      %1932 = sbr.rel (%p1930) target = $region60
    $region59: #{attention_forward.5} parent=5 // pred_region
      %s1933 = ssub.s32 %s14, 2
      // Predicated region
      $region61: #{attention_forward.5} parent=59 // pred_check
        %p1934 = pneg %p221
      $region62: #{attention_forward.5} parent=59 // pred_check_branch
        %1936 = sbr.rel (%p1934) target = $region64
      $region63: #{attention_forward.5} parent=59 // pred_region
        %p1937 = scmp.lt.s32.totalorder %s20, 1
        %s1938 = scalar_select %p1937, %s20, 1
        %s1939 = smul.addr %s1938, 9
        %s1940 = smul.addr %s1939, 8
        %s1941 = scalar_lea.vmem %s8, %s1940
      $region64: #{attention_forward.5} parent=59 // pred_fallthru
        _
    $region60: #{attention_forward.5} parent=5 // pred_fallthru
      _
  $region6: #{attention_forward.5} parent=0 // loop_footer
    %s18 = sadd.s32 1, %s14
  $region7: #{attention_forward.5} parent=0 // loop_footer_branch
    %13 = sbr.rel target = $region3
  $region8: #{attention_forward.5} parent=0 // loop_exit
    _

</llo_original>
